<compile_context>
chip_gen: v7x
topology: tpu7x:2x2x1
jax: 0.10.0
libtpu: 0.0.40
codegen_flags: <defaults>
</compile_context>

<pallas_src>
import math
from functools import partial

import jax
import jax.numpy as jnp
from jax.experimental import pallas as pl
from jax.experimental.pallas import tpu as pltpu

LANE = 128  # pad channel dims up to the 128-wide lane dimension


def _round_up(x, m):
    return (x + m - 1) // m * m


# ----------------------------------------------------------------------------
# Pallas kernel (one batch element per grid step)
# ----------------------------------------------------------------------------
def resblk_kernel(x_ref, w1_ref, b1_ref, w2_ref, b2_ref, wsc_ref,
                  g1_ref, be1_ref, g2_ref, be2_ref,
                  o_ref,
                  pad1_ref, pad2_ref, pool_ref, im_ref):
    H, W, Cp = pool_ref.shape
    Hp, Wp = H // 2, W // 2
    f32 = jnp.float32
    bf16 = jnp.bfloat16
    inv_sqrt2 = f32(1.0 / math.sqrt(2.0))

    # Zero the conv-padding scratches (only the borders matter; interiors are
    # overwritten below).  Done every step so the kernel stays correct when the
    # parallel grid axis is split across TensorCores (megacore / v7x).
    pad1_ref[...] = jnp.zeros_like(pad1_ref)
    pad2_ref[...] = jnp.zeros_like(pad2_ref)

    x = x_ref[...].astype(f32)                                 # (H*W, Cp)

    def inorm(v, g, b):
        # InstanceNorm2d: per-channel stats over the spatial axis, biased
        # variance, eps=1e-5, affine.  rsqrt lands on the EUP slot.
        mu = jnp.mean(v, axis=0, keepdims=True)
        var = jnp.mean((v - mu) * (v - mu), axis=0, keepdims=True)
        return (v - mu) * jax.lax.rsqrt(var + 1e-5) * g + b

    def lrelu(v):
        return jnp.where(v > 0, v, 0.2 * v)

    def avg_pool2(v):
        # 2x2 average pool: (H*W, Cp) -> (Hp*Wp, Cp).  Pure VPU adds over
        # strided VMEM loads — no pooling matrix, no MXU flops.
        pool_ref[...] = v.reshape(H, W, Cp)
        a = pool_ref[pl.ds(0, Hp, stride=2), pl.ds(0, Wp, stride=2), :]
        b = pool_ref[pl.ds(0, Hp, stride=2), pl.ds(1, Wp, stride=2), :]
        c = pool_ref[pl.ds(1, Hp, stride=2), pl.ds(0, Wp, stride=2), :]
        d = pool_ref[pl.ds(1, Hp, stride=2), pl.ds(1, Wp, stride=2), :]
        return (((a + b) + (c + d)) * f32(0.25)).reshape(Hp * Wp, Cp)

    def conv3x3(v, hh, ww, pad_ref, w_ref_, b_ref_):
        # 'same' 3x3 conv as ONE fused im2col matmul:
        #   zero-padded scratch -> 9 shifted windows written to lane-aligned
        #   128-wide column blocks of the bf16 im2col scratch -> single MXU dot
        #   with contraction dim 9*Cp, f32 accumulation.
        n = hh * ww
        pad_ref[1:hh + 1, 1:ww + 1, :] = v.reshape(hh, ww, Cp)
        for t in range(9):
            dy, dx = t // 3, t % 3
            win = pad_ref[dy:dy + hh, dx:dx + ww, :]           # (hh, ww, Cp)
            im_ref[0:n, t * Cp:(t + 1) * Cp] = (
                win.reshape(n, Cp).astype(bf16))
        acc = jnp.dot(im_ref[0:n, :], w_ref_[...],
                      preferred_element_type=f32)              # (n, Cp)
        return acc + b_ref_[...]

    # ---------------- shortcut branch: 1x1 conv (no bias) + avg_pool --------
    sc = jnp.dot(x.astype(bf16), wsc_ref[...], preferred_element_type=f32)
    sc = avg_pool2(sc)                                         # (Hp*Wp, Cp)

    # ---------------- residual branch ---------------------------------------
    r = lrelu(inorm(x, g1_ref[...], be1_ref[...]))
    r = conv3x3(r, H, W, pad1_ref, w1_ref, b1_ref)             # conv1: Cin->Cin
    r = avg_pool2(r)                                           # (Hp*Wp, Cp)
    r = lrelu(inorm(r, g2_ref[...], be2_ref[...]))
    r = conv3x3(r, Hp, Wp, pad2_ref, w2_ref, b2_ref)           # conv2: Cin->Cout

    o_ref[...] = ((sc + r) * inv_sqrt2).astype(o_ref.dtype)


# ----------------------------------------------------------------------------
# Wrapper
# ----------------------------------------------------------------------------
@partial(jax.jit, static_argnums=(2,))
def resblk_forward(x_nchw, params, dim_out):
    """x_nchw: (N, Cin, H, W) float32 -> (N, dim_out, H//2, W//2) float32."""
    N, Cin, H, W = x_nchw.shape
    Cp = params["w1"].shape[1]
    Hp, Wp = H // 2, W // 2

    # NCHW -> NHWC, pad channels to lane-dense width, flatten spatial dims.
    # TODO(synk): drop the NCHW<->NHWC transposes if the surrounding model can
    # stay channels-last (they double HBM traffic at real image sizes).
    x = jnp.transpose(x_nchw, (0, 2, 3, 1))
    x = jnp.pad(x, ((0, 0), (0, 0), (0, 0), (0, Cp - Cin)))
    x = x.reshape(N, H * W, Cp)

    out = pl.pallas_call(
        resblk_kernel,
        out_shape=jax.ShapeDtypeStruct((N, Hp * Wp, Cp), x.dtype),
        grid=(N,),
        in_specs=[
            pl.BlockSpec((None, H * W, Cp), lambda n: (n, 0, 0)),   # x
            pl.BlockSpec((9 * Cp, Cp), lambda n: (0, 0)),           # w1 (bf16)
            pl.BlockSpec((1, Cp), lambda n: (0, 0)),                # b1
            pl.BlockSpec((9 * Cp, Cp), lambda n: (0, 0)),           # w2 (bf16)
            pl.BlockSpec((1, Cp), lambda n: (0, 0)),                # b2
            pl.BlockSpec((Cp, Cp), lambda n: (0, 0)),               # wsc (bf16)
            pl.BlockSpec((1, Cp), lambda n: (0, 0)),                # gamma1
            pl.BlockSpec((1, Cp), lambda n: (0, 0)),                # beta1
            pl.BlockSpec((1, Cp), lambda n: (0, 0)),                # gamma2
            pl.BlockSpec((1, Cp), lambda n: (0, 0)),                # beta2
        ],
        out_specs=pl.BlockSpec((None, Hp * Wp, Cp), lambda n: (n, 0, 0)),
        scratch_shapes=[
            pltpu.VMEM((H + 2, W + 2, Cp), jnp.float32),     # conv1 zero-pad
            pltpu.VMEM((Hp + 2, Wp + 2, Cp), jnp.float32),   # conv2 zero-pad
            pltpu.VMEM((H, W, Cp), jnp.float32),             # pooling scratch
            pltpu.VMEM((H * W, 9 * Cp), jnp.bfloat16),       # im2col scratch
        ],
        compiler_params=pltpu.CompilerParams(
            dimension_semantics=("parallel",)),
    )(x, params["w1"], params["b1"], params["w2"], params["b2"],
      params["wsc"], params["g1"], params["be1"], params["g2"], params["be2"])

    out = out.reshape(N, Hp, Wp, Cp)[..., :dim_out]
    return jnp.transpose(out, (0, 3, 1, 2))                    # -> NCHW


def make_params(raw, dim_in, dim_out):
    """Convert PyTorch-convention params into lane-dense kernel layouts."""
    Cp = _round_up(max(dim_in, dim_out), LANE)

    def conv_w(w_oihw, cin, cout):
        w = jnp.transpose(w_oihw, (2, 3, 1, 0))                # (3,3,cin,cout)
        w = jnp.pad(w, ((0, 0), (0, 0), (0, Cp - cin), (0, Cp - cout)))
        return w.reshape(9 * Cp, Cp).astype(jnp.bfloat16)

    def vec(v):
        return jnp.pad(v, (0, Cp - v.shape[0])).reshape(1, Cp).astype(jnp.float32)

    wsc = raw["wsc_oihw"][:, :, 0, 0].T                        # (cin, cout)
    wsc = jnp.pad(wsc, ((0, Cp - dim_in), (0, Cp - dim_out))).astype(jnp.bfloat16)

    return dict(
        w1=conv_w(raw["w1_oihw"], dim_in, dim_in),
        b1=vec(raw["b1"]),
        w2=conv_w(raw["w2_oihw"], dim_in, dim_out),
        b2=vec(raw["b2"]),
        wsc=wsc,
        g1=vec(raw["g1"]), be1=vec(raw["be1"]),
        g2=vec(raw["g2"]), be2=vec(raw["be2"]),
    )


# ----------------------------------------------------------------------------
# Pure-JAX reference (matches the PyTorch module exactly, f32 everywhere)
# ----------------------------------------------------------------------------
def ref_forward(x_nchw, raw):
    x = jnp.transpose(x_nchw, (0, 2, 3, 1))                    # NHWC

    def conv(v, w_oihw, b=None, padding="SAME"):
        w_hwio = jnp.transpose(w_oihw, (2, 3, 1, 0))
        out = jax.lax.conv_general_dilated(
            v, w_hwio, (1, 1), padding,
            dimension_numbers=("NHWC", "HWIO", "NHWC"))
        if b is not None:
            out = out + b.reshape(1, 1, 1, -1)
        return out

    def inorm(v, g, b):
        mu = v.mean(axis=(1, 2), keepdims=True)
        var = ((v - mu) ** 2).mean(axis=(1, 2), keepdims=True)
        return (v - mu) * jax.lax.rsqrt(var + 1e-5) * g.reshape(1, 1, 1, -1) \
            + b.reshape(1, 1, 1, -1)

    def lrelu(v):
        return jnp.where(v > 0, v, 0.2 * v)

    def pool2(v):
        N, H, W, C = v.shape
        return v.reshape(N, H // 2, 2, W // 2, 2, C).mean(axis=(2, 4))

    sc = conv(x, raw["wsc_oihw"], None, "VALID")
    sc = pool2(sc)

    r = inorm(x, raw["g1"], raw["be1"])
    r = lrelu(r)
    r = conv(r, raw["w1_oihw"], raw["b1"])
    r = pool2(r)
    r = inorm(r, raw["g2"], raw["be2"])
    r = lrelu(r)
    r = conv(r, raw["w2_oihw"], raw["b2"])

    out = (sc + r) / math.sqrt(2.0)
    return jnp.transpose(out, (0, 3, 1, 2))                    # NCHW


# ----------------------------------------------------------------------------
if __name__ == "__main__":
    N, Cin, Cout, H, W = 2, 4, 8, 16, 16

    key = jax.random.PRNGKey(0)
    ks = jax.random.split(key, 10)

    # Synthetic parameters in PyTorch OIHW convention.
    w1_oihw = jax.random.normal(ks[0], (Cin, Cin, 3, 3), jnp.float32) * 0.1
    b1 = jax.random.normal(ks[1], (Cin,), jnp.float32) * 0.1
    w2_oihw = jax.random.normal(ks[2], (Cout, Cin, 3, 3), jnp.float32) * 0.1
    b2 = jax.random.normal(ks[3], (Cout,), jnp.float32) * 0.1
    wsc_oihw = jax.random.normal(ks[4], (Cout, Cin, 1, 1), jnp.float32) * 0.1
    g1 = 1.0 + 0.1 * jax.random.normal(ks[5], (Cin,), jnp.float32)
    be1 = 0.1 * jax.random.normal(ks[6], (Cin,), jnp.float32)
    g2 = 1.0 + 0.1 * jax.random.normal(ks[7], (Cin,), jnp.float32)
    be2 = 0.1 * jax.random.normal(ks[8], (Cin,), jnp.float32)

    raw = dict(w1_oihw=w1_oihw, b1=b1, w2_oihw=w2_oihw, b2=b2,
               wsc_oihw=wsc_oihw, g1=g1, be1=be1, g2=g2, be2=be2)
    params = make_params(raw, Cin, Cout)

    x = jax.random.normal(ks[9], (N, Cin, H, W), jnp.float32)

    out = jax.block_until_ready(resblk_forward(x, params, Cout))
    ref = jax.block_until_ready(ref_forward(x, raw))

    assert out.shape == (N, Cout, H // 2, W // 2), out.shape
    abs_err = float(jnp.max(jnp.abs(out - ref)))
    scale = max(float(jnp.max(jnp.abs(ref))), 1.0)
    # bf16 MXU operands with f32 accumulation -> loose (but scaled) tolerance.
    assert abs_err <= 0.05 * scale, (
        f"max abs diff vs f32 reference = {abs_err} (scale {scale})")

    print("KERNEL_OK")
</pallas_src>

<mosaic_0001>
module attributes {stable_mosaic.version = 11 : i64} {
  func.func @resblk_kernel(%arg0: i32, %arg1: memref<1x256x128xf32, #tpu.memory_space<vmem>>, %arg2: memref<1152x128xbf16, #tpu.memory_space<vmem>>, %arg3: memref<1x128xf32, #tpu.memory_space<vmem>>, %arg4: memref<1152x128xbf16, #tpu.memory_space<vmem>>, %arg5: memref<1x128xf32, #tpu.memory_space<vmem>>, %arg6: memref<128x128xbf16, #tpu.memory_space<vmem>>, %arg7: memref<1x128xf32, #tpu.memory_space<vmem>>, %arg8: memref<1x128xf32, #tpu.memory_space<vmem>>, %arg9: memref<1x128xf32, #tpu.memory_space<vmem>>, %arg10: memref<1x128xf32, #tpu.memory_space<vmem>>, %arg11: memref<1x64x128xf32, #tpu.memory_space<vmem>>, %arg12: memref<18x18x128xf32, #tpu.memory_space<vmem>>, %arg13: memref<10x10x128xf32, #tpu.memory_space<vmem>>, %arg14: memref<16x16x128xf32, #tpu.memory_space<vmem>>, %arg15: memref<256x1152xbf16, #tpu.memory_space<vmem>>) attributes {dimension_semantics = [#tpu.dimension_semantics<parallel>], iteration_bounds = array<i64: 2>, scalar_prefetch = 0 : i64, scratch_operands = 4 : i64, tpu.core_type = #tpu.core_type<tc>, window_params = [{transform_indices = @transform_0, window_bounds = array<i64: 1, 256, 128>}, {pipeline_mode = #tpu.pipeline_mode<synchronous>, transform_indices = @transform_1, window_bounds = array<i64: 1152, 128>}, {pipeline_mode = #tpu.pipeline_mode<synchronous>, transform_indices = @transform_2, window_bounds = array<i64: 1, 128>}, {pipeline_mode = #tpu.pipeline_mode<synchronous>, transform_indices = @transform_3, window_bounds = array<i64: 1152, 128>}, {pipeline_mode = #tpu.pipeline_mode<synchronous>, transform_indices = @transform_4, window_bounds = array<i64: 1, 128>}, {pipeline_mode = #tpu.pipeline_mode<synchronous>, transform_indices = @transform_5, window_bounds = array<i64: 128, 128>}, {pipeline_mode = #tpu.pipeline_mode<synchronous>, transform_indices = @transform_6, window_bounds = array<i64: 1, 128>}, {pipeline_mode = #tpu.pipeline_mode<synchronous>, transform_indices = @transform_7, window_bounds = array<i64: 1, 128>}, {pipeline_mode = #tpu.pipeline_mode<synchronous>, transform_indices = @transform_8, window_bounds = array<i64: 1, 128>}, {pipeline_mode = #tpu.pipeline_mode<synchronous>, transform_indices = @transform_9, window_bounds = array<i64: 1, 128>}, {transform_indices = @transform_10, window_bounds = array<i64: 1, 64, 128>}]} {
    %cst = arith.constant 0.000000e+00 : f32
    %0 = vector.broadcast %cst : f32 to vector<18x18x128xf32>
    %c0 = arith.constant 0 : index
    %c0_0 = arith.constant 0 : index
    %c0_1 = arith.constant 0 : index
    %1 = vector.load %arg12[%c0, %c0_0, %c0_1] : memref<18x18x128xf32, #tpu.memory_space<vmem>>, vector<18x18x128xf32>
    tpu.vector_store %arg12[%c0, %c0_0, %c0_1], %0 {strides = array<i32>} : memref<18x18x128xf32, #tpu.memory_space<vmem>>, vector<18x18x128xf32>,
    %cst_2 = arith.constant 0.000000e+00 : f32
    %2 = vector.broadcast %cst_2 : f32 to vector<10x10x128xf32>
    %c0_3 = arith.constant 0 : index
    %c0_4 = arith.constant 0 : index
    %c0_5 = arith.constant 0 : index
    %3 = vector.load %arg13[%c0_3, %c0_4, %c0_5] : memref<10x10x128xf32, #tpu.memory_space<vmem>>, vector<10x10x128xf32>
    tpu.vector_store %arg13[%c0_3, %c0_4, %c0_5], %2 {strides = array<i32>} : memref<10x10x128xf32, #tpu.memory_space<vmem>>, vector<10x10x128xf32>,
    %c0_6 = arith.constant 0 : index
    %c0_7 = arith.constant 0 : index
    %c0_8 = arith.constant 0 : index
    %4 = vector.load %arg1[%c0_6, %c0_7, %c0_8] : memref<1x256x128xf32, #tpu.memory_space<vmem>>, vector<1x256x128xf32>
    %5 = vector.shape_cast %4 : vector<1x256x128xf32> to vector<256x128xf32>
    %6 = arith.truncf %5 : vector<256x128xf32> to vector<256x128xbf16>
    %c0_9 = arith.constant 0 : index
    %c0_10 = arith.constant 0 : index
    %7 = vector.load %arg6[%c0_9, %c0_10] : memref<128x128xbf16, #tpu.memory_space<vmem>>, vector<128x128xbf16>
    %cst_11 = arith.constant dense<0.000000e+00> : vector<256x128xf32>
    %8 = tpu.matmul %6, %7, %cst_11 {dimension_numbers = #tpu.dot_dimension_numbers<[1], [0], [0], [1], [0, 0, 1, 1], [], []>} : vector<256x128xbf16>, vector<128x128xbf16>, vector<256x128xf32> -> vector<256x128xf32>
    %9 = vector.shape_cast %8 : vector<256x128xf32> to vector<16x16x128xf32>
    %c0_12 = arith.constant 0 : index
    %c0_13 = arith.constant 0 : index
    %c0_14 = arith.constant 0 : index
    %10 = vector.load %arg14[%c0_12, %c0_13, %c0_14] : memref<16x16x128xf32, #tpu.memory_space<vmem>>, vector<16x16x128xf32>
    tpu.vector_store %arg14[%c0_12, %c0_13, %c0_14], %9 {strides = array<i32>} : memref<16x16x128xf32, #tpu.memory_space<vmem>>, vector<16x16x128xf32>,
    %c0_15 = arith.constant 0 : index
    %c0_16 = arith.constant 0 : index
    %c0_17 = arith.constant 0 : index
    %11 = tpu.strided_load %arg14[%c0_15, %c0_16, %c0_17] {strides = array<i32: 2, 2, 1>} : memref<16x16x128xf32, #tpu.memory_space<vmem>>, vector<8x8x128xf32>
    %c0_18 = arith.constant 0 : index
    %c1 = arith.constant 1 : index
    %c0_19 = arith.constant 0 : index
    %12 = tpu.strided_load %arg14[%c0_18, %c1, %c0_19] {strides = array<i32: 2, 2, 1>} : memref<16x16x128xf32, #tpu.memory_space<vmem>>, vector<8x8x128xf32>
    %c1_20 = arith.constant 1 : index
    %c0_21 = arith.constant 0 : index
    %c0_22 = arith.constant 0 : index
    %13 = tpu.strided_load %arg14[%c1_20, %c0_21, %c0_22] {strides = array<i32: 2, 2, 1>} : memref<16x16x128xf32, #tpu.memory_space<vmem>>, vector<8x8x128xf32>
    %c1_23 = arith.constant 1 : index
    %c1_24 = arith.constant 1 : index
    %c0_25 = arith.constant 0 : index
    %14 = tpu.strided_load %arg14[%c1_23, %c1_24, %c0_25] {strides = array<i32: 2, 2, 1>} : memref<16x16x128xf32, #tpu.memory_space<vmem>>, vector<8x8x128xf32>
    %15 = arith.addf %11, %12 : vector<8x8x128xf32>
    %16 = arith.addf %13, %14 : vector<8x8x128xf32>
    %17 = arith.addf %15, %16 : vector<8x8x128xf32>
    %cst_26 = arith.constant 2.500000e-01 : f32
    %18 = vector.broadcast %cst_26 : f32 to vector<8x8x128xf32>
    %19 = arith.mulf %17, %18 : vector<8x8x128xf32>
    %20 = vector.shape_cast %19 : vector<8x8x128xf32> to vector<64x128xf32>
    %c0_27 = arith.constant 0 : index
    %c0_28 = arith.constant 0 : index
    %21 = vector.load %arg7[%c0_27, %c0_28] : memref<1x128xf32, #tpu.memory_space<vmem>>, vector<1x128xf32>
    %c0_29 = arith.constant 0 : index
    %c0_30 = arith.constant 0 : index
    %22 = vector.load %arg8[%c0_29, %c0_30] : memref<1x128xf32, #tpu.memory_space<vmem>>, vector<1x128xf32>
    %cst_31 = arith.constant dense<0.000000e+00> : vector<128xf32>
    %23 = vector.multi_reduction <add>, %5, %cst_31 [0] : vector<256x128xf32> to vector<128xf32>
    %24 = vector.shape_cast %23 : vector<128xf32> to vector<1x128xf32>
    %cst_32 = arith.constant 2.560000e+02 : f32
    %25 = vector.broadcast %cst_32 : f32 to vector<1x128xf32>
    %26 = arith.divf %24, %25 : vector<1x128xf32>
    %27 = vector.broadcast %26 : vector<1x128xf32> to vector<256x128xf32>
    %28 = arith.subf %5, %27 : vector<256x128xf32>
    %29 = vector.broadcast %26 : vector<1x128xf32> to vector<256x128xf32>
    %30 = arith.subf %5, %29 : vector<256x128xf32>
    %31 = arith.mulf %28, %30 : vector<256x128xf32>
    %cst_33 = arith.constant dense<0.000000e+00> : vector<128xf32>
    %32 = vector.multi_reduction <add>, %31, %cst_33 [0] : vector<256x128xf32> to vector<128xf32>
    %33 = vector.shape_cast %32 : vector<128xf32> to vector<1x128xf32>
    %cst_34 = arith.constant 2.560000e+02 : f32
    %34 = vector.broadcast %cst_34 : f32 to vector<1x128xf32>
    %35 = arith.divf %33, %34 : vector<1x128xf32>
    %36 = vector.broadcast %26 : vector<1x128xf32> to vector<256x128xf32>
    %37 = arith.subf %5, %36 : vector<256x128xf32>
    %cst_35 = arith.constant 9.99999974E-6 : f32
    %38 = vector.broadcast %cst_35 : f32 to vector<1x128xf32>
    %39 = arith.addf %35, %38 : vector<1x128xf32>
    %40 = math.rsqrt %39 : vector<1x128xf32>
    %41 = vector.broadcast %40 : vector<1x128xf32> to vector<256x128xf32>
    %42 = arith.mulf %37, %41 : vector<256x128xf32>
    %43 = vector.broadcast %21 : vector<1x128xf32> to vector<256x128xf32>
    %44 = arith.mulf %42, %43 : vector<256x128xf32>
    %45 = vector.broadcast %22 : vector<1x128xf32> to vector<256x128xf32>
    %46 = arith.addf %44, %45 : vector<256x128xf32>
    %cst_36 = arith.constant 0.000000e+00 : f32
    %47 = vector.broadcast %cst_36 : f32 to vector<256x128xf32>
    %48 = arith.cmpf ogt, %46, %47 : vector<256x128xf32>
    %cst_37 = arith.constant 2.000000e-01 : f32
    %49 = vector.broadcast %cst_37 : f32 to vector<256x128xf32>
    %50 = arith.mulf %49, %46 : vector<256x128xf32>
    %51 = arith.select %48, %46, %50 : vector<256x128xi1>, vector<256x128xf32>
    %52 = vector.shape_cast %51 : vector<256x128xf32> to vector<16x16x128xf32>
    %c1_38 = arith.constant 1 : index
    %c1_39 = arith.constant 1 : index
    %c0_40 = arith.constant 0 : index
    %53 = vector.load %arg12[%c1_38, %c1_39, %c0_40] : memref<18x18x128xf32, #tpu.memory_space<vmem>>, vector<16x16x128xf32>
    tpu.vector_store %arg12[%c1_38, %c1_39, %c0_40], %52 {strides = array<i32>} : memref<18x18x128xf32, #tpu.memory_space<vmem>>, vector<16x16x128xf32>,
    %c0_41 = arith.constant 0 : index
    %c0_42 = arith.constant 0 : index
    %c0_43 = arith.constant 0 : index
    %54 = vector.load %arg12[%c0_41, %c0_42, %c0_43] : memref<18x18x128xf32, #tpu.memory_space<vmem>>, vector<16x16x128xf32>
    %55 = vector.shape_cast %54 : vector<16x16x128xf32> to vector<256x128xf32>
    %56 = arith.truncf %55 : vector<256x128xf32> to vector<256x128xbf16>
    %c0_44 = arith.constant 0 : index
    %c0_45 = arith.constant 0 : index
    %57 = vector.load %arg15[%c0_44, %c0_45] : memref<256x1152xbf16, #tpu.memory_space<vmem>>, vector<256x128xbf16>
    tpu.vector_store %arg15[%c0_44, %c0_45], %56 {strides = array<i32>} : memref<256x1152xbf16, #tpu.memory_space<vmem>>, vector<256x128xbf16>,
    %c0_46 = arith.constant 0 : index
    %c1_47 = arith.constant 1 : index
    %c0_48 = arith.constant 0 : index
    %58 = vector.load %arg12[%c0_46, %c1_47, %c0_48] : memref<18x18x128xf32, #tpu.memory_space<vmem>>, vector<16x16x128xf32>
    %59 = vector.shape_cast %58 : vector<16x16x128xf32> to vector<256x128xf32>
    %60 = arith.truncf %59 : vector<256x128xf32> to vector<256x128xbf16>
    %c0_49 = arith.constant 0 : index
    %c128 = arith.constant 128 : index
    %61 = vector.load %arg15[%c0_49, %c128] : memref<256x1152xbf16, #tpu.memory_space<vmem>>, vector<256x128xbf16>
    tpu.vector_store %arg15[%c0_49, %c128], %60 {strides = array<i32>} : memref<256x1152xbf16, #tpu.memory_space<vmem>>, vector<256x128xbf16>,
    %c0_50 = arith.constant 0 : index
    %c2 = arith.constant 2 : index
    %c0_51 = arith.constant 0 : index
    %62 = vector.load %arg12[%c0_50, %c2, %c0_51] : memref<18x18x128xf32, #tpu.memory_space<vmem>>, vector<16x16x128xf32>
    %63 = vector.shape_cast %62 : vector<16x16x128xf32> to vector<256x128xf32>
    %64 = arith.truncf %63 : vector<256x128xf32> to vector<256x128xbf16>
    %c0_52 = arith.constant 0 : index
    %c256 = arith.constant 256 : index
    %65 = vector.load %arg15[%c0_52, %c256] : memref<256x1152xbf16, #tpu.memory_space<vmem>>, vector<256x128xbf16>
    tpu.vector_store %arg15[%c0_52, %c256], %64 {strides = array<i32>} : memref<256x1152xbf16, #tpu.memory_space<vmem>>, vector<256x128xbf16>,
    %c1_53 = arith.constant 1 : index
    %c0_54 = arith.constant 0 : index
    %c0_55 = arith.constant 0 : index
    %66 = vector.load %arg12[%c1_53, %c0_54, %c0_55] : memref<18x18x128xf32, #tpu.memory_space<vmem>>, vector<16x16x128xf32>
    %67 = vector.shape_cast %66 : vector<16x16x128xf32> to vector<256x128xf32>
    %68 = arith.truncf %67 : vector<256x128xf32> to vector<256x128xbf16>
    %c0_56 = arith.constant 0 : index
    %c384 = arith.constant 384 : index
    %69 = vector.load %arg15[%c0_56, %c384] : memref<256x1152xbf16, #tpu.memory_space<vmem>>, vector<256x128xbf16>
    tpu.vector_store %arg15[%c0_56, %c384], %68 {strides = array<i32>} : memref<256x1152xbf16, #tpu.memory_space<vmem>>, vector<256x128xbf16>,
    %c1_57 = arith.constant 1 : index
    %c1_58 = arith.constant 1 : index
    %c0_59 = arith.constant 0 : index
    %70 = vector.load %arg12[%c1_57, %c1_58, %c0_59] : memref<18x18x128xf32, #tpu.memory_space<vmem>>, vector<16x16x128xf32>
    %71 = vector.shape_cast %70 : vector<16x16x128xf32> to vector<256x128xf32>
    %72 = arith.truncf %71 : vector<256x128xf32> to vector<256x128xbf16>
    %c0_60 = arith.constant 0 : index
    %c512 = arith.constant 512 : index
    %73 = vector.load %arg15[%c0_60, %c512] : memref<256x1152xbf16, #tpu.memory_space<vmem>>, vector<256x128xbf16>
    tpu.vector_store %arg15[%c0_60, %c512], %72 {strides = array<i32>} : memref<256x1152xbf16, #tpu.memory_space<vmem>>, vector<256x128xbf16>,
    %c1_61 = arith.constant 1 : index
    %c2_62 = arith.constant 2 : index
    %c0_63 = arith.constant 0 : index
    %74 = vector.load %arg12[%c1_61, %c2_62, %c0_63] : memref<18x18x128xf32, #tpu.memory_space<vmem>>, vector<16x16x128xf32>
    %75 = vector.shape_cast %74 : vector<16x16x128xf32> to vector<256x128xf32>
    %76 = arith.truncf %75 : vector<256x128xf32> to vector<256x128xbf16>
    %c0_64 = arith.constant 0 : index
    %c640 = arith.constant 640 : index
    %77 = vector.load %arg15[%c0_64, %c640] : memref<256x1152xbf16, #tpu.memory_space<vmem>>, vector<256x128xbf16>
    tpu.vector_store %arg15[%c0_64, %c640], %76 {strides = array<i32>} : memref<256x1152xbf16, #tpu.memory_space<vmem>>, vector<256x128xbf16>,
    %c2_65 = arith.constant 2 : index
    %c0_66 = arith.constant 0 : index
    %c0_67 = arith.constant 0 : index
    %78 = vector.load %arg12[%c2_65, %c0_66, %c0_67] : memref<18x18x128xf32, #tpu.memory_space<vmem>>, vector<16x16x128xf32>
    %79 = vector.shape_cast %78 : vector<16x16x128xf32> to vector<256x128xf32>
    %80 = arith.truncf %79 : vector<256x128xf32> to vector<256x128xbf16>
    %c0_68 = arith.constant 0 : index
    %c768 = arith.constant 768 : index
    %81 = vector.load %arg15[%c0_68, %c768] : memref<256x1152xbf16, #tpu.memory_space<vmem>>, vector<256x128xbf16>
    tpu.vector_store %arg15[%c0_68, %c768], %80 {strides = array<i32>} : memref<256x1152xbf16, #tpu.memory_space<vmem>>, vector<256x128xbf16>,
    %c2_69 = arith.constant 2 : index
    %c1_70 = arith.constant 1 : index
    %c0_71 = arith.constant 0 : index
    %82 = vector.load %arg12[%c2_69, %c1_70, %c0_71] : memref<18x18x128xf32, #tpu.memory_space<vmem>>, vector<16x16x128xf32>
    %83 = vector.shape_cast %82 : vector<16x16x128xf32> to vector<256x128xf32>
    %84 = arith.truncf %83 : vector<256x128xf32> to vector<256x128xbf16>
    %c0_72 = arith.constant 0 : index
    %c896 = arith.constant 896 : index
    %85 = vector.load %arg15[%c0_72, %c896] : memref<256x1152xbf16, #tpu.memory_space<vmem>>, vector<256x128xbf16>
    tpu.vector_store %arg15[%c0_72, %c896], %84 {strides = array<i32>} : memref<256x1152xbf16, #tpu.memory_space<vmem>>, vector<256x128xbf16>,
    %c2_73 = arith.constant 2 : index
    %c2_74 = arith.constant 2 : index
    %c0_75 = arith.constant 0 : index
    %86 = vector.load %arg12[%c2_73, %c2_74, %c0_75] : memref<18x18x128xf32, #tpu.memory_space<vmem>>, vector<16x16x128xf32>
    %87 = vector.shape_cast %86 : vector<16x16x128xf32> to vector<256x128xf32>
    %88 = arith.truncf %87 : vector<256x128xf32> to vector<256x128xbf16>
    %c0_76 = arith.constant 0 : index
    %c1024 = arith.constant 1024 : index
    %89 = vector.load %arg15[%c0_76, %c1024] : memref<256x1152xbf16, #tpu.memory_space<vmem>>, vector<256x128xbf16>
    tpu.vector_store %arg15[%c0_76, %c1024], %88 {strides = array<i32>} : memref<256x1152xbf16, #tpu.memory_space<vmem>>, vector<256x128xbf16>,
    %c0_77 = arith.constant 0 : index
    %c0_78 = arith.constant 0 : index
    %90 = vector.load %arg15[%c0_77, %c0_78] : memref<256x1152xbf16, #tpu.memory_space<vmem>>, vector<256x1152xbf16>
    %c0_79 = arith.constant 0 : index
    %c0_80 = arith.constant 0 : index
    %91 = vector.load %arg2[%c0_79, %c0_80] : memref<1152x128xbf16, #tpu.memory_space<vmem>>, vector<1152x128xbf16>
    %cst_81 = arith.constant dense<0.000000e+00> : vector<256x128xf32>
    %92 = tpu.matmul %90, %91, %cst_81 {dimension_numbers = #tpu.dot_dimension_numbers<[1], [0], [0], [1], [0, 0, 1, 1], [], []>} : vector<256x1152xbf16>, vector<1152x128xbf16>, vector<256x128xf32> -> vector<256x128xf32>
    %c0_82 = arith.constant 0 : index
    %c0_83 = arith.constant 0 : index
    %93 = vector.load %arg3[%c0_82, %c0_83] : memref<1x128xf32, #tpu.memory_space<vmem>>, vector<1x128xf32>
    %94 = vector.broadcast %93 : vector<1x128xf32> to vector<256x128xf32>
    %95 = arith.addf %92, %94 : vector<256x128xf32>
    %96 = vector.shape_cast %95 : vector<256x128xf32> to vector<16x16x128xf32>
    %c0_84 = arith.constant 0 : index
    %c0_85 = arith.constant 0 : index
    %c0_86 = arith.constant 0 : index
    %97 = vector.load %arg14[%c0_84, %c0_85, %c0_86] : memref<16x16x128xf32, #tpu.memory_space<vmem>>, vector<16x16x128xf32>
    tpu.vector_store %arg14[%c0_84, %c0_85, %c0_86], %96 {strides = array<i32>} : memref<16x16x128xf32, #tpu.memory_space<vmem>>, vector<16x16x128xf32>,
    %c0_87 = arith.constant 0 : index
    %c0_88 = arith.constant 0 : index
    %c0_89 = arith.constant 0 : index
    %98 = tpu.strided_load %arg14[%c0_87, %c0_88, %c0_89] {strides = array<i32: 2, 2, 1>} : memref<16x16x128xf32, #tpu.memory_space<vmem>>, vector<8x8x128xf32>
    %c0_90 = arith.constant 0 : index
    %c1_91 = arith.constant 1 : index
    %c0_92 = arith.constant 0 : index
    %99 = tpu.strided_load %arg14[%c0_90, %c1_91, %c0_92] {strides = array<i32: 2, 2, 1>} : memref<16x16x128xf32, #tpu.memory_space<vmem>>, vector<8x8x128xf32>
    %c1_93 = arith.constant 1 : index
    %c0_94 = arith.constant 0 : index
    %c0_95 = arith.constant 0 : index
    %100 = tpu.strided_load %arg14[%c1_93, %c0_94, %c0_95] {strides = array<i32: 2, 2, 1>} : memref<16x16x128xf32, #tpu.memory_space<vmem>>, vector<8x8x128xf32>
    %c1_96 = arith.constant 1 : index
    %c1_97 = arith.constant 1 : index
    %c0_98 = arith.constant 0 : index
    %101 = tpu.strided_load %arg14[%c1_96, %c1_97, %c0_98] {strides = array<i32: 2, 2, 1>} : memref<16x16x128xf32, #tpu.memory_space<vmem>>, vector<8x8x128xf32>
    %102 = arith.addf %98, %99 : vector<8x8x128xf32>
    %103 = arith.addf %100, %101 : vector<8x8x128xf32>
    %104 = arith.addf %102, %103 : vector<8x8x128xf32>
    %cst_99 = arith.constant 2.500000e-01 : f32
    %105 = vector.broadcast %cst_99 : f32 to vector<8x8x128xf32>
    %106 = arith.mulf %104, %105 : vector<8x8x128xf32>
    %107 = vector.shape_cast %106 : vector<8x8x128xf32> to vector<64x128xf32>
    %c0_100 = arith.constant 0 : index
    %c0_101 = arith.constant 0 : index
    %108 = vector.load %arg9[%c0_100, %c0_101] : memref<1x128xf32, #tpu.memory_space<vmem>>, vector<1x128xf32>
    %c0_102 = arith.constant 0 : index
    %c0_103 = arith.constant 0 : index
    %109 = vector.load %arg10[%c0_102, %c0_103] : memref<1x128xf32, #tpu.memory_space<vmem>>, vector<1x128xf32>
    %cst_104 = arith.constant dense<0.000000e+00> : vector<128xf32>
    %110 = vector.multi_reduction <add>, %107, %cst_104 [0] : vector<64x128xf32> to vector<128xf32>
    %111 = vector.shape_cast %110 : vector<128xf32> to vector<1x128xf32>
    %cst_105 = arith.constant 6.400000e+01 : f32
    %112 = vector.broadcast %cst_105 : f32 to vector<1x128xf32>
    %113 = arith.divf %111, %112 : vector<1x128xf32>
    %114 = vector.broadcast %113 : vector<1x128xf32> to vector<64x128xf32>
    %115 = arith.subf %107, %114 : vector<64x128xf32>
    %116 = vector.broadcast %113 : vector<1x128xf32> to vector<64x128xf32>
    %117 = arith.subf %107, %116 : vector<64x128xf32>
    %118 = arith.mulf %115, %117 : vector<64x128xf32>
    %cst_106 = arith.constant dense<0.000000e+00> : vector<128xf32>
    %119 = vector.multi_reduction <add>, %118, %cst_106 [0] : vector<64x128xf32> to vector<128xf32>
    %120 = vector.shape_cast %119 : vector<128xf32> to vector<1x128xf32>
    %cst_107 = arith.constant 6.400000e+01 : f32
    %121 = vector.broadcast %cst_107 : f32 to vector<1x128xf32>
    %122 = arith.divf %120, %121 : vector<1x128xf32>
    %123 = vector.broadcast %113 : vector<1x128xf32> to vector<64x128xf32>
    %124 = arith.subf %107, %123 : vector<64x128xf32>
    %cst_108 = arith.constant 9.99999974E-6 : f32
    %125 = vector.broadcast %cst_108 : f32 to vector<1x128xf32>
    %126 = arith.addf %122, %125 : vector<1x128xf32>
    %127 = math.rsqrt %126 : vector<1x128xf32>
    %128 = vector.broadcast %127 : vector<1x128xf32> to vector<64x128xf32>
    %129 = arith.mulf %124, %128 : vector<64x128xf32>
    %130 = vector.broadcast %108 : vector<1x128xf32> to vector<64x128xf32>
    %131 = arith.mulf %129, %130 : vector<64x128xf32>
    %132 = vector.broadcast %109 : vector<1x128xf32> to vector<64x128xf32>
    %133 = arith.addf %131, %132 : vector<64x128xf32>
    %cst_109 = arith.constant 0.000000e+00 : f32
    %134 = vector.broadcast %cst_109 : f32 to vector<64x128xf32>
    %135 = arith.cmpf ogt, %133, %134 : vector<64x128xf32>
    %cst_110 = arith.constant 2.000000e-01 : f32
    %136 = vector.broadcast %cst_110 : f32 to vector<64x128xf32>
    %137 = arith.mulf %136, %133 : vector<64x128xf32>
    %138 = arith.select %135, %133, %137 : vector<64x128xi1>, vector<64x128xf32>
    %139 = vector.shape_cast %138 : vector<64x128xf32> to vector<8x8x128xf32>
    %c1_111 = arith.constant 1 : index
    %c1_112 = arith.constant 1 : index
    %c0_113 = arith.constant 0 : index
    %140 = vector.load %arg13[%c1_111, %c1_112, %c0_113] : memref<10x10x128xf32, #tpu.memory_space<vmem>>, vector<8x8x128xf32>
    tpu.vector_store %arg13[%c1_111, %c1_112, %c0_113], %139 {strides = array<i32>} : memref<10x10x128xf32, #tpu.memory_space<vmem>>, vector<8x8x128xf32>,
    %c0_114 = arith.constant 0 : index
    %c0_115 = arith.constant 0 : index
    %c0_116 = arith.constant 0 : index
    %141 = vector.load %arg13[%c0_114, %c0_115, %c0_116] : memref<10x10x128xf32, #tpu.memory_space<vmem>>, vector<8x8x128xf32>
    %142 = vector.shape_cast %141 : vector<8x8x128xf32> to vector<64x128xf32>
    %143 = arith.truncf %142 : vector<64x128xf32> to vector<64x128xbf16>
    %c0_117 = arith.constant 0 : index
    %c0_118 = arith.constant 0 : index
    %144 = vector.load %arg15[%c0_117, %c0_118] : memref<256x1152xbf16, #tpu.memory_space<vmem>>, vector<64x128xbf16>
    tpu.vector_store %arg15[%c0_117, %c0_118], %143 {strides = array<i32>} : memref<256x1152xbf16, #tpu.memory_space<vmem>>, vector<64x128xbf16>,
    %c0_119 = arith.constant 0 : index
    %c1_120 = arith.constant 1 : index
    %c0_121 = arith.constant 0 : index
    %145 = vector.load %arg13[%c0_119, %c1_120, %c0_121] : memref<10x10x128xf32, #tpu.memory_space<vmem>>, vector<8x8x128xf32>
    %146 = vector.shape_cast %145 : vector<8x8x128xf32> to vector<64x128xf32>
    %147 = arith.truncf %146 : vector<64x128xf32> to vector<64x128xbf16>
    %c0_122 = arith.constant 0 : index
    %c128_123 = arith.constant 128 : index
    %148 = vector.load %arg15[%c0_122, %c128_123] : memref<256x1152xbf16, #tpu.memory_space<vmem>>, vector<64x128xbf16>
    tpu.vector_store %arg15[%c0_122, %c128_123], %147 {strides = array<i32>} : memref<256x1152xbf16, #tpu.memory_space<vmem>>, vector<64x128xbf16>,
    %c0_124 = arith.constant 0 : index
    %c2_125 = arith.constant 2 : index
    %c0_126 = arith.constant 0 : index
    %149 = vector.load %arg13[%c0_124, %c2_125, %c0_126] : memref<10x10x128xf32, #tpu.memory_space<vmem>>, vector<8x8x128xf32>
    %150 = vector.shape_cast %149 : vector<8x8x128xf32> to vector<64x128xf32>
    %151 = arith.truncf %150 : vector<64x128xf32> to vector<64x128xbf16>
    %c0_127 = arith.constant 0 : index
    %c256_128 = arith.constant 256 : index
    %152 = vector.load %arg15[%c0_127, %c256_128] : memref<256x1152xbf16, #tpu.memory_space<vmem>>, vector<64x128xbf16>
    tpu.vector_store %arg15[%c0_127, %c256_128], %151 {strides = array<i32>} : memref<256x1152xbf16, #tpu.memory_space<vmem>>, vector<64x128xbf16>,
    %c1_129 = arith.constant 1 : index
    %c0_130 = arith.constant 0 : index
    %c0_131 = arith.constant 0 : index
    %153 = vector.load %arg13[%c1_129, %c0_130, %c0_131] : memref<10x10x128xf32, #tpu.memory_space<vmem>>, vector<8x8x128xf32>
    %154 = vector.shape_cast %153 : vector<8x8x128xf32> to vector<64x128xf32>
    %155 = arith.truncf %154 : vector<64x128xf32> to vector<64x128xbf16>
    %c0_132 = arith.constant 0 : index
    %c384_133 = arith.constant 384 : index
    %156 = vector.load %arg15[%c0_132, %c384_133] : memref<256x1152xbf16, #tpu.memory_space<vmem>>, vector<64x128xbf16>
    tpu.vector_store %arg15[%c0_132, %c384_133], %155 {strides = array<i32>} : memref<256x1152xbf16, #tpu.memory_space<vmem>>, vector<64x128xbf16>,
    %c1_134 = arith.constant 1 : index
    %c1_135 = arith.constant 1 : index
    %c0_136 = arith.constant 0 : index
    %157 = vector.load %arg13[%c1_134, %c1_135, %c0_136] : memref<10x10x128xf32, #tpu.memory_space<vmem>>, vector<8x8x128xf32>
    %158 = vector.shape_cast %157 : vector<8x8x128xf32> to vector<64x128xf32>
    %159 = arith.truncf %158 : vector<64x128xf32> to vector<64x128xbf16>
    %c0_137 = arith.constant 0 : index
    %c512_138 = arith.constant 512 : index
    %160 = vector.load %arg15[%c0_137, %c512_138] : memref<256x1152xbf16, #tpu.memory_space<vmem>>, vector<64x128xbf16>
    tpu.vector_store %arg15[%c0_137, %c512_138], %159 {strides = array<i32>} : memref<256x1152xbf16, #tpu.memory_space<vmem>>, vector<64x128xbf16>,
    %c1_139 = arith.constant 1 : index
    %c2_140 = arith.constant 2 : index
    %c0_141 = arith.constant 0 : index
    %161 = vector.load %arg13[%c1_139, %c2_140, %c0_141] : memref<10x10x128xf32, #tpu.memory_space<vmem>>, vector<8x8x128xf32>
    %162 = vector.shape_cast %161 : vector<8x8x128xf32> to vector<64x128xf32>
    %163 = arith.truncf %162 : vector<64x128xf32> to vector<64x128xbf16>
    %c0_142 = arith.constant 0 : index
    %c640_143 = arith.constant 640 : index
    %164 = vector.load %arg15[%c0_142, %c640_143] : memref<256x1152xbf16, #tpu.memory_space<vmem>>, vector<64x128xbf16>
    tpu.vector_store %arg15[%c0_142, %c640_143], %163 {strides = array<i32>} : memref<256x1152xbf16, #tpu.memory_space<vmem>>, vector<64x128xbf16>,
    %c2_144 = arith.constant 2 : index
    %c0_145 = arith.constant 0 : index
    %c0_146 = arith.constant 0 : index
    %165 = vector.load %arg13[%c2_144, %c0_145, %c0_146] : memref<10x10x128xf32, #tpu.memory_space<vmem>>, vector<8x8x128xf32>
    %166 = vector.shape_cast %165 : vector<8x8x128xf32> to vector<64x128xf32>
    %167 = arith.truncf %166 : vector<64x128xf32> to vector<64x128xbf16>
    %c0_147 = arith.constant 0 : index
    %c768_148 = arith.constant 768 : index
    %168 = vector.load %arg15[%c0_147, %c768_148] : memref<256x1152xbf16, #tpu.memory_space<vmem>>, vector<64x128xbf16>
    tpu.vector_store %arg15[%c0_147, %c768_148], %167 {strides = array<i32>} : memref<256x1152xbf16, #tpu.memory_space<vmem>>, vector<64x128xbf16>,
    %c2_149 = arith.constant 2 : index
    %c1_150 = arith.constant 1 : index
    %c0_151 = arith.constant 0 : index
    %169 = vector.load %arg13[%c2_149, %c1_150, %c0_151] : memref<10x10x128xf32, #tpu.memory_space<vmem>>, vector<8x8x128xf32>
    %170 = vector.shape_cast %169 : vector<8x8x128xf32> to vector<64x128xf32>
    %171 = arith.truncf %170 : vector<64x128xf32> to vector<64x128xbf16>
    %c0_152 = arith.constant 0 : index
    %c896_153 = arith.constant 896 : index
    %172 = vector.load %arg15[%c0_152, %c896_153] : memref<256x1152xbf16, #tpu.memory_space<vmem>>, vector<64x128xbf16>
    tpu.vector_store %arg15[%c0_152, %c896_153], %171 {strides = array<i32>} : memref<256x1152xbf16, #tpu.memory_space<vmem>>, vector<64x128xbf16>,
    %c2_154 = arith.constant 2 : index
    %c2_155 = arith.constant 2 : index
    %c0_156 = arith.constant 0 : index
    %173 = vector.load %arg13[%c2_154, %c2_155, %c0_156] : memref<10x10x128xf32, #tpu.memory_space<vmem>>, vector<8x8x128xf32>
    %174 = vector.shape_cast %173 : vector<8x8x128xf32> to vector<64x128xf32>
    %175 = arith.truncf %174 : vector<64x128xf32> to vector<64x128xbf16>
    %c0_157 = arith.constant 0 : index
    %c1024_158 = arith.constant 1024 : index
    %176 = vector.load %arg15[%c0_157, %c1024_158] : memref<256x1152xbf16, #tpu.memory_space<vmem>>, vector<64x128xbf16>
    tpu.vector_store %arg15[%c0_157, %c1024_158], %175 {strides = array<i32>} : memref<256x1152xbf16, #tpu.memory_space<vmem>>, vector<64x128xbf16>,
    %c0_159 = arith.constant 0 : index
    %c0_160 = arith.constant 0 : index
    %177 = vector.load %arg15[%c0_159, %c0_160] : memref<256x1152xbf16, #tpu.memory_space<vmem>>, vector<64x1152xbf16>
    %c0_161 = arith.constant 0 : index
    %c0_162 = arith.constant 0 : index
    %178 = vector.load %arg4[%c0_161, %c0_162] : memref<1152x128xbf16, #tpu.memory_space<vmem>>, vector<1152x128xbf16>
    %cst_163 = arith.constant dense<0.000000e+00> : vector<64x128xf32>
    %179 = tpu.matmul %177, %178, %cst_163 {dimension_numbers = #tpu.dot_dimension_numbers<[1], [0], [0], [1], [0, 0, 1, 1], [], []>} : vector<64x1152xbf16>, vector<1152x128xbf16>, vector<64x128xf32> -> vector<64x128xf32>
    %c0_164 = arith.constant 0 : index
    %c0_165 = arith.constant 0 : index
    %180 = vector.load %arg5[%c0_164, %c0_165] : memref<1x128xf32, #tpu.memory_space<vmem>>, vector<1x128xf32>
    %181 = vector.broadcast %180 : vector<1x128xf32> to vector<64x128xf32>
    %182 = arith.addf %179, %181 : vector<64x128xf32>
    %183 = arith.addf %20, %182 : vector<64x128xf32>
    %cst_166 = arith.constant 0.707106769 : f32
    %184 = vector.broadcast %cst_166 : f32 to vector<64x128xf32>
    %185 = arith.mulf %183, %184 : vector<64x128xf32>
    %c0_167 = arith.constant 0 : index
    %c0_168 = arith.constant 0 : index
    %c0_169 = arith.constant 0 : index
    %186 = vector.load %arg11[%c0_167, %c0_168, %c0_169] : memref<1x64x128xf32, #tpu.memory_space<vmem>>, vector<1x64x128xf32>
    %187 = vector.shape_cast %186 : vector<1x64x128xf32> to vector<64x128xf32>
    %188 = vector.shape_cast %185 : vector<64x128xf32> to vector<1x64x128xf32>
    tpu.vector_store %arg11[%c0_167, %c0_168, %c0_169], %188 {strides = array<i32>} : memref<1x64x128xf32, #tpu.memory_space<vmem>>, vector<1x64x128xf32>,
    return
  }
  func.func @transform_0(%arg0: i32) -> (i32, i32, i32) {
    %c0_i32 = arith.constant 0 : i32
    %c0_i32_0 = arith.constant 0 : i32
    %c0_i32_1 = arith.constant 0 : i32
    return %arg0, %c0_i32, %c0_i32_0 : i32, i32, i32
  }
  func.func @transform_1(%arg0: i32) -> (i32, i32) {
    %c0_i32 = arith.constant 0 : i32
    %c0_i32_0 = arith.constant 0 : i32
    %c0_i32_1 = arith.constant 0 : i32
    return %c0_i32, %c0_i32_0 : i32, i32
  }
  func.func @transform_2(%arg0: i32) -> (i32, i32) {
    %c0_i32 = arith.constant 0 : i32
    %c0_i32_0 = arith.constant 0 : i32
    %c0_i32_1 = arith.constant 0 : i32
    return %c0_i32, %c0_i32_0 : i32, i32
  }
  func.func @transform_3(%arg0: i32) -> (i32, i32) {
    %c0_i32 = arith.constant 0 : i32
    %c0_i32_0 = arith.constant 0 : i32
    %c0_i32_1 = arith.constant 0 : i32
    return %c0_i32, %c0_i32_0 : i32, i32
  }
  func.func @transform_4(%arg0: i32) -> (i32, i32) {
    %c0_i32 = arith.constant 0 : i32
    %c0_i32_0 = arith.constant 0 : i32
    %c0_i32_1 = arith.constant 0 : i32
    return %c0_i32, %c0_i32_0 : i32, i32
  }
  func.func @transform_5(%arg0: i32) -> (i32, i32) {
    %c0_i32 = arith.constant 0 : i32
    %c0_i32_0 = arith.constant 0 : i32
    %c0_i32_1 = arith.constant 0 : i32
    return %c0_i32, %c0_i32_0 : i32, i32
  }
  func.func @transform_6(%arg0: i32) -> (i32, i32) {
    %c0_i32 = arith.constant 0 : i32
    %c0_i32_0 = arith.constant 0 : i32
    %c0_i32_1 = arith.constant 0 : i32
    return %c0_i32, %c0_i32_0 : i32, i32
  }
  func.func @transform_7(%arg0: i32) -> (i32, i32) {
    %c0_i32 = arith.constant 0 : i32
    %c0_i32_0 = arith.constant 0 : i32
    %c0_i32_1 = arith.constant 0 : i32
    return %c0_i32, %c0_i32_0 : i32, i32
  }
  func.func @transform_8(%arg0: i32) -> (i32, i32) {
    %c0_i32 = arith.constant 0 : i32
    %c0_i32_0 = arith.constant 0 : i32
    %c0_i32_1 = arith.constant 0 : i32
    return %c0_i32, %c0_i32_0 : i32, i32
  }
  func.func @transform_9(%arg0: i32) -> (i32, i32) {
    %c0_i32 = arith.constant 0 : i32
    %c0_i32_0 = arith.constant 0 : i32
    %c0_i32_1 = arith.constant 0 : i32
    return %c0_i32, %c0_i32_0 : i32, i32
  }
  func.func @transform_10(%arg0: i32) -> (i32, i32, i32) {
    %c0_i32 = arith.constant 0 : i32
    %c0_i32_0 = arith.constant 0 : i32
    %c0_i32_1 = arith.constant 0 : i32
    return %arg0, %c0_i32, %c0_i32_0 : i32, i32, i32
  }
}

</mosaic_0001>

<llo_original>
// kernel: resblk_forward.1
$region0: #{resblk_forward.1}
  #allocation0 [shape = 'u32[]', space=smem, size = 0x4, offset = 0x4, fixed_abs, tag = 'smem constant byte address 0x4 - core index']
  #allocation1 [shape = 'u32[144,128]{1,0:T(1,128)}', space=vmem, size = 0x12000, scoped, tag = 'internal scratch']
  #allocation2 [shape = 'f32[18,18,128]{2,1,0:T(8,128)}', space=vmem, size = 0x36000, scoped, tag = 'scratch operand']
  #allocation3 [shape = 'f32[10,10,128]{2,1,0:T(8,128)}', space=vmem, size = 0x14000, scoped, tag = 'scratch operand']
  #allocation4 [shape = 'f32[16,16,128]{2,1,0:T(8,128)}', space=vmem, size = 0x20000, scoped, tag = 'scratch operand']
  #allocation5 [shape = 'bf16[256,1152]{1,0:T(16,128)(2,1)}', space=vmem, size = 0x90000, scoped, tag = 'scratch operand']
  %s0 = inlined_call_operand.vmem [shape: f32[2,256,128], index: 0, kind: input, shape index: {}]
  %s1 = inlined_call_operand.vmem [shape: bf16[1152,128], index: 1, kind: input, shape index: {}]
  %s2 = inlined_call_operand.vmem [shape: f32[1,128], index: 2, kind: input, shape index: {}]
  %s3 = inlined_call_operand.vmem [shape: bf16[1152,128], index: 3, kind: input, shape index: {}]
  %s4 = inlined_call_operand.vmem [shape: f32[1,128], index: 4, kind: input, shape index: {}]
  %s5 = inlined_call_operand.vmem [shape: bf16[128,128], index: 5, kind: input, shape index: {}]
  %s6 = inlined_call_operand.vmem [shape: f32[1,128], index: 6, kind: input, shape index: {}]
  %s7 = inlined_call_operand.vmem [shape: f32[1,128], index: 7, kind: input, shape index: {}]
  %s8 = inlined_call_operand.vmem [shape: f32[1,128], index: 8, kind: input, shape index: {}]
  %s9 = inlined_call_operand.vmem [shape: f32[1,128], index: 9, kind: input, shape index: {}]
  %s10 = inlined_call_operand.vmem [shape: f32[2,64,128], index: 10, kind: output, shape index: {}]
  %s11 = sld [smem:[#allocation0]]
  $region73: #{resblk_forward.1} parent=0
    _
  %s13 = ssub.s32 1, %s11
  %s14 = scalar_select 0, %s13, %s11
  loop: start=0, step=1, limit=4
  $region2: #{resblk_forward.1} parent=0 // loop_pre_header
    _
  $region3: #{resblk_forward.1} parent=0 // loop_header
    %s16 = sphi 0, %s20
    %p17 = scmp.ge.s32.totalorder %s16, 4
    %s26 = sphi 0, %s28
    %s29 = sphi 0, %s26
    %s30 = sphi 0, %s29
    %s46 = sphi 0, %s30
    %s50 = sphi 0, %s50
    %s52 = sphi 0, %s50
    %s53 = sphi 0, %s52
    %s67 = sphi 0, %s53
    %s71 = sphi 0, %s71
    %s73 = sphi 0, %s71
    %s74 = sphi 0, %s73
    %s88 = sphi 0, %s74
    %s92 = sphi 0, %s92
    %s94 = sphi 0, %s92
    %s95 = sphi 0, %s94
    %s109 = sphi 0, %s95
    %s113 = sphi 0, %s113
    %s115 = sphi 0, %s113
    %s116 = sphi 0, %s115
    %s130 = sphi 0, %s116
    %s134 = sphi 0, %s134
    %s136 = sphi 0, %s134
    %s137 = sphi 0, %s136
    %s151 = sphi 0, %s137
    %s155 = sphi 0, %s155
    %s157 = sphi 0, %s155
    %s158 = sphi 0, %s157
    %s172 = sphi 0, %s158
    %s176 = sphi 0, %s176
    %s178 = sphi 0, %s176
    %s179 = sphi 0, %s178
    %s193 = sphi 0, %s179
    %s197 = sphi 0, %s197
    %s199 = sphi 0, %s197
    %s200 = sphi 0, %s199
    %s214 = sphi 0, %s200
    %s218 = sphi 0, %s218
    %s220 = sphi 0, %s218
    %s221 = sphi 0, %s220
    %s235 = sphi 0, %s221
    %s241 = sphi 0, %s243
    %s244 = sphi 0, %s241
    %s245 = sphi 0, %s244
    %s261 = sphi 0, %s245
  $region4: #{resblk_forward.1} parent=0 // loop_header_branch
    %19 = sbr.rel (%p17) target = $region8
  $region5: #{resblk_forward.1} parent=0 // loop_body
    %s21 = ssub.s32 %s16, 1
    %s22 = ssub.s32 %s16, 2
    %s23 = sadd.s32 %s16, 1
    %s24 = ssub.s32 %s16, %s23
    %p25 = scmp.eq.s32.totalorder %s24, 0
    %s27 = sadd.s32 %s26, 1
    %s28 = scalar_select %p25, %s26, %s27
    %p31 = pneg %p25
    %p32 = scmp.eq.s32.totalorder %s16, 1
    %p33 = por %p31, %p32
    %p34 = scmp.ne.s32.totalorder %s26, %s29
    %p35 = scmp.eq.s32.totalorder %s16, 0
    %p36 = por %p34, %p35
    %p37 = scmp.ne.s32.totalorder %s26, %s29
    %p38 = scmp.eq.s32.totalorder %s21, 1
    %p39 = por %p37, %p38
    %p40 = scmp.ne.s32.totalorder %s29, %s30
    %p41 = scmp.eq.s32.totalorder %s21, 0
    %p42 = por %p40, %p41
    %p43 = scmp.ne.s32.totalorder %s29, %s30
    %p44 = scmp.eq.s32.totalorder %s22, 1
    %p45 = por %p43, %p44
    %p47 = scmp.ne.s32.totalorder %s30, %s46
    %p48 = scmp.eq.s32.totalorder %s22, 0
    %p49 = por %p47, %p48
    %s51 = sadd.s32 %s50, 1
    %p54 = scmp.eq.s32.totalorder %s16, 1
    %p55 = scmp.ne.s32.totalorder %s50, %s52
    %p56 = scmp.eq.s32.totalorder %s16, 0
    %p57 = por %p55, %p56
    %p58 = scmp.ne.s32.totalorder %s50, %s52
    %p59 = scmp.eq.s32.totalorder %s21, 1
    %p60 = por %p58, %p59
    %p61 = scmp.ne.s32.totalorder %s52, %s53
    %p62 = scmp.eq.s32.totalorder %s21, 0
    %p63 = por %p61, %p62
    %p64 = scmp.ne.s32.totalorder %s52, %s53
    %p65 = scmp.eq.s32.totalorder %s22, 1
    %p66 = por %p64, %p65
    %p68 = scmp.ne.s32.totalorder %s53, %s67
    %p69 = scmp.eq.s32.totalorder %s22, 0
    %p70 = por %p68, %p69
    %s72 = sadd.s32 %s71, 1
    %p75 = scmp.eq.s32.totalorder %s16, 1
    %p76 = scmp.ne.s32.totalorder %s71, %s73
    %p77 = scmp.eq.s32.totalorder %s16, 0
    %p78 = por %p76, %p77
    %p79 = scmp.ne.s32.totalorder %s71, %s73
    %p80 = scmp.eq.s32.totalorder %s21, 1
    %p81 = por %p79, %p80
    %p82 = scmp.ne.s32.totalorder %s73, %s74
    %p83 = scmp.eq.s32.totalorder %s21, 0
    %p84 = por %p82, %p83
    %p85 = scmp.ne.s32.totalorder %s73, %s74
    %p86 = scmp.eq.s32.totalorder %s22, 1
    %p87 = por %p85, %p86
    %p89 = scmp.ne.s32.totalorder %s74, %s88
    %p90 = scmp.eq.s32.totalorder %s22, 0
    %p91 = por %p89, %p90
    %s93 = sadd.s32 %s92, 1
    %p96 = scmp.eq.s32.totalorder %s16, 1
    %p97 = scmp.ne.s32.totalorder %s92, %s94
    %p98 = scmp.eq.s32.totalorder %s16, 0
    %p99 = por %p97, %p98
    %p100 = scmp.ne.s32.totalorder %s92, %s94
    %p101 = scmp.eq.s32.totalorder %s21, 1
    %p102 = por %p100, %p101
    %p103 = scmp.ne.s32.totalorder %s94, %s95
    %p104 = scmp.eq.s32.totalorder %s21, 0
    %p105 = por %p103, %p104
    %p106 = scmp.ne.s32.totalorder %s94, %s95
    %p107 = scmp.eq.s32.totalorder %s22, 1
    %p108 = por %p106, %p107
    %p110 = scmp.ne.s32.totalorder %s95, %s109
    %p111 = scmp.eq.s32.totalorder %s22, 0
    %p112 = por %p110, %p111
    %s114 = sadd.s32 %s113, 1
    %p117 = scmp.eq.s32.totalorder %s16, 1
    %p118 = scmp.ne.s32.totalorder %s113, %s115
    %p119 = scmp.eq.s32.totalorder %s16, 0
    %p120 = por %p118, %p119
    %p121 = scmp.ne.s32.totalorder %s113, %s115
    %p122 = scmp.eq.s32.totalorder %s21, 1
    %p123 = por %p121, %p122
    %p124 = scmp.ne.s32.totalorder %s115, %s116
    %p125 = scmp.eq.s32.totalorder %s21, 0
    %p126 = por %p124, %p125
    %p127 = scmp.ne.s32.totalorder %s115, %s116
    %p128 = scmp.eq.s32.totalorder %s22, 1
    %p129 = por %p127, %p128
    %p131 = scmp.ne.s32.totalorder %s116, %s130
    %p132 = scmp.eq.s32.totalorder %s22, 0
    %p133 = por %p131, %p132
    %s135 = sadd.s32 %s134, 1
    %p138 = scmp.eq.s32.totalorder %s16, 1
    %p139 = scmp.ne.s32.totalorder %s134, %s136
    %p140 = scmp.eq.s32.totalorder %s16, 0
    %p141 = por %p139, %p140
    %p142 = scmp.ne.s32.totalorder %s134, %s136
    %p143 = scmp.eq.s32.totalorder %s21, 1
    %p144 = por %p142, %p143
    %p145 = scmp.ne.s32.totalorder %s136, %s137
    %p146 = scmp.eq.s32.totalorder %s21, 0
    %p147 = por %p145, %p146
    %p148 = scmp.ne.s32.totalorder %s136, %s137
    %p149 = scmp.eq.s32.totalorder %s22, 1
    %p150 = por %p148, %p149
    %p152 = scmp.ne.s32.totalorder %s137, %s151
    %p153 = scmp.eq.s32.totalorder %s22, 0
    %p154 = por %p152, %p153
    %s156 = sadd.s32 %s155, 1
    %p159 = scmp.eq.s32.totalorder %s16, 1
    %p160 = scmp.ne.s32.totalorder %s155, %s157
    %p161 = scmp.eq.s32.totalorder %s16, 0
    %p162 = por %p160, %p161
    %p163 = scmp.ne.s32.totalorder %s155, %s157
    %p164 = scmp.eq.s32.totalorder %s21, 1
    %p165 = por %p163, %p164
    %p166 = scmp.ne.s32.totalorder %s157, %s158
    %p167 = scmp.eq.s32.totalorder %s21, 0
    %p168 = por %p166, %p167
    %p169 = scmp.ne.s32.totalorder %s157, %s158
    %p170 = scmp.eq.s32.totalorder %s22, 1
    %p171 = por %p169, %p170
    %p173 = scmp.ne.s32.totalorder %s158, %s172
    %p174 = scmp.eq.s32.totalorder %s22, 0
    %p175 = por %p173, %p174
    %s177 = sadd.s32 %s176, 1
    %p180 = scmp.eq.s32.totalorder %s16, 1
    %p181 = scmp.ne.s32.totalorder %s176, %s178
    %p182 = scmp.eq.s32.totalorder %s16, 0
    %p183 = por %p181, %p182
    %p184 = scmp.ne.s32.totalorder %s176, %s178
    %p185 = scmp.eq.s32.totalorder %s21, 1
    %p186 = por %p184, %p185
    %p187 = scmp.ne.s32.totalorder %s178, %s179
    %p188 = scmp.eq.s32.totalorder %s21, 0
    %p189 = por %p187, %p188
    %p190 = scmp.ne.s32.totalorder %s178, %s179
    %p191 = scmp.eq.s32.totalorder %s22, 1
    %p192 = por %p190, %p191
    %p194 = scmp.ne.s32.totalorder %s179, %s193
    %p195 = scmp.eq.s32.totalorder %s22, 0
    %p196 = por %p194, %p195
    %s198 = sadd.s32 %s197, 1
    %p201 = scmp.eq.s32.totalorder %s16, 1
    %p202 = scmp.ne.s32.totalorder %s197, %s199
    %p203 = scmp.eq.s32.totalorder %s16, 0
    %p204 = por %p202, %p203
    %p205 = scmp.ne.s32.totalorder %s197, %s199
    %p206 = scmp.eq.s32.totalorder %s21, 1
    %p207 = por %p205, %p206
    %p208 = scmp.ne.s32.totalorder %s199, %s200
    %p209 = scmp.eq.s32.totalorder %s21, 0
    %p210 = por %p208, %p209
    %p211 = scmp.ne.s32.totalorder %s199, %s200
    %p212 = scmp.eq.s32.totalorder %s22, 1
    %p213 = por %p211, %p212
    %p215 = scmp.ne.s32.totalorder %s200, %s214
    %p216 = scmp.eq.s32.totalorder %s22, 0
    %p217 = por %p215, %p216
    %s219 = sadd.s32 %s218, 1
    %p222 = scmp.eq.s32.totalorder %s16, 1
    %p223 = scmp.ne.s32.totalorder %s218, %s220
    %p224 = scmp.eq.s32.totalorder %s16, 0
    %p225 = por %p223, %p224
    %p226 = scmp.ne.s32.totalorder %s218, %s220
    %p227 = scmp.eq.s32.totalorder %s21, 1
    %p228 = por %p226, %p227
    %p229 = scmp.ne.s32.totalorder %s220, %s221
    %p230 = scmp.eq.s32.totalorder %s21, 0
    %p231 = por %p229, %p230
    %p232 = scmp.ne.s32.totalorder %s220, %s221
    %p233 = scmp.eq.s32.totalorder %s22, 1
    %p234 = por %p232, %p233
    %p236 = scmp.ne.s32.totalorder %s221, %s235
    %p237 = scmp.eq.s32.totalorder %s22, 0
    %p238 = por %p236, %p237
    %s239 = ssub.s32 %s16, %s23
    %p240 = scmp.eq.s32.totalorder %s239, 0
    %s242 = sadd.s32 %s241, 1
    %s243 = scalar_select %p240, %s241, %s242
    %p246 = pneg %p240
    %p247 = scmp.eq.s32.totalorder %s16, 1
    %p248 = por %p246, %p247
    %p249 = scmp.ne.s32.totalorder %s241, %s244
    %p250 = scmp.eq.s32.totalorder %s16, 0
    %p251 = por %p249, %p250
    %p252 = scmp.ne.s32.totalorder %s241, %s244
    %p253 = scmp.eq.s32.totalorder %s21, 1
    %p254 = por %p252, %p253
    %p255 = scmp.ne.s32.totalorder %s244, %s245
    %p256 = scmp.eq.s32.totalorder %s21, 0
    %p257 = por %p255, %p256
    %p258 = scmp.ne.s32.totalorder %s244, %s245
    %p259 = scmp.eq.s32.totalorder %s22, 1
    %p260 = por %p258, %p259
    %p262 = scmp.ne.s32.totalorder %s245, %s261
    %p263 = scmp.eq.s32.totalorder %s22, 0
    %p264 = por %p262, %p263
    %p265 = scmp.le.s32.totalorder 1, %s16
    %p266 = scmp.lt.s32.totalorder %s16, 3
    %p267 = pnand %p265, %p266
    %p268 = pneg %p267
    // Predicated region
    $region9: #{resblk_forward.1} parent=5 // pred_check
      _
    $region10: #{resblk_forward.1} parent=5 // pred_check_branch
      %270 = sbr.rel (%p267) target = $region12
    $region11: #{resblk_forward.1} parent=5 // pred_region
      %s271 = ssub.s32 %s16, 1
      // Predicated region
      $region13: #{resblk_forward.1} parent=11 // pred_check
        %p272 = pneg %p63
      $region14: #{resblk_forward.1} parent=11 // pred_check_branch
        %274 = sbr.rel (%p272) target = $region16
      $region15: #{resblk_forward.1} parent=11 // pred_region
        _
      $region16: #{resblk_forward.1} parent=11 // pred_fallthru
        _
      // Predicated region
      $region17: #{resblk_forward.1} parent=11 // pred_check
        %p275 = pneg %p84
      $region18: #{resblk_forward.1} parent=11 // pred_check_branch
        %277 = sbr.rel (%p275) target = $region20
      $region19: #{resblk_forward.1} parent=11 // pred_region
        _
      $region20: #{resblk_forward.1} parent=11 // pred_fallthru
        _
      // Predicated region
      $region21: #{resblk_forward.1} parent=11 // pred_check
        %p278 = pneg %p105
      $region22: #{resblk_forward.1} parent=11 // pred_check_branch
        %280 = sbr.rel (%p278) target = $region24
      $region23: #{resblk_forward.1} parent=11 // pred_region
        _
      $region24: #{resblk_forward.1} parent=11 // pred_fallthru
        _
      // Predicated region
      $region25: #{resblk_forward.1} parent=11 // pred_check
        %p281 = pneg %p126
      $region26: #{resblk_forward.1} parent=11 // pred_check_branch
        %283 = sbr.rel (%p281) target = $region28
      $region27: #{resblk_forward.1} parent=11 // pred_region
        _
      $region28: #{resblk_forward.1} parent=11 // pred_fallthru
        _
      // Predicated region
      $region29: #{resblk_forward.1} parent=11 // pred_check
        %p284 = pneg %p147
      $region30: #{resblk_forward.1} parent=11 // pred_check_branch
        %286 = sbr.rel (%p284) target = $region32
      $region31: #{resblk_forward.1} parent=11 // pred_region
        _
      $region32: #{resblk_forward.1} parent=11 // pred_fallthru
        _
      // Predicated region
      $region33: #{resblk_forward.1} parent=11 // pred_check
        %p287 = pneg %p168
      $region34: #{resblk_forward.1} parent=11 // pred_check_branch
        %289 = sbr.rel (%p287) target = $region36
      $region35: #{resblk_forward.1} parent=11 // pred_region
        _
      $region36: #{resblk_forward.1} parent=11 // pred_fallthru
        _
      // Predicated region
      $region37: #{resblk_forward.1} parent=11 // pred_check
        %p290 = pneg %p189
      $region38: #{resblk_forward.1} parent=11 // pred_check_branch
        %292 = sbr.rel (%p290) target = $region40
      $region39: #{resblk_forward.1} parent=11 // pred_region
        _
      $region40: #{resblk_forward.1} parent=11 // pred_fallthru
        _
      // Predicated region
      $region41: #{resblk_forward.1} parent=11 // pred_check
        %p293 = pneg %p210
      $region42: #{resblk_forward.1} parent=11 // pred_check_branch
        %295 = sbr.rel (%p293) target = $region44
      $region43: #{resblk_forward.1} parent=11 // pred_region
        _
      $region44: #{resblk_forward.1} parent=11 // pred_fallthru
        _
      // Predicated region
      $region45: #{resblk_forward.1} parent=11 // pred_check
        %p296 = pneg %p231
      $region46: #{resblk_forward.1} parent=11 // pred_check_branch
        %298 = sbr.rel (%p296) target = $region48
      $region47: #{resblk_forward.1} parent=11 // pred_region
        _
      $region48: #{resblk_forward.1} parent=11 // pred_fallthru
        _
    $region12: #{resblk_forward.1} parent=5 // pred_fallthru
      _
    %p299 = scmp.lt.s32.totalorder %s16, 2
    // Predicated region
    $region49: #{resblk_forward.1} parent=5 // pred_check
      %p300 = pneg %p299
    $region50: #{resblk_forward.1} parent=5 // pred_check_branch
      %302 = sbr.rel (%p300) target = $region52
    $region51: #{resblk_forward.1} parent=5 // pred_region
      // Predicated region
      $region53: #{resblk_forward.1} parent=51 // pred_check
        %p303 = pneg %p36
      $region54: #{resblk_forward.1} parent=51 // pred_check_branch
        %305 = sbr.rel (%p303) target = $region56
      $region55: #{resblk_forward.1} parent=51 // pred_region
        %p306 = scmp.lt.s32.totalorder %s16, 1
        %s307 = scalar_select %p306, %s16, 1
        %s308 = smul.addr %s307, 32
        %s309 = smul.addr %s308, 8
        %s310 = scalar_lea.vmem %s0, %s309
      $region56: #{resblk_forward.1} parent=51 // pred_fallthru
        _
    $region52: #{resblk_forward.1} parent=5 // pred_fallthru
      _
    %p311 = scmp.le.s32.totalorder 1, %s16
    %p312 = scmp.lt.s32.totalorder %s16, 3
    %p313 = pnand %p311, %p312
    %p314 = pneg %p313
    // Predicated region
    $region57: #{resblk_forward.1} parent=5 // pred_check
      _
    $region58: #{resblk_forward.1} parent=5 // pred_check_branch
      %316 = sbr.rel (%p313) target = $region60
    $region59: #{resblk_forward.1} parent=5 // pred_region
      %s317 = ssub.s32 %s16, 1
      %p318 = scmp.lt.s32.totalorder %s21, 1
      %s319 = scalar_select %p318, %s21, 1
      %s320 = smul.addr %s319, 32
      %s321 = smul.addr %s320, 8
      %s322 = scalar_lea.vmem %s0, %s321
      %p323 = pneg %p42
      %p324 = pneg %p39
      %p325 = pneg %p63
      %p326 = pneg %p60
      %p327 = pneg %p84
      %p328 = pneg %p81
      %p329 = pneg %p105
      %p330 = pneg %p102
      %p331 = pneg %p126
      %p332 = pneg %p123
      %p333 = pneg %p147
      %p334 = pneg %p144
      %p335 = pneg %p168
      %p336 = pneg %p165
      %p337 = pneg %p189
      %p338 = pneg %p186
      %p339 = pneg %p210
      %p340 = pneg %p207
      %p341 = pneg %p231
      %p342 = pneg %p228
      %p343 = pneg %p257
      %p344 = pneg %p254
      %p345 = scmp.lt.s32.totalorder %s21, 1
      %s346 = scalar_select %p345, %s21, 1
      %s347 = smul.addr %s346, 8
      %s348 = smul.addr %s347, 8
      %s349 = scalar_lea.vmem %s10, %s348
      %p350 = scmp.lt.s32.totalorder %s21, 1
      %s351 = scalar_select %p350, %s21, 1
      %s352 = smul.addr %s351, 32
      %s353 = smul.addr %s352, 8
      %s354 = scalar_lea.vmem %s0, %s353
      %p355 = scmp.lt.s32.totalorder %s21, 1
      %s356 = scalar_select %p355, %s21, 1
      %s357 = smul.addr %s356, 8
      %s358 = smul.addr %s357, 8
      %s359 = scalar_lea.vmem %s10, %s358
      %361 = vst [vmem:[#allocation2] sm:$0xff] 0.0
      %362 = vst [vmem:[#allocation2 + $0x8] sm:$0xff] 0.0
      %363 = vst [vmem:[#allocation2 + $0x10] sm:$0x3] 0.0
      %364 = vst [vmem:[#allocation2 + $0x18] sm:$0xff] 0.0
      %365 = vst [vmem:[#allocation2 + $0x20] sm:$0xff] 0.0
      %366 = vst [vmem:[#allocation2 + $0x28] sm:$0x3] 0.0
      %367 = vst [vmem:[#allocation2 + $0x30] sm:$0xff] 0.0
      %368 = vst [vmem:[#allocation2 + $0x38] sm:$0xff] 0.0
      %369 = vst [vmem:[#allocation2 + $0x40] sm:$0x3] 0.0
      %370 = vst [vmem:[#allocation2 + $0x48] sm:$0xff] 0.0
      %371 = vst [vmem:[#allocation2 + $0x50] sm:$0xff] 0.0
      %372 = vst [vmem:[#allocation2 + $0x58] sm:$0x3] 0.0
      %373 = vst [vmem:[#allocation2 + $0x60] sm:$0xff] 0.0
      %374 = vst [vmem:[#allocation2 + $0x68] sm:$0xff] 0.0
      %375 = vst [vmem:[#allocation2 + $0x70] sm:$0x3] 0.0
      %376 = vst [vmem:[#allocation2 + $0x78] sm:$0xff] 0.0
      %377 = vst [vmem:[#allocation2 + $0x80] sm:$0xff] 0.0
      %378 = vst [vmem:[#allocation2 + $0x88] sm:$0x3] 0.0
      %379 = vst [vmem:[#allocation2 + $0x90] sm:$0xff] 0.0
      %380 = vst [vmem:[#allocation2 + $0x98] sm:$0xff] 0.0
      %381 = vst [vmem:[#allocation2 + $0xa0] sm:$0x3] 0.0
      %382 = vst [vmem:[#allocation2 + $0xa8] sm:$0xff] 0.0
      %383 = vst [vmem:[#allocation2 + $0xb0] sm:$0xff] 0.0
      %384 = vst [vmem:[#allocation2 + $0xb8] sm:$0x3] 0.0
      %385 = vst [vmem:[#allocation2 + $0xc0] sm:$0xff] 0.0
      %386 = vst [vmem:[#allocation2 + $0xc8] sm:$0xff] 0.0
      %387 = vst [vmem:[#allocation2 + $0xd0] sm:$0x3] 0.0
      %388 = vst [vmem:[#allocation2 + $0xd8] sm:$0xff] 0.0
      %389 = vst [vmem:[#allocation2 + $0xe0] sm:$0xff] 0.0
      %390 = vst [vmem:[#allocation2 + $0xe8] sm:$0x3] 0.0
      %391 = vst [vmem:[#allocation2 + $0xf0] sm:$0xff] 0.0
      %392 = vst [vmem:[#allocation2 + $0xf8] sm:$0xff] 0.0
      %393 = vst [vmem:[#allocation2 + $0x100] sm:$0x3] 0.0
      %394 = vst [vmem:[#allocation2 + $0x108] sm:$0xff] 0.0
      %395 = vst [vmem:[#allocation2 + $0x110] sm:$0xff] 0.0
      %396 = vst [vmem:[#allocation2 + $0x118] sm:$0x3] 0.0
      %397 = vst [vmem:[#allocation2 + $0x120] sm:$0xff] 0.0
      %398 = vst [vmem:[#allocation2 + $0x128] sm:$0xff] 0.0
      %399 = vst [vmem:[#allocation2 + $0x130] sm:$0x3] 0.0
      %400 = vst [vmem:[#allocation2 + $0x138] sm:$0xff] 0.0
      %401 = vst [vmem:[#allocation2 + $0x140] sm:$0xff] 0.0
      %402 = vst [vmem:[#allocation2 + $0x148] sm:$0x3] 0.0
      %403 = vst [vmem:[#allocation2 + $0x150] sm:$0xff] 0.0
      %404 = vst [vmem:[#allocation2 + $0x158] sm:$0xff] 0.0
      %405 = vst [vmem:[#allocation2 + $0x160] sm:$0x3] 0.0
      %406 = vst [vmem:[#allocation2 + $0x168] sm:$0xff] 0.0
      %407 = vst [vmem:[#allocation2 + $0x170] sm:$0xff] 0.0
      %408 = vst [vmem:[#allocation2 + $0x178] sm:$0x3] 0.0
      %409 = vst [vmem:[#allocation2 + $0x180] sm:$0xff] 0.0
      %410 = vst [vmem:[#allocation2 + $0x188] sm:$0xff] 0.0
      %411 = vst [vmem:[#allocation2 + $0x190] sm:$0x3] 0.0
      %412 = vst [vmem:[#allocation2 + $0x198] sm:$0xff] 0.0
      %413 = vst [vmem:[#allocation2 + $0x1a0] sm:$0xff] 0.0
      %414 = vst [vmem:[#allocation2 + $0x1a8] sm:$0x3] 0.0
      %415 = vst [vmem:[#allocation3] sm:$0xff] 0.0
      %416 = vst [vmem:[#allocation3 + $0x8] sm:$0x3] 0.0
      %417 = vst [vmem:[#allocation3 + $0x10] sm:$0xff] 0.0
      %418 = vst [vmem:[#allocation3 + $0x18] sm:$0x3] 0.0
      %419 = vst [vmem:[#allocation3 + $0x20] sm:$0xff] 0.0
      %420 = vst [vmem:[#allocation3 + $0x28] sm:$0x3] 0.0
      %421 = vst [vmem:[#allocation3 + $0x30] sm:$0xff] 0.0
      %422 = vst [vmem:[#allocation3 + $0x38] sm:$0x3] 0.0
      %423 = vst [vmem:[#allocation3 + $0x40] sm:$0xff] 0.0
      %424 = vst [vmem:[#allocation3 + $0x48] sm:$0x3] 0.0
      %425 = vst [vmem:[#allocation3 + $0x50] sm:$0xff] 0.0
      %426 = vst [vmem:[#allocation3 + $0x58] sm:$0x3] 0.0
      %427 = vst [vmem:[#allocation3 + $0x60] sm:$0xff] 0.0
      %428 = vst [vmem:[#allocation3 + $0x68] sm:$0x3] 0.0
      %429 = vst [vmem:[#allocation3 + $0x70] sm:$0xff] 0.0
      %430 = vst [vmem:[#allocation3 + $0x78] sm:$0x3] 0.0
      %431 = vst [vmem:[#allocation3 + $0x80] sm:$0xff] 0.0
      %432 = vst [vmem:[#allocation3 + $0x88] sm:$0x3] 0.0
      %433 = vst [vmem:[#allocation3 + $0x90] sm:$0xff] 0.0
      %434 = vst [vmem:[#allocation3 + $0x98] sm:$0x3] 0.0
      %v435 = vld [vmem:[%s354] sm:$0xff]
      %v436 = vld [vmem:[%s354 + $0x8] sm:$0xff]
      %v437 = vld [vmem:[%s354 + $0x10] sm:$0xff]
      %v438 = vld [vmem:[%s354 + $0x18] sm:$0xff]
      %v439 = vld [vmem:[%s354 + $0x20] sm:$0xff]
      %v440 = vld [vmem:[%s354 + $0x28] sm:$0xff]
      %v441 = vld [vmem:[%s354 + $0x30] sm:$0xff]
      %v442 = vld [vmem:[%s354 + $0x38] sm:$0xff]
      %v443 = vld [vmem:[%s354 + $0x40] sm:$0xff]
      %v444 = vld [vmem:[%s354 + $0x48] sm:$0xff]
      %v445 = vld [vmem:[%s354 + $0x50] sm:$0xff]
      %v446 = vld [vmem:[%s354 + $0x58] sm:$0xff]
      %v447 = vld [vmem:[%s354 + $0x60] sm:$0xff]
      %v448 = vld [vmem:[%s354 + $0x68] sm:$0xff]
      %v449 = vld [vmem:[%s354 + $0x70] sm:$0xff]
      %v450 = vld [vmem:[%s354 + $0x78] sm:$0xff]
      %v451 = vld [vmem:[%s354 + $0x80] sm:$0xff]
      %v452 = vld [vmem:[%s354 + $0x88] sm:$0xff]
      %v453 = vld [vmem:[%s354 + $0x90] sm:$0xff]
      %v454 = vld [vmem:[%s354 + $0x98] sm:$0xff]
      %v455 = vld [vmem:[%s354 + $0xa0] sm:$0xff]
      %v456 = vld [vmem:[%s354 + $0xa8] sm:$0xff]
      %v457 = vld [vmem:[%s354 + $0xb0] sm:$0xff]
      %v458 = vld [vmem:[%s354 + $0xb8] sm:$0xff]
      %v459 = vld [vmem:[%s354 + $0xc0] sm:$0xff]
      %v460 = vld [vmem:[%s354 + $0xc8] sm:$0xff]
      %v461 = vld [vmem:[%s354 + $0xd0] sm:$0xff]
      %v462 = vld [vmem:[%s354 + $0xd8] sm:$0xff]
      %v463 = vld [vmem:[%s354 + $0xe0] sm:$0xff]
      %v464 = vld [vmem:[%s354 + $0xe8] sm:$0xff]
      %v465 = vld [vmem:[%s354 + $0xf0] sm:$0xff]
      %v466 = vld [vmem:[%s354 + $0xf8] sm:$0xff]
      %v467 = vpack.c.bf16 %v436, %v435
      %v468 = vpack.c.bf16 %v438, %v437
      %v469 = vpack.c.bf16 %v440, %v439
      %v470 = vpack.c.bf16 %v442, %v441
      %v471 = vpack.c.bf16 %v444, %v443
      %v472 = vpack.c.bf16 %v446, %v445
      %v473 = vpack.c.bf16 %v448, %v447
      %v474 = vpack.c.bf16 %v450, %v449
      %v475 = vpack.c.bf16 %v452, %v451
      %v476 = vpack.c.bf16 %v454, %v453
      %v477 = vpack.c.bf16 %v456, %v455
      %v478 = vpack.c.bf16 %v458, %v457
      %v479 = vpack.c.bf16 %v460, %v459
      %v480 = vpack.c.bf16 %v462, %v461
      %v481 = vpack.c.bf16 %v464, %v463
      %v482 = vpack.c.bf16 %v466, %v465
      %v483 = vld [vmem:[%s5] sm:$0xf]
      %v484 = vld [vmem:[%s5 + $0x4] sm:$0xf]
      %v485 = vld [vmem:[%s5 + $0x8] sm:$0xf]
      %v486 = vld [vmem:[%s5 + $0xc] sm:$0xf]
      %v487 = vld [vmem:[%s5 + $0x10] sm:$0xf]
      %v488 = vld [vmem:[%s5 + $0x14] sm:$0xf]
      %v489 = vld [vmem:[%s5 + $0x18] sm:$0xf]
      %v490 = vld [vmem:[%s5 + $0x1c] sm:$0xf]
      %v491 = vld [vmem:[%s5 + $0x20] sm:$0xf]
      %v492 = vld [vmem:[%s5 + $0x24] sm:$0xf]
      %v493 = vld [vmem:[%s5 + $0x28] sm:$0xf]
      %v494 = vld [vmem:[%s5 + $0x2c] sm:$0xf]
      %v495 = vld [vmem:[%s5 + $0x30] sm:$0xf]
      %v496 = vld [vmem:[%s5 + $0x34] sm:$0xf]
      %v497 = vld [vmem:[%s5 + $0x38] sm:$0xf]
      %v498 = vld [vmem:[%s5 + $0x3c] sm:$0xf]
      %v515 = vunpack.c.l.b16 %v483
      %v516 = vunpack.c.l.b16 %v484
      %v517 = vunpack.c.l.b16 %v485
      %v518 = vunpack.c.l.b16 %v486
      %v519 = vunpack.c.l.b16 %v487
      %v520 = vunpack.c.l.b16 %v488
      %v521 = vunpack.c.l.b16 %v489
      %v522 = vunpack.c.l.b16 %v490
      %v523 = vunpack.c.l.b16 %v491
      %v524 = vunpack.c.l.b16 %v492
      %v525 = vunpack.c.l.b16 %v493
      %v526 = vunpack.c.l.b16 %v494
      %v527 = vunpack.c.l.b16 %v495
      %v528 = vunpack.c.l.b16 %v496
      %v529 = vunpack.c.l.b16 %v497
      %v530 = vunpack.c.l.b16 %v498
      %v531 = vpack.c.b16 %v516, %v515
      %v532 = vpack.c.b16 %v518, %v517
      %v533 = vpack.c.b16 %v520, %v519
      %v534 = vpack.c.b16 %v522, %v521
      %v535 = vpack.c.b16 %v524, %v523
      %v536 = vpack.c.b16 %v526, %v525
      %v537 = vpack.c.b16 %v528, %v527
      %v538 = vpack.c.b16 %v530, %v529
      %547 = vmatprep.subr.bf16.mxu0 0
      %548 = vmatpush1.bf16.msra.mxu0 %v531
      %549 = vmatprep.subr.bf16.mxu0 0
      %550 = vmatpush1.bf16.msra.mxu0 %v532
      %551 = vmatprep.subr.bf16.mxu0 0
      %552 = vmatpush1.bf16.msra.mxu0 %v533
      %553 = vmatprep.subr.bf16.mxu0 0
      %554 = vmatpush1.bf16.msra.mxu0 %v534
      %555 = vmatprep.subr.bf16.mxu0 0
      %556 = vmatpush1.bf16.msra.mxu0 %v535
      %557 = vmatprep.subr.bf16.mxu0 0
      %558 = vmatpush1.bf16.msra.mxu0 %v536
      %559 = vmatprep.subr.bf16.mxu0 0
      %560 = vmatpush1.bf16.msra.mxu0 %v537
      %561 = vmatprep.subr.bf16.mxu0 0
      %562 = vmatpush1.bf16.msra.mxu0 %v538
      %563 = vmatprep.subr.bf16.mxu0 0
      %564 = vmatpush1.bf16.msra.mxu0 0
      %565 = vmatprep.subr.bf16.mxu0 0
      %566 = vmatpush1.bf16.msra.mxu0 0
      %567 = vmatprep.subr.bf16.mxu0 0
      %568 = vmatpush1.bf16.msra.mxu0 0
      %569 = vmatprep.subr.bf16.mxu0 0
      %570 = vmatpush1.bf16.msra.mxu0 0
      %571 = vmatprep.subr.bf16.mxu0 0
      %572 = vmatpush1.bf16.msra.mxu0 0
      %573 = vmatprep.subr.bf16.mxu0 0
      %574 = vmatpush1.bf16.msra.mxu0 0
      %575 = vmatprep.subr.bf16.mxu0 0
      %576 = vmatpush1.bf16.msra.mxu0 0
      %577 = vmatprep.subr.bf16.mxu0 0
      %578 = vmatpush1.bf16.msra.mxu0 0
      %579 = vmatprep.mubr.bf16.mxu0 0
      %580 = vmatmul.mubr.bf16.gmra.mrb[0].mxu0 %v467
      %v581 = vpop.f32.mrb[0].mxu0
      %v582 = vadd.f32 0.0, %v581
      %v583 = vpop.f32.mrb[0].mxu0
      %v584 = vpop.f32.mrb[0].mxu0
      %v585 = vadd.f32 0.0, %v584
      %v586 = vpop.f32.mrb[0].mxu0
      %587 = vmatprep.mubr.bf16.mxu0 0
      %588 = vmatmul.mubr.bf16.gmra.mrb[0].mxu0 %v468
      %v589 = vpop.f32.mrb[0].mxu0
      %v590 = vadd.f32 0.0, %v589
      %v591 = vpop.f32.mrb[0].mxu0
      %v592 = vpop.f32.mrb[0].mxu0
      %v593 = vadd.f32 0.0, %v592
      %v594 = vpop.f32.mrb[0].mxu0
      %595 = vmatprep.mubr.bf16.mxu0 0
      %596 = vmatmul.mubr.bf16.gmra.mrb[0].mxu0 %v469
      %v597 = vpop.f32.mrb[0].mxu0
      %v598 = vadd.f32 0.0, %v597
      %v599 = vpop.f32.mrb[0].mxu0
      %v600 = vpop.f32.mrb[0].mxu0
      %v601 = vadd.f32 0.0, %v600
      %v602 = vpop.f32.mrb[0].mxu0
      %603 = vmatprep.mubr.bf16.mxu0 0
      %604 = vmatmul.mubr.bf16.gmra.mrb[0].mxu0 %v470
      %v605 = vpop.f32.mrb[0].mxu0
      %v606 = vadd.f32 0.0, %v605
      %v607 = vpop.f32.mrb[0].mxu0
      %v608 = vpop.f32.mrb[0].mxu0
      %v609 = vadd.f32 0.0, %v608
      %v610 = vpop.f32.mrb[0].mxu0
      %611 = vmatprep.mubr.bf16.mxu0 0
      %612 = vmatmul.mubr.bf16.gmra.mrb[0].mxu0 %v471
      %v613 = vpop.f32.mrb[0].mxu0
      %v614 = vadd.f32 0.0, %v613
      %v615 = vpop.f32.mrb[0].mxu0
      %v616 = vpop.f32.mrb[0].mxu0
      %v617 = vadd.f32 0.0, %v616
      %v618 = vpop.f32.mrb[0].mxu0
      %619 = vmatprep.mubr.bf16.mxu0 0
      %620 = vmatmul.mubr.bf16.gmra.mrb[0].mxu0 %v472
      %v621 = vpop.f32.mrb[0].mxu0
      %v622 = vadd.f32 0.0, %v621
      %v623 = vpop.f32.mrb[0].mxu0
      %v624 = vpop.f32.mrb[0].mxu0
      %v625 = vadd.f32 0.0, %v624
      %v626 = vpop.f32.mrb[0].mxu0
      %627 = vmatprep.mubr.bf16.mxu0 0
      %628 = vmatmul.mubr.bf16.gmra.mrb[0].mxu0 %v473
      %v629 = vpop.f32.mrb[0].mxu0
      %v630 = vadd.f32 0.0, %v629
      %v631 = vpop.f32.mrb[0].mxu0
      %v632 = vpop.f32.mrb[0].mxu0
      %v633 = vadd.f32 0.0, %v632
      %v634 = vpop.f32.mrb[0].mxu0
      %635 = vmatprep.mubr.bf16.mxu0 0
      %636 = vmatmul.mubr.bf16.gmra.mrb[0].mxu0 %v474
      %v637 = vpop.f32.mrb[0].mxu0
      %v638 = vadd.f32 0.0, %v637
      %v639 = vpop.f32.mrb[0].mxu0
      %v640 = vpop.f32.mrb[0].mxu0
      %v641 = vadd.f32 0.0, %v640
      %v642 = vpop.f32.mrb[0].mxu0
      %643 = vmatprep.mubr.bf16.mxu0 0
      %644 = vmatmul.mubr.bf16.gmra.mrb[0].mxu0 %v475
      %v645 = vpop.f32.mrb[0].mxu0
      %v646 = vadd.f32 0.0, %v645
      %v647 = vpop.f32.mrb[0].mxu0
      %v648 = vpop.f32.mrb[0].mxu0
      %v649 = vadd.f32 0.0, %v648
      %v650 = vpop.f32.mrb[0].mxu0
      %651 = vmatprep.mubr.bf16.mxu0 0
      %652 = vmatmul.mubr.bf16.gmra.mrb[0].mxu0 %v476
      %v653 = vpop.f32.mrb[0].mxu0
      %v654 = vadd.f32 0.0, %v653
      %v655 = vpop.f32.mrb[0].mxu0
      %v656 = vpop.f32.mrb[0].mxu0
      %v657 = vadd.f32 0.0, %v656
      %v658 = vpop.f32.mrb[0].mxu0
      %659 = vmatprep.mubr.bf16.mxu0 0
      %660 = vmatmul.mubr.bf16.gmra.mrb[0].mxu0 %v477
      %v661 = vpop.f32.mrb[0].mxu0
      %v662 = vadd.f32 0.0, %v661
      %v663 = vpop.f32.mrb[0].mxu0
      %v664 = vpop.f32.mrb[0].mxu0
      %v665 = vadd.f32 0.0, %v664
      %v666 = vpop.f32.mrb[0].mxu0
      %667 = vmatprep.mubr.bf16.mxu0 0
      %668 = vmatmul.mubr.bf16.gmra.mrb[0].mxu0 %v478
      %v669 = vpop.f32.mrb[0].mxu0
      %v670 = vadd.f32 0.0, %v669
      %v671 = vpop.f32.mrb[0].mxu0
      %v672 = vpop.f32.mrb[0].mxu0
      %v673 = vadd.f32 0.0, %v672
      %v674 = vpop.f32.mrb[0].mxu0
      %675 = vmatprep.mubr.bf16.mxu0 0
      %676 = vmatmul.mubr.bf16.gmra.mrb[0].mxu0 %v479
      %v677 = vpop.f32.mrb[0].mxu0
      %v678 = vadd.f32 0.0, %v677
      %v679 = vpop.f32.mrb[0].mxu0
      %v680 = vpop.f32.mrb[0].mxu0
      %v681 = vadd.f32 0.0, %v680
      %v682 = vpop.f32.mrb[0].mxu0
      %683 = vmatprep.mubr.bf16.mxu0 0
      %684 = vmatmul.mubr.bf16.gmra.mrb[0].mxu0 %v480
      %v685 = vpop.f32.mrb[0].mxu0
      %v686 = vadd.f32 0.0, %v685
      %v687 = vpop.f32.mrb[0].mxu0
      %v688 = vpop.f32.mrb[0].mxu0
      %v689 = vadd.f32 0.0, %v688
      %v690 = vpop.f32.mrb[0].mxu0
      %691 = vmatprep.mubr.bf16.mxu0 0
      %692 = vmatmul.mubr.bf16.gmra.mrb[0].mxu0 %v481
      %v693 = vpop.f32.mrb[0].mxu0
      %v694 = vadd.f32 0.0, %v693
      %v695 = vpop.f32.mrb[0].mxu0
      %v696 = vpop.f32.mrb[0].mxu0
      %v697 = vadd.f32 0.0, %v696
      %v698 = vpop.f32.mrb[0].mxu0
      %699 = vmatprep.mubr.bf16.mxu0 0
      %700 = vmatmul.mubr.bf16.gmra.mrb[0].mxu0 %v482
      %v701 = vpop.f32.mrb[0].mxu0
      %v702 = vadd.f32 0.0, %v701
      %v703 = vpop.f32.mrb[0].mxu0
      %v704 = vpop.f32.mrb[0].mxu0
      %v705 = vadd.f32 0.0, %v704
      %v706 = vpop.f32.mrb[0].mxu0
      %707 = vdwg.mxu0
      %708 = vst [vmem:[#allocation4] sm:$0xff] %v582
      %709 = vst [vmem:[#allocation4 + $0x8] sm:$0xff] %v585
      %710 = vst [vmem:[#allocation4 + $0x10] sm:$0xff] %v590
      %711 = vst [vmem:[#allocation4 + $0x18] sm:$0xff] %v593
      %712 = vst [vmem:[#allocation4 + $0x20] sm:$0xff] %v598
      %713 = vst [vmem:[#allocation4 + $0x28] sm:$0xff] %v601
      %714 = vst [vmem:[#allocation4 + $0x30] sm:$0xff] %v606
      %715 = vst [vmem:[#allocation4 + $0x38] sm:$0xff] %v609
      %716 = vst [vmem:[#allocation4 + $0x40] sm:$0xff] %v614
      %717 = vst [vmem:[#allocation4 + $0x48] sm:$0xff] %v617
      %718 = vst [vmem:[#allocation4 + $0x50] sm:$0xff] %v622
      %719 = vst [vmem:[#allocation4 + $0x58] sm:$0xff] %v625
      %720 = vst [vmem:[#allocation4 + $0x60] sm:$0xff] %v630
      %721 = vst [vmem:[#allocation4 + $0x68] sm:$0xff] %v633
      %722 = vst [vmem:[#allocation4 + $0x70] sm:$0xff] %v638
      %723 = vst [vmem:[#allocation4 + $0x78] sm:$0xff] %v641
      %724 = vst [vmem:[#allocation4 + $0x80] sm:$0xff] %v646
      %725 = vst [vmem:[#allocation4 + $0x88] sm:$0xff] %v649
      %726 = vst [vmem:[#allocation4 + $0x90] sm:$0xff] %v654
      %727 = vst [vmem:[#allocation4 + $0x98] sm:$0xff] %v657
      %728 = vst [vmem:[#allocation4 + $0xa0] sm:$0xff] %v662
      %729 = vst [vmem:[#allocation4 + $0xa8] sm:$0xff] %v665
      %730 = vst [vmem:[#allocation4 + $0xb0] sm:$0xff] %v670
      %731 = vst [vmem:[#allocation4 + $0xb8] sm:$0xff] %v673
      %732 = vst [vmem:[#allocation4 + $0xc0] sm:$0xff] %v678
      %733 = vst [vmem:[#allocation4 + $0xc8] sm:$0xff] %v681
      %734 = vst [vmem:[#allocation4 + $0xd0] sm:$0xff] %v686
      %735 = vst [vmem:[#allocation4 + $0xd8] sm:$0xff] %v689
      %736 = vst [vmem:[#allocation4 + $0xe0] sm:$0xff] %v694
      %737 = vst [vmem:[#allocation4 + $0xe8] sm:$0xff] %v697
      %738 = vst [vmem:[#allocation4 + $0xf0] sm:$0xff] %v702
      %739 = vst [vmem:[#allocation4 + $0xf8] sm:$0xff] %v705
      %v740 = vld [vmem:[#allocation4] ss:$2 sm:$0xff]
      %s741 = scalar_lea.vmem [#allocation4], 32
      %v742 = vld [vmem:[%s741] ss:$2 sm:$0xff]
      %s743 = scalar_lea.vmem [#allocation4], 64
      %v744 = vld [vmem:[%s743] ss:$2 sm:$0xff]
      %s745 = scalar_lea.vmem [#allocation4], 96
      %v746 = vld [vmem:[%s745] ss:$2 sm:$0xff]
      %s747 = scalar_lea.vmem [#allocation4], 128
      %v748 = vld [vmem:[%s747] ss:$2 sm:$0xff]
      %s749 = scalar_lea.vmem [#allocation4], 160
      %v750 = vld [vmem:[%s749] ss:$2 sm:$0xff]
      %s751 = scalar_lea.vmem [#allocation4], 192
      %v752 = vld [vmem:[%s751] ss:$2 sm:$0xff]
      %s753 = scalar_lea.vmem [#allocation4], 224
      %v754 = vld [vmem:[%s753] ss:$2 sm:$0xff]
      %s755 = scalar_lea.vmem [#allocation4], 1
      %v756 = vld [vmem:[%s755] ss:$2 sm:$0xff]
      %s757 = scalar_lea.vmem [#allocation4], 33
      %v758 = vld [vmem:[%s757] ss:$2 sm:$0xff]
      %s759 = scalar_lea.vmem [#allocation4], 65
      %v760 = vld [vmem:[%s759] ss:$2 sm:$0xff]
      %s761 = scalar_lea.vmem [#allocation4], 97
      %v762 = vld [vmem:[%s761] ss:$2 sm:$0xff]
      %s763 = scalar_lea.vmem [#allocation4], 129
      %v764 = vld [vmem:[%s763] ss:$2 sm:$0xff]
      %s765 = scalar_lea.vmem [#allocation4], 161
      %v766 = vld [vmem:[%s765] ss:$2 sm:$0xff]
      %s767 = scalar_lea.vmem [#allocation4], 193
      %v768 = vld [vmem:[%s767] ss:$2 sm:$0xff]
      %s769 = scalar_lea.vmem [#allocation4], 225
      %v770 = vld [vmem:[%s769] ss:$2 sm:$0xff]
      %s771 = scalar_lea.vmem [#allocation4], 16
      %v772 = vld [vmem:[%s771] ss:$2 sm:$0xff]
      %s773 = scalar_lea.vmem %s771, 32 [#allocation4]
      %v774 = vld [vmem:[%s773] ss:$2 sm:$0xff]
      %s775 = scalar_lea.vmem %s771, 64 [#allocation4]
      %v776 = vld [vmem:[%s775] ss:$2 sm:$0xff]
      %s777 = scalar_lea.vmem %s771, 96 [#allocation4]
      %v778 = vld [vmem:[%s777] ss:$2 sm:$0xff]
      %s779 = scalar_lea.vmem %s771, 128 [#allocation4]
      %v780 = vld [vmem:[%s779] ss:$2 sm:$0xff]
      %s781 = scalar_lea.vmem %s771, 160 [#allocation4]
      %v782 = vld [vmem:[%s781] ss:$2 sm:$0xff]
      %s783 = scalar_lea.vmem %s771, 192 [#allocation4]
      %v784 = vld [vmem:[%s783] ss:$2 sm:$0xff]
      %s785 = scalar_lea.vmem %s771, 224 [#allocation4]
      %v786 = vld [vmem:[%s785] ss:$2 sm:$0xff]
      %s787 = scalar_lea.vmem %s771, 1 [#allocation4]
      %v788 = vld [vmem:[%s787] ss:$2 sm:$0xff]
      %s789 = scalar_lea.vmem %s771, 33 [#allocation4]
      %v790 = vld [vmem:[%s789] ss:$2 sm:$0xff]
      %s791 = scalar_lea.vmem %s771, 65 [#allocation4]
      %v792 = vld [vmem:[%s791] ss:$2 sm:$0xff]
      %s793 = scalar_lea.vmem %s771, 97 [#allocation4]
      %v794 = vld [vmem:[%s793] ss:$2 sm:$0xff]
      %s795 = scalar_lea.vmem %s771, 129 [#allocation4]
      %v796 = vld [vmem:[%s795] ss:$2 sm:$0xff]
      %s797 = scalar_lea.vmem %s771, 161 [#allocation4]
      %v798 = vld [vmem:[%s797] ss:$2 sm:$0xff]
      %s799 = scalar_lea.vmem %s771, 193 [#allocation4]
      %v800 = vld [vmem:[%s799] ss:$2 sm:$0xff]
      %s801 = scalar_lea.vmem %s771, 225 [#allocation4]
      %v802 = vld [vmem:[%s801] ss:$2 sm:$0xff]
      %v803 = vadd.f32 %v740, %v756
      %v804 = vadd.f32 %v742, %v758
      %v805 = vadd.f32 %v744, %v760
      %v806 = vadd.f32 %v746, %v762
      %v807 = vadd.f32 %v748, %v764
      %v808 = vadd.f32 %v750, %v766
      %v809 = vadd.f32 %v752, %v768
      %v810 = vadd.f32 %v754, %v770
      %v811 = vadd.f32 %v772, %v788
      %v812 = vadd.f32 %v774, %v790
      %v813 = vadd.f32 %v776, %v792
      %v814 = vadd.f32 %v778, %v794
      %v815 = vadd.f32 %v780, %v796
      %v816 = vadd.f32 %v782, %v798
      %v817 = vadd.f32 %v784, %v800
      %v818 = vadd.f32 %v786, %v802
      %v819 = vadd.f32 %v803, %v811
      %v820 = vadd.f32 %v804, %v812
      %v821 = vadd.f32 %v805, %v813
      %v822 = vadd.f32 %v806, %v814
      %v823 = vadd.f32 %v807, %v815
      %v824 = vadd.f32 %v808, %v816
      %v825 = vadd.f32 %v809, %v817
      %v826 = vadd.f32 %v810, %v818
      %v827 = vmul.f32 %v819, 0.25
      %v828 = vmul.f32 %v820, 0.25
      %v829 = vmul.f32 %v821, 0.25
      %v830 = vmul.f32 %v822, 0.25
      %v831 = vmul.f32 %v823, 0.25
      %v832 = vmul.f32 %v824, 0.25
      %v833 = vmul.f32 %v825, 0.25
      %v834 = vmul.f32 %v826, 0.25
      %v835 = vld [vmem:[%s6] sm:$0x1]
      %v836 = vld [vmem:[%s7] sm:$0x1]
      %v837 = vadd.f32 %v435, %v436
      %v838 = vadd.f32 %v837, %v437
      %v839 = vadd.f32 %v838, %v438
      %v840 = vadd.f32 %v839, %v439
      %v841 = vadd.f32 %v840, %v440
      %v842 = vadd.f32 %v841, %v441
      %v843 = vadd.f32 %v842, %v442
      %v844 = vadd.f32 %v843, %v443
      %v845 = vadd.f32 %v844, %v444
      %v846 = vadd.f32 %v845, %v445
      %v847 = vadd.f32 %v846, %v446
      %v848 = vadd.f32 %v847, %v447
      %v849 = vadd.f32 %v848, %v448
      %v850 = vadd.f32 %v849, %v449
      %v851 = vadd.f32 %v850, %v450
      %v852 = vadd.f32 %v851, %v451
      %v853 = vadd.f32 %v852, %v452
      %v854 = vadd.f32 %v853, %v453
      %v855 = vadd.f32 %v854, %v454
      %v856 = vadd.f32 %v855, %v455
      %v857 = vadd.f32 %v856, %v456
      %v858 = vadd.f32 %v857, %v457
      %v859 = vadd.f32 %v858, %v458
      %v860 = vadd.f32 %v859, %v459
      %v861 = vadd.f32 %v860, %v460
      %v862 = vadd.f32 %v861, %v461
      %v863 = vadd.f32 %v862, %v462
      %v864 = vadd.f32 %v863, %v463
      %v865 = vadd.f32 %v864, %v464
      %v866 = vadd.f32 %v865, %v465
      %v867 = vadd.f32 %v866, %v466
      %v868 = vrot.slane %v867, 4
      %v869 = vadd.f32 %v867, %v868
      %v870 = vrot.slane %v869, 2
      %v871 = vadd.f32 %v869, %v870
      %v872 = vrot.slane %v871, 1
      %v873 = vadd.f32 %v871, %v872
      %v874 = vrcp.pop 256.0
      %v875 = vmul.f32 %v873, %v874
      %v876 = vsub.f32 %v435, %v875
      %v877 = vsub.f32 %v436, %v875
      %v878 = vsub.f32 %v437, %v875
      %v879 = vsub.f32 %v438, %v875
      %v880 = vsub.f32 %v439, %v875
      %v881 = vsub.f32 %v440, %v875
      %v882 = vsub.f32 %v441, %v875
      %v883 = vsub.f32 %v442, %v875
      %v884 = vsub.f32 %v443, %v875
      %v885 = vsub.f32 %v444, %v875
      %v886 = vsub.f32 %v445, %v875
      %v887 = vsub.f32 %v446, %v875
      %v888 = vsub.f32 %v447, %v875
      %v889 = vsub.f32 %v448, %v875
      %v890 = vsub.f32 %v449, %v875
      %v891 = vsub.f32 %v450, %v875
      %v892 = vsub.f32 %v451, %v875
      %v893 = vsub.f32 %v452, %v875
      %v894 = vsub.f32 %v453, %v875
      %v895 = vsub.f32 %v454, %v875
      %v896 = vsub.f32 %v455, %v875
      %v897 = vsub.f32 %v456, %v875
      %v898 = vsub.f32 %v457, %v875
      %v899 = vsub.f32 %v458, %v875
      %v900 = vsub.f32 %v459, %v875
      %v901 = vsub.f32 %v460, %v875
      %v902 = vsub.f32 %v461, %v875
      %v903 = vsub.f32 %v462, %v875
      %v904 = vsub.f32 %v463, %v875
      %v905 = vsub.f32 %v464, %v875
      %v906 = vsub.f32 %v465, %v875
      %v907 = vsub.f32 %v466, %v875
      %v908 = vmul.f32 %v876, %v876
      %v909 = vmul.f32 %v877, %v877
      %v910 = vmul.f32 %v878, %v878
      %v911 = vmul.f32 %v879, %v879
      %v912 = vmul.f32 %v880, %v880
      %v913 = vmul.f32 %v881, %v881
      %v914 = vmul.f32 %v882, %v882
      %v915 = vmul.f32 %v883, %v883
      %v916 = vmul.f32 %v884, %v884
      %v917 = vmul.f32 %v885, %v885
      %v918 = vmul.f32 %v886, %v886
      %v919 = vmul.f32 %v887, %v887
      %v920 = vmul.f32 %v888, %v888
      %v921 = vmul.f32 %v889, %v889
      %v922 = vmul.f32 %v890, %v890
      %v923 = vmul.f32 %v891, %v891
      %v924 = vmul.f32 %v892, %v892
      %v925 = vmul.f32 %v893, %v893
      %v926 = vmul.f32 %v894, %v894
      %v927 = vmul.f32 %v895, %v895
      %v928 = vmul.f32 %v896, %v896
      %v929 = vmul.f32 %v897, %v897
      %v930 = vmul.f32 %v898, %v898
      %v931 = vmul.f32 %v899, %v899
      %v932 = vmul.f32 %v900, %v900
      %v933 = vmul.f32 %v901, %v901
      %v934 = vmul.f32 %v902, %v902
      %v935 = vmul.f32 %v903, %v903
      %v936 = vmul.f32 %v904, %v904
      %v937 = vmul.f32 %v905, %v905
      %v938 = vmul.f32 %v906, %v906
      %v939 = vmul.f32 %v907, %v907
      %v940 = vadd.f32 %v908, %v909
      %v941 = vadd.f32 %v940, %v910
      %v942 = vadd.f32 %v941, %v911
      %v943 = vadd.f32 %v942, %v912
      %v944 = vadd.f32 %v943, %v913
      %v945 = vadd.f32 %v944, %v914
      %v946 = vadd.f32 %v945, %v915
      %v947 = vadd.f32 %v946, %v916
      %v948 = vadd.f32 %v947, %v917
      %v949 = vadd.f32 %v948, %v918
      %v950 = vadd.f32 %v949, %v919
      %v951 = vadd.f32 %v950, %v920
      %v952 = vadd.f32 %v951, %v921
      %v953 = vadd.f32 %v952, %v922
      %v954 = vadd.f32 %v953, %v923
      %v955 = vadd.f32 %v954, %v924
      %v956 = vadd.f32 %v955, %v925
      %v957 = vadd.f32 %v956, %v926
      %v958 = vadd.f32 %v957, %v927
      %v959 = vadd.f32 %v958, %v928
      %v960 = vadd.f32 %v959, %v929
      %v961 = vadd.f32 %v960, %v930
      %v962 = vadd.f32 %v961, %v931
      %v963 = vadd.f32 %v962, %v932
      %v964 = vadd.f32 %v963, %v933
      %v965 = vadd.f32 %v964, %v934
      %v966 = vadd.f32 %v965, %v935
      %v967 = vadd.f32 %v966, %v936
      %v968 = vadd.f32 %v967, %v937
      %v969 = vadd.f32 %v968, %v938
      %v970 = vadd.f32 %v969, %v939
      %v971 = vrot.slane %v970, 4
      %v972 = vadd.f32 %v970, %v971
      %v973 = vrot.slane %v972, 2
      %v974 = vadd.f32 %v972, %v973
      %v975 = vrot.slane %v974, 1
      %v976 = vadd.f32 %v974, %v975
      %v977 = vmul.f32 %v976, %v874
      %v978 = vadd.f32 %v977, 1e-05
      %v979 = vrsqrt.pop %v978
      %v980 = vmul.f32 %v876, %v979
      %v981 = vmul.f32 %v877, %v979
      %v982 = vmul.f32 %v878, %v979
      %v983 = vmul.f32 %v879, %v979
      %v984 = vmul.f32 %v880, %v979
      %v985 = vmul.f32 %v881, %v979
      %v986 = vmul.f32 %v882, %v979
      %v987 = vmul.f32 %v883, %v979
      %v988 = vmul.f32 %v884, %v979
      %v989 = vmul.f32 %v885, %v979
      %v990 = vmul.f32 %v886, %v979
      %v991 = vmul.f32 %v887, %v979
      %v992 = vmul.f32 %v888, %v979
      %v993 = vmul.f32 %v889, %v979
      %v994 = vmul.f32 %v890, %v979
      %v995 = vmul.f32 %v891, %v979
      %v996 = vmul.f32 %v892, %v979
      %v997 = vmul.f32 %v893, %v979
      %v998 = vmul.f32 %v894, %v979
      %v999 = vmul.f32 %v895, %v979
      %v1000 = vmul.f32 %v896, %v979
      %v1001 = vmul.f32 %v897, %v979
      %v1002 = vmul.f32 %v898, %v979
      %v1003 = vmul.f32 %v899, %v979
      %v1004 = vmul.f32 %v900, %v979
      %v1005 = vmul.f32 %v901, %v979
      %v1006 = vmul.f32 %v902, %v979
      %v1007 = vmul.f32 %v903, %v979
      %v1008 = vmul.f32 %v904, %v979
      %v1009 = vmul.f32 %v905, %v979
      %v1010 = vmul.f32 %v906, %v979
      %v1011 = vmul.f32 %v907, %v979
      %v1013 = vlaneseq
      %v1014 = vshrl.u32 %v1013, 7
      %v1015 = vsub.s32 0, %v1014
      %v1016 = vrot.slane %v835, %v1015
      %v1018 = vmul.f32 %v980, %v1016
      %v1019 = vmul.f32 %v981, %v1016
      %v1020 = vmul.f32 %v982, %v1016
      %v1021 = vmul.f32 %v983, %v1016
      %v1022 = vmul.f32 %v984, %v1016
      %v1023 = vmul.f32 %v985, %v1016
      %v1024 = vmul.f32 %v986, %v1016
      %v1025 = vmul.f32 %v987, %v1016
      %v1026 = vmul.f32 %v988, %v1016
      %v1027 = vmul.f32 %v989, %v1016
      %v1028 = vmul.f32 %v990, %v1016
      %v1029 = vmul.f32 %v991, %v1016
      %v1030 = vmul.f32 %v992, %v1016
      %v1031 = vmul.f32 %v993, %v1016
      %v1032 = vmul.f32 %v994, %v1016
      %v1033 = vmul.f32 %v995, %v1016
      %v1034 = vmul.f32 %v996, %v1016
      %v1035 = vmul.f32 %v997, %v1016
      %v1036 = vmul.f32 %v998, %v1016
      %v1037 = vmul.f32 %v999, %v1016
      %v1038 = vmul.f32 %v1000, %v1016
      %v1039 = vmul.f32 %v1001, %v1016
      %v1040 = vmul.f32 %v1002, %v1016
      %v1041 = vmul.f32 %v1003, %v1016
      %v1042 = vmul.f32 %v1004, %v1016
      %v1043 = vmul.f32 %v1005, %v1016
      %v1044 = vmul.f32 %v1006, %v1016
      %v1045 = vmul.f32 %v1007, %v1016
      %v1046 = vmul.f32 %v1008, %v1016
      %v1047 = vmul.f32 %v1009, %v1016
      %v1048 = vmul.f32 %v1010, %v1016
      %v1049 = vmul.f32 %v1011, %v1016
      %v1051 = vlaneseq
      %v1052 = vshrl.u32 %v1051, 7
      %v1053 = vsub.s32 0, %v1052
      %v1054 = vrot.slane %v836, %v1053
      %v1056 = vadd.f32 %v1018, %v1054
      %v1057 = vadd.f32 %v1019, %v1054
      %v1058 = vadd.f32 %v1020, %v1054
      %v1059 = vadd.f32 %v1021, %v1054
      %v1060 = vadd.f32 %v1022, %v1054
      %v1061 = vadd.f32 %v1023, %v1054
      %v1062 = vadd.f32 %v1024, %v1054
      %v1063 = vadd.f32 %v1025, %v1054
      %v1064 = vadd.f32 %v1026, %v1054
      %v1065 = vadd.f32 %v1027, %v1054
      %v1066 = vadd.f32 %v1028, %v1054
      %v1067 = vadd.f32 %v1029, %v1054
      %v1068 = vadd.f32 %v1030, %v1054
      %v1069 = vadd.f32 %v1031, %v1054
      %v1070 = vadd.f32 %v1032, %v1054
      %v1071 = vadd.f32 %v1033, %v1054
      %v1072 = vadd.f32 %v1034, %v1054
      %v1073 = vadd.f32 %v1035, %v1054
      %v1074 = vadd.f32 %v1036, %v1054
      %v1075 = vadd.f32 %v1037, %v1054
      %v1076 = vadd.f32 %v1038, %v1054
      %v1077 = vadd.f32 %v1039, %v1054
      %v1078 = vadd.f32 %v1040, %v1054
      %v1079 = vadd.f32 %v1041, %v1054
      %v1080 = vadd.f32 %v1042, %v1054
      %v1081 = vadd.f32 %v1043, %v1054
      %v1082 = vadd.f32 %v1044, %v1054
      %v1083 = vadd.f32 %v1045, %v1054
      %v1084 = vadd.f32 %v1046, %v1054
      %v1085 = vadd.f32 %v1047, %v1054
      %v1086 = vadd.f32 %v1048, %v1054
      %v1087 = vadd.f32 %v1049, %v1054
      %vm1088 = vcmp.gt.f32.partialorder %v1056, 0.0
      %vm1089 = vcmp.gt.f32.partialorder %v1057, 0.0
      %vm1090 = vcmp.gt.f32.partialorder %v1058, 0.0
      %vm1091 = vcmp.gt.f32.partialorder %v1059, 0.0
      %vm1092 = vcmp.gt.f32.partialorder %v1060, 0.0
      %vm1093 = vcmp.gt.f32.partialorder %v1061, 0.0
      %vm1094 = vcmp.gt.f32.partialorder %v1062, 0.0
      %vm1095 = vcmp.gt.f32.partialorder %v1063, 0.0
      %vm1096 = vcmp.gt.f32.partialorder %v1064, 0.0
      %vm1097 = vcmp.gt.f32.partialorder %v1065, 0.0
      %vm1098 = vcmp.gt.f32.partialorder %v1066, 0.0
      %vm1099 = vcmp.gt.f32.partialorder %v1067, 0.0
      %vm1100 = vcmp.gt.f32.partialorder %v1068, 0.0
      %vm1101 = vcmp.gt.f32.partialorder %v1069, 0.0
      %vm1102 = vcmp.gt.f32.partialorder %v1070, 0.0
      %vm1103 = vcmp.gt.f32.partialorder %v1071, 0.0
      %vm1104 = vcmp.gt.f32.partialorder %v1072, 0.0
      %vm1105 = vcmp.gt.f32.partialorder %v1073, 0.0
      %vm1106 = vcmp.gt.f32.partialorder %v1074, 0.0
      %vm1107 = vcmp.gt.f32.partialorder %v1075, 0.0
      %vm1108 = vcmp.gt.f32.partialorder %v1076, 0.0
      %vm1109 = vcmp.gt.f32.partialorder %v1077, 0.0
      %vm1110 = vcmp.gt.f32.partialorder %v1078, 0.0
      %vm1111 = vcmp.gt.f32.partialorder %v1079, 0.0
      %vm1112 = vcmp.gt.f32.partialorder %v1080, 0.0
      %vm1113 = vcmp.gt.f32.partialorder %v1081, 0.0
      %vm1114 = vcmp.gt.f32.partialorder %v1082, 0.0
      %vm1115 = vcmp.gt.f32.partialorder %v1083, 0.0
      %vm1116 = vcmp.gt.f32.partialorder %v1084, 0.0
      %vm1117 = vcmp.gt.f32.partialorder %v1085, 0.0
      %vm1118 = vcmp.gt.f32.partialorder %v1086, 0.0
      %vm1119 = vcmp.gt.f32.partialorder %v1087, 0.0
      %v1120 = vmul.f32 %v1056, 0.2
      %v1121 = vmul.f32 %v1057, 0.2
      %v1122 = vmul.f32 %v1058, 0.2
      %v1123 = vmul.f32 %v1059, 0.2
      %v1124 = vmul.f32 %v1060, 0.2
      %v1125 = vmul.f32 %v1061, 0.2
      %v1126 = vmul.f32 %v1062, 0.2
      %v1127 = vmul.f32 %v1063, 0.2
      %v1128 = vmul.f32 %v1064, 0.2
      %v1129 = vmul.f32 %v1065, 0.2
      %v1130 = vmul.f32 %v1066, 0.2
      %v1131 = vmul.f32 %v1067, 0.2
      %v1132 = vmul.f32 %v1068, 0.2
      %v1133 = vmul.f32 %v1069, 0.2
      %v1134 = vmul.f32 %v1070, 0.2
      %v1135 = vmul.f32 %v1071, 0.2
      %v1136 = vmul.f32 %v1072, 0.2
      %v1137 = vmul.f32 %v1073, 0.2
      %v1138 = vmul.f32 %v1074, 0.2
      %v1139 = vmul.f32 %v1075, 0.2
      %v1140 = vmul.f32 %v1076, 0.2
      %v1141 = vmul.f32 %v1077, 0.2
      %v1142 = vmul.f32 %v1078, 0.2
      %v1143 = vmul.f32 %v1079, 0.2
      %v1144 = vmul.f32 %v1080, 0.2
      %v1145 = vmul.f32 %v1081, 0.2
      %v1146 = vmul.f32 %v1082, 0.2
      %v1147 = vmul.f32 %v1083, 0.2
      %v1148 = vmul.f32 %v1084, 0.2
      %v1149 = vmul.f32 %v1085, 0.2
      %v1150 = vmul.f32 %v1086, 0.2
      %v1151 = vmul.f32 %v1087, 0.2
      %v1152 = vsel %vm1088, %v1056, %v1120
      %v1153 = vsel %vm1089, %v1057, %v1121
      %v1154 = vsel %vm1090, %v1058, %v1122
      %v1155 = vsel %vm1091, %v1059, %v1123
      %v1156 = vsel %vm1092, %v1060, %v1124
      %v1157 = vsel %vm1093, %v1061, %v1125
      %v1158 = vsel %vm1094, %v1062, %v1126
      %v1159 = vsel %vm1095, %v1063, %v1127
      %v1160 = vsel %vm1096, %v1064, %v1128
      %v1161 = vsel %vm1097, %v1065, %v1129
      %v1162 = vsel %vm1098, %v1066, %v1130
      %v1163 = vsel %vm1099, %v1067, %v1131
      %v1164 = vsel %vm1100, %v1068, %v1132
      %v1165 = vsel %vm1101, %v1069, %v1133
      %v1166 = vsel %vm1102, %v1070, %v1134
      %v1167 = vsel %vm1103, %v1071, %v1135
      %v1168 = vsel %vm1104, %v1072, %v1136
      %v1169 = vsel %vm1105, %v1073, %v1137
      %v1170 = vsel %vm1106, %v1074, %v1138
      %v1171 = vsel %vm1107, %v1075, %v1139
      %v1172 = vsel %vm1108, %v1076, %v1140
      %v1173 = vsel %vm1109, %v1077, %v1141
      %v1174 = vsel %vm1110, %v1078, %v1142
      %v1175 = vsel %vm1111, %v1079, %v1143
      %v1176 = vsel %vm1112, %v1080, %v1144
      %v1177 = vsel %vm1113, %v1081, %v1145
      %v1178 = vsel %vm1114, %v1082, %v1146
      %v1179 = vsel %vm1115, %v1083, %v1147
      %v1180 = vsel %vm1116, %v1084, %v1148
      %v1181 = vsel %vm1117, %v1085, %v1149
      %v1182 = vsel %vm1118, %v1086, %v1150
      %v1183 = vsel %vm1119, %v1087, %v1151
      %s1184 = scalar_lea.vmem [#allocation2], 24
      %1185 = vst [vmem:[%s1184 + $0x1] sm:$0xff] %v1152
      %1186 = vst [vmem:[%s1184 + $0x9] sm:$0xff] %v1153
      %1187 = vst [vmem:[%s1184 + $0x19] sm:$0xff] %v1154
      %1188 = vst [vmem:[%s1184 + $0x21] sm:$0xff] %v1155
      %1189 = vst [vmem:[%s1184 + $0x31] sm:$0xff] %v1156
      %1190 = vst [vmem:[%s1184 + $0x39] sm:$0xff] %v1157
      %1191 = vst [vmem:[%s1184 + $0x49] sm:$0xff] %v1158
      %1192 = vst [vmem:[%s1184 + $0x51] sm:$0xff] %v1159
      %1193 = vst [vmem:[%s1184 + $0x61] sm:$0xff] %v1160
      %1194 = vst [vmem:[%s1184 + $0x69] sm:$0xff] %v1161
      %1195 = vst [vmem:[%s1184 + $0x79] sm:$0xff] %v1162
      %1196 = vst [vmem:[%s1184 + $0x81] sm:$0xff] %v1163
      %1197 = vst [vmem:[%s1184 + $0x91] sm:$0xff] %v1164
      %1198 = vst [vmem:[%s1184 + $0x99] sm:$0xff] %v1165
      %1199 = vst [vmem:[%s1184 + $0xa9] sm:$0xff] %v1166
      %1200 = vst [vmem:[%s1184 + $0xb1] sm:$0xff] %v1167
      %1201 = vst [vmem:[%s1184 + $0xc1] sm:$0xff] %v1168
      %1202 = vst [vmem:[%s1184 + $0xc9] sm:$0xff] %v1169
      %1203 = vst [vmem:[%s1184 + $0xd9] sm:$0xff] %v1170
      %1204 = vst [vmem:[%s1184 + $0xe1] sm:$0xff] %v1171
      %1205 = vst [vmem:[%s1184 + $0xf1] sm:$0xff] %v1172
      %1206 = vst [vmem:[%s1184 + $0xf9] sm:$0xff] %v1173
      %1207 = vst [vmem:[%s1184 + $0x109] sm:$0xff] %v1174
      %1208 = vst [vmem:[%s1184 + $0x111] sm:$0xff] %v1175
      %1209 = vst [vmem:[%s1184 + $0x121] sm:$0xff] %v1176
      %1210 = vst [vmem:[%s1184 + $0x129] sm:$0xff] %v1177
      %1211 = vst [vmem:[%s1184 + $0x139] sm:$0xff] %v1178
      %1212 = vst [vmem:[%s1184 + $0x141] sm:$0xff] %v1179
      %1213 = vst [vmem:[%s1184 + $0x151] sm:$0xff] %v1180
      %1214 = vst [vmem:[%s1184 + $0x159] sm:$0xff] %v1181
      %1215 = vst [vmem:[%s1184 + $0x169] sm:$0xff] %v1182
      %1216 = vst [vmem:[%s1184 + $0x171] sm:$0xff] %v1183
      %v1217 = vld [vmem:[#allocation2] sm:$0xff]
      %v1218 = vld [vmem:[#allocation2 + $0x8] sm:$0xff]
      %v1219 = vld [vmem:[#allocation2 + $0x18] sm:$0xff]
      %v1220 = vld [vmem:[#allocation2 + $0x20] sm:$0xff]
      %v1221 = vld [vmem:[#allocation2 + $0x30] sm:$0xff]
      %v1222 = vld [vmem:[#allocation2 + $0x38] sm:$0xff]
      %v1223 = vld [vmem:[#allocation2 + $0x48] sm:$0xff]
      %v1224 = vld [vmem:[#allocation2 + $0x50] sm:$0xff]
      %v1225 = vld [vmem:[#allocation2 + $0x60] sm:$0xff]
      %v1226 = vld [vmem:[#allocation2 + $0x68] sm:$0xff]
      %v1227 = vld [vmem:[#allocation2 + $0x78] sm:$0xff]
      %v1228 = vld [vmem:[#allocation2 + $0x80] sm:$0xff]
      %v1229 = vld [vmem:[#allocation2 + $0x90] sm:$0xff]
      %v1230 = vld [vmem:[#allocation2 + $0x98] sm:$0xff]
      %v1231 = vld [vmem:[#allocation2 + $0xa8] sm:$0xff]
      %v1232 = vld [vmem:[#allocation2 + $0xb0] sm:$0xff]
      %v1233 = vld [vmem:[#allocation2 + $0xc0] sm:$0xff]
      %v1234 = vld [vmem:[#allocation2 + $0xc8] sm:$0xff]
      %v1235 = vld [vmem:[#allocation2 + $0xd8] sm:$0xff]
      %v1236 = vld [vmem:[#allocation2 + $0xe0] sm:$0xff]
      %v1237 = vld [vmem:[#allocation2 + $0xf0] sm:$0xff]
      %v1238 = vld [vmem:[#allocation2 + $0xf8] sm:$0xff]
      %v1239 = vld [vmem:[#allocation2 + $0x108] sm:$0xff]
      %v1240 = vld [vmem:[#allocation2 + $0x110] sm:$0xff]
      %v1241 = vld [vmem:[#allocation2 + $0x120] sm:$0xff]
      %v1242 = vld [vmem:[#allocation2 + $0x128] sm:$0xff]
      %v1243 = vld [vmem:[#allocation2 + $0x138] sm:$0xff]
      %v1244 = vld [vmem:[#allocation2 + $0x140] sm:$0xff]
      %v1245 = vld [vmem:[#allocation2 + $0x150] sm:$0xff]
      %v1246 = vld [vmem:[#allocation2 + $0x158] sm:$0xff]
      %v1247 = vld [vmem:[#allocation2 + $0x168] sm:$0xff]
      %v1248 = vld [vmem:[#allocation2 + $0x170] sm:$0xff]
      %v1249 = vpack.c.bf16 %v1218, %v1217
      %v1250 = vpack.c.bf16 %v1220, %v1219
      %v1251 = vpack.c.bf16 %v1222, %v1221
      %v1252 = vpack.c.bf16 %v1224, %v1223
      %v1253 = vpack.c.bf16 %v1226, %v1225
      %v1254 = vpack.c.bf16 %v1228, %v1227
      %v1255 = vpack.c.bf16 %v1230, %v1229
      %v1256 = vpack.c.bf16 %v1232, %v1231
      %v1257 = vpack.c.bf16 %v1234, %v1233
      %v1258 = vpack.c.bf16 %v1236, %v1235
      %v1259 = vpack.c.bf16 %v1238, %v1237
      %v1260 = vpack.c.bf16 %v1240, %v1239
      %v1261 = vpack.c.bf16 %v1242, %v1241
      %v1262 = vpack.c.bf16 %v1244, %v1243
      %v1263 = vpack.c.bf16 %v1246, %v1245
      %v1264 = vpack.c.bf16 %v1248, %v1247
      %1265 = vst [vmem:[#allocation5] sm:$0xff] %v1249
      %1266 = vst [vmem:[#allocation5 + $0x48] sm:$0xff] %v1250
      %1267 = vst [vmem:[#allocation5 + $0x90] sm:$0xff] %v1251
      %1268 = vst [vmem:[#allocation5 + $0xd8] sm:$0xff] %v1252
      %1269 = vst [vmem:[#allocation5 + $0x120] sm:$0xff] %v1253
      %1270 = vst [vmem:[#allocation5 + $0x168] sm:$0xff] %v1254
      %1271 = vst [vmem:[#allocation5 + $0x1b0] sm:$0xff] %v1255
      %1272 = vst [vmem:[#allocation5 + $0x1f8] sm:$0xff] %v1256
      %1273 = vst [vmem:[#allocation5 + $0x240] sm:$0xff] %v1257
      %1274 = vst [vmem:[#allocation5 + $0x288] sm:$0xff] %v1258
      %1275 = vst [vmem:[#allocation5 + $0x2d0] sm:$0xff] %v1259
      %1276 = vst [vmem:[#allocation5 + $0x318] sm:$0xff] %v1260
      %1277 = vst [vmem:[#allocation5 + $0x360] sm:$0xff] %v1261
      %1278 = vst [vmem:[#allocation5 + $0x3a8] sm:$0xff] %v1262
      %1279 = vst [vmem:[#allocation5 + $0x3f0] sm:$0xff] %v1263
      %1280 = vst [vmem:[#allocation5 + $0x438] sm:$0xff] %v1264
      %v1281 = vld [vmem:[#allocation2 + $0x1] sm:$0xff]
      %v1282 = vld [vmem:[#allocation2 + $0x9] sm:$0xff]
      %v1283 = vld [vmem:[#allocation2 + $0x19] sm:$0xff]
      %v1284 = vld [vmem:[#allocation2 + $0x21] sm:$0xff]
      %v1285 = vld [vmem:[#allocation2 + $0x31] sm:$0xff]
      %v1286 = vld [vmem:[#allocation2 + $0x39] sm:$0xff]
      %v1287 = vld [vmem:[#allocation2 + $0x49] sm:$0xff]
      %v1288 = vld [vmem:[#allocation2 + $0x51] sm:$0xff]
      %v1289 = vld [vmem:[#allocation2 + $0x61] sm:$0xff]
      %v1290 = vld [vmem:[#allocation2 + $0x69] sm:$0xff]
      %v1291 = vld [vmem:[#allocation2 + $0x79] sm:$0xff]
      %v1292 = vld [vmem:[#allocation2 + $0x81] sm:$0xff]
      %v1293 = vld [vmem:[#allocation2 + $0x91] sm:$0xff]
      %v1294 = vld [vmem:[#allocation2 + $0x99] sm:$0xff]
      %v1295 = vld [vmem:[#allocation2 + $0xa9] sm:$0xff]
      %v1296 = vld [vmem:[#allocation2 + $0xb1] sm:$0xff]
      %v1297 = vld [vmem:[#allocation2 + $0xc1] sm:$0xff]
      %v1298 = vld [vmem:[#allocation2 + $0xc9] sm:$0xff]
      %v1299 = vld [vmem:[#allocation2 + $0xd9] sm:$0xff]
      %v1300 = vld [vmem:[#allocation2 + $0xe1] sm:$0xff]
      %v1301 = vld [vmem:[#allocation2 + $0xf1] sm:$0xff]
      %v1302 = vld [vmem:[#allocation2 + $0xf9] sm:$0xff]
      %v1303 = vld [vmem:[#allocation2 + $0x109] sm:$0xff]
      %v1304 = vld [vmem:[#allocation2 + $0x111] sm:$0xff]
      %v1305 = vld [vmem:[#allocation2 + $0x121] sm:$0xff]
      %v1306 = vld [vmem:[#allocation2 + $0x129] sm:$0xff]
      %v1307 = vld [vmem:[#allocation2 + $0x139] sm:$0xff]
      %v1308 = vld [vmem:[#allocation2 + $0x141] sm:$0xff]
      %v1309 = vld [vmem:[#allocation2 + $0x151] sm:$0xff]
      %v1310 = vld [vmem:[#allocation2 + $0x159] sm:$0xff]
      %v1311 = vld [vmem:[#allocation2 + $0x169] sm:$0xff]
      %v1312 = vld [vmem:[#allocation2 + $0x171] sm:$0xff]
      %v1313 = vpack.c.bf16 %v1282, %v1281
      %v1314 = vpack.c.bf16 %v1284, %v1283
      %v1315 = vpack.c.bf16 %v1286, %v1285
      %v1316 = vpack.c.bf16 %v1288, %v1287
      %v1317 = vpack.c.bf16 %v1290, %v1289
      %v1318 = vpack.c.bf16 %v1292, %v1291
      %v1319 = vpack.c.bf16 %v1294, %v1293
      %v1320 = vpack.c.bf16 %v1296, %v1295
      %v1321 = vpack.c.bf16 %v1298, %v1297
      %v1322 = vpack.c.bf16 %v1300, %v1299
      %v1323 = vpack.c.bf16 %v1302, %v1301
      %v1324 = vpack.c.bf16 %v1304, %v1303
      %v1325 = vpack.c.bf16 %v1306, %v1305
      %v1326 = vpack.c.bf16 %v1308, %v1307
      %v1327 = vpack.c.bf16 %v1310, %v1309
      %v1328 = vpack.c.bf16 %v1312, %v1311
      %1329 = vst [vmem:[#allocation5 + $0x8] sm:$0xff] %v1313
      %1330 = vst [vmem:[#allocation5 + $0x50] sm:$0xff] %v1314
      %1331 = vst [vmem:[#allocation5 + $0x98] sm:$0xff] %v1315
      %1332 = vst [vmem:[#allocation5 + $0xe0] sm:$0xff] %v1316
      %1333 = vst [vmem:[#allocation5 + $0x128] sm:$0xff] %v1317
      %1334 = vst [vmem:[#allocation5 + $0x170] sm:$0xff] %v1318
      %1335 = vst [vmem:[#allocation5 + $0x1b8] sm:$0xff] %v1319
      %1336 = vst [vmem:[#allocation5 + $0x200] sm:$0xff] %v1320
      %1337 = vst [vmem:[#allocation5 + $0x248] sm:$0xff] %v1321
      %1338 = vst [vmem:[#allocation5 + $0x290] sm:$0xff] %v1322
      %1339 = vst [vmem:[#allocation5 + $0x2d8] sm:$0xff] %v1323
      %1340 = vst [vmem:[#allocation5 + $0x320] sm:$0xff] %v1324
      %1341 = vst [vmem:[#allocation5 + $0x368] sm:$0xff] %v1325
      %1342 = vst [vmem:[#allocation5 + $0x3b0] sm:$0xff] %v1326
      %1343 = vst [vmem:[#allocation5 + $0x3f8] sm:$0xff] %v1327
      %1344 = vst [vmem:[#allocation5 + $0x440] sm:$0xff] %v1328
      %v1345 = vld [vmem:[#allocation2 + $0x2] sm:$0xff]
      %v1346 = vld [vmem:[#allocation2 + $0xa] sm:$0xff]
      %v1347 = vld [vmem:[#allocation2 + $0x1a] sm:$0xff]
      %v1348 = vld [vmem:[#allocation2 + $0x22] sm:$0xff]
      %v1349 = vld [vmem:[#allocation2 + $0x32] sm:$0xff]
      %v1350 = vld [vmem:[#allocation2 + $0x3a] sm:$0xff]
      %v1351 = vld [vmem:[#allocation2 + $0x4a] sm:$0xff]
      %v1352 = vld [vmem:[#allocation2 + $0x52] sm:$0xff]
      %v1353 = vld [vmem:[#allocation2 + $0x62] sm:$0xff]
      %v1354 = vld [vmem:[#allocation2 + $0x6a] sm:$0xff]
      %v1355 = vld [vmem:[#allocation2 + $0x7a] sm:$0xff]
      %v1356 = vld [vmem:[#allocation2 + $0x82] sm:$0xff]
      %v1357 = vld [vmem:[#allocation2 + $0x92] sm:$0xff]
      %v1358 = vld [vmem:[#allocation2 + $0x9a] sm:$0xff]
      %v1359 = vld [vmem:[#allocation2 + $0xaa] sm:$0xff]
      %v1360 = vld [vmem:[#allocation2 + $0xb2] sm:$0xff]
      %v1361 = vld [vmem:[#allocation2 + $0xc2] sm:$0xff]
      %v1362 = vld [vmem:[#allocation2 + $0xca] sm:$0xff]
      %v1363 = vld [vmem:[#allocation2 + $0xda] sm:$0xff]
      %v1364 = vld [vmem:[#allocation2 + $0xe2] sm:$0xff]
      %v1365 = vld [vmem:[#allocation2 + $0xf2] sm:$0xff]
      %v1366 = vld [vmem:[#allocation2 + $0xfa] sm:$0xff]
      %v1367 = vld [vmem:[#allocation2 + $0x10a] sm:$0xff]
      %v1368 = vld [vmem:[#allocation2 + $0x112] sm:$0xff]
      %v1369 = vld [vmem:[#allocation2 + $0x122] sm:$0xff]
      %v1370 = vld [vmem:[#allocation2 + $0x12a] sm:$0xff]
      %v1371 = vld [vmem:[#allocation2 + $0x13a] sm:$0xff]
      %v1372 = vld [vmem:[#allocation2 + $0x142] sm:$0xff]
      %v1373 = vld [vmem:[#allocation2 + $0x152] sm:$0xff]
      %v1374 = vld [vmem:[#allocation2 + $0x15a] sm:$0xff]
      %v1375 = vld [vmem:[#allocation2 + $0x16a] sm:$0xff]
      %v1376 = vld [vmem:[#allocation2 + $0x172] sm:$0xff]
      %v1377 = vpack.c.bf16 %v1346, %v1345
      %v1378 = vpack.c.bf16 %v1348, %v1347
      %v1379 = vpack.c.bf16 %v1350, %v1349
      %v1380 = vpack.c.bf16 %v1352, %v1351
      %v1381 = vpack.c.bf16 %v1354, %v1353
      %v1382 = vpack.c.bf16 %v1356, %v1355
      %v1383 = vpack.c.bf16 %v1358, %v1357
      %v1384 = vpack.c.bf16 %v1360, %v1359
      %v1385 = vpack.c.bf16 %v1362, %v1361
      %v1386 = vpack.c.bf16 %v1364, %v1363
      %v1387 = vpack.c.bf16 %v1366, %v1365
      %v1388 = vpack.c.bf16 %v1368, %v1367
      %v1389 = vpack.c.bf16 %v1370, %v1369
      %v1390 = vpack.c.bf16 %v1372, %v1371
      %v1391 = vpack.c.bf16 %v1374, %v1373
      %v1392 = vpack.c.bf16 %v1376, %v1375
      %1393 = vst [vmem:[#allocation5 + $0x10] sm:$0xff] %v1377
      %1394 = vst [vmem:[#allocation5 + $0x58] sm:$0xff] %v1378
      %1395 = vst [vmem:[#allocation5 + $0xa0] sm:$0xff] %v1379
      %1396 = vst [vmem:[#allocation5 + $0xe8] sm:$0xff] %v1380
      %1397 = vst [vmem:[#allocation5 + $0x130] sm:$0xff] %v1381
      %1398 = vst [vmem:[#allocation5 + $0x178] sm:$0xff] %v1382
      %1399 = vst [vmem:[#allocation5 + $0x1c0] sm:$0xff] %v1383
      %1400 = vst [vmem:[#allocation5 + $0x208] sm:$0xff] %v1384
      %1401 = vst [vmem:[#allocation5 + $0x250] sm:$0xff] %v1385
      %1402 = vst [vmem:[#allocation5 + $0x298] sm:$0xff] %v1386
      %1403 = vst [vmem:[#allocation5 + $0x2e0] sm:$0xff] %v1387
      %1404 = vst [vmem:[#allocation5 + $0x328] sm:$0xff] %v1388
      %1405 = vst [vmem:[#allocation5 + $0x370] sm:$0xff] %v1389
      %1406 = vst [vmem:[#allocation5 + $0x3b8] sm:$0xff] %v1390
      %1407 = vst [vmem:[#allocation5 + $0x400] sm:$0xff] %v1391
      %1408 = vst [vmem:[#allocation5 + $0x448] sm:$0xff] %v1392
      %v1409 = vld [vmem:[%s1184] sm:$0xff]
      %v1410 = vld [vmem:[%s1184 + $0x8] sm:$0xff]
      %v1411 = vld [vmem:[%s1184 + $0x18] sm:$0xff]
      %v1412 = vld [vmem:[%s1184 + $0x20] sm:$0xff]
      %v1413 = vld [vmem:[%s1184 + $0x30] sm:$0xff]
      %v1414 = vld [vmem:[%s1184 + $0x38] sm:$0xff]
      %v1415 = vld [vmem:[%s1184 + $0x48] sm:$0xff]
      %v1416 = vld [vmem:[%s1184 + $0x50] sm:$0xff]
      %v1417 = vld [vmem:[%s1184 + $0x60] sm:$0xff]
      %v1418 = vld [vmem:[%s1184 + $0x68] sm:$0xff]
      %v1419 = vld [vmem:[%s1184 + $0x78] sm:$0xff]
      %v1420 = vld [vmem:[%s1184 + $0x80] sm:$0xff]
      %v1421 = vld [vmem:[%s1184 + $0x90] sm:$0xff]
      %v1422 = vld [vmem:[%s1184 + $0x98] sm:$0xff]
      %v1423 = vld [vmem:[%s1184 + $0xa8] sm:$0xff]
      %v1424 = vld [vmem:[%s1184 + $0xb0] sm:$0xff]
      %v1425 = vld [vmem:[%s1184 + $0xc0] sm:$0xff]
      %v1426 = vld [vmem:[%s1184 + $0xc8] sm:$0xff]
      %v1427 = vld [vmem:[%s1184 + $0xd8] sm:$0xff]
      %v1428 = vld [vmem:[%s1184 + $0xe0] sm:$0xff]
      %v1429 = vld [vmem:[%s1184 + $0xf0] sm:$0xff]
      %v1430 = vld [vmem:[%s1184 + $0xf8] sm:$0xff]
      %v1431 = vld [vmem:[%s1184 + $0x108] sm:$0xff]
      %v1432 = vld [vmem:[%s1184 + $0x110] sm:$0xff]
      %v1433 = vld [vmem:[%s1184 + $0x120] sm:$0xff]
      %v1434 = vld [vmem:[%s1184 + $0x128] sm:$0xff]
      %v1435 = vld [vmem:[%s1184 + $0x138] sm:$0xff]
      %v1436 = vld [vmem:[%s1184 + $0x140] sm:$0xff]
      %v1437 = vld [vmem:[%s1184 + $0x150] sm:$0xff]
      %v1438 = vld [vmem:[%s1184 + $0x158] sm:$0xff]
      %v1439 = vld [vmem:[%s1184 + $0x168] sm:$0xff]
      %v1440 = vld [vmem:[%s1184 + $0x170] sm:$0xff]
      %v1441 = vpack.c.bf16 %v1410, %v1409
      %v1442 = vpack.c.bf16 %v1412, %v1411
      %v1443 = vpack.c.bf16 %v1414, %v1413
      %v1444 = vpack.c.bf16 %v1416, %v1415
      %v1445 = vpack.c.bf16 %v1418, %v1417
      %v1446 = vpack.c.bf16 %v1420, %v1419
      %v1447 = vpack.c.bf16 %v1422, %v1421
      %v1448 = vpack.c.bf16 %v1424, %v1423
      %v1449 = vpack.c.bf16 %v1426, %v1425
      %v1450 = vpack.c.bf16 %v1428, %v1427
      %v1451 = vpack.c.bf16 %v1430, %v1429
      %v1452 = vpack.c.bf16 %v1432, %v1431
      %v1453 = vpack.c.bf16 %v1434, %v1433
      %v1454 = vpack.c.bf16 %v1436, %v1435
      %v1455 = vpack.c.bf16 %v1438, %v1437
      %v1456 = vpack.c.bf16 %v1440, %v1439
      %1457 = vst [vmem:[#allocation5 + $0x18] sm:$0xff] %v1441
      %1458 = vst [vmem:[#allocation5 + $0x60] sm:$0xff] %v1442
      %1459 = vst [vmem:[#allocation5 + $0xa8] sm:$0xff] %v1443
      %1460 = vst [vmem:[#allocation5 + $0xf0] sm:$0xff] %v1444
      %1461 = vst [vmem:[#allocation5 + $0x138] sm:$0xff] %v1445
      %1462 = vst [vmem:[#allocation5 + $0x180] sm:$0xff] %v1446
      %1463 = vst [vmem:[#allocation5 + $0x1c8] sm:$0xff] %v1447
      %1464 = vst [vmem:[#allocation5 + $0x210] sm:$0xff] %v1448
      %1465 = vst [vmem:[#allocation5 + $0x258] sm:$0xff] %v1449
      %1466 = vst [vmem:[#allocation5 + $0x2a0] sm:$0xff] %v1450
      %1467 = vst [vmem:[#allocation5 + $0x2e8] sm:$0xff] %v1451
      %1468 = vst [vmem:[#allocation5 + $0x330] sm:$0xff] %v1452
      %1469 = vst [vmem:[#allocation5 + $0x378] sm:$0xff] %v1453
      %1470 = vst [vmem:[#allocation5 + $0x3c0] sm:$0xff] %v1454
      %1471 = vst [vmem:[#allocation5 + $0x408] sm:$0xff] %v1455
      %1472 = vst [vmem:[#allocation5 + $0x450] sm:$0xff] %v1456
      %v1473 = vld [vmem:[%s1184 + $0x1] sm:$0xff]
      %v1474 = vld [vmem:[%s1184 + $0x9] sm:$0xff]
      %v1475 = vld [vmem:[%s1184 + $0x19] sm:$0xff]
      %v1476 = vld [vmem:[%s1184 + $0x21] sm:$0xff]
      %v1477 = vld [vmem:[%s1184 + $0x31] sm:$0xff]
      %v1478 = vld [vmem:[%s1184 + $0x39] sm:$0xff]
      %v1479 = vld [vmem:[%s1184 + $0x49] sm:$0xff]
      %v1480 = vld [vmem:[%s1184 + $0x51] sm:$0xff]
      %v1481 = vld [vmem:[%s1184 + $0x61] sm:$0xff]
      %v1482 = vld [vmem:[%s1184 + $0x69] sm:$0xff]
      %v1483 = vld [vmem:[%s1184 + $0x79] sm:$0xff]
      %v1484 = vld [vmem:[%s1184 + $0x81] sm:$0xff]
      %v1485 = vld [vmem:[%s1184 + $0x91] sm:$0xff]
      %v1486 = vld [vmem:[%s1184 + $0x99] sm:$0xff]
      %v1487 = vld [vmem:[%s1184 + $0xa9] sm:$0xff]
      %v1488 = vld [vmem:[%s1184 + $0xb1] sm:$0xff]
      %v1489 = vld [vmem:[%s1184 + $0xc1] sm:$0xff]
      %v1490 = vld [vmem:[%s1184 + $0xc9] sm:$0xff]
      %v1491 = vld [vmem:[%s1184 + $0xd9] sm:$0xff]
      %v1492 = vld [vmem:[%s1184 + $0xe1] sm:$0xff]
      %v1493 = vld [vmem:[%s1184 + $0xf1] sm:$0xff]
      %v1494 = vld [vmem:[%s1184 + $0xf9] sm:$0xff]
      %v1495 = vld [vmem:[%s1184 + $0x109] sm:$0xff]
      %v1496 = vld [vmem:[%s1184 + $0x111] sm:$0xff]
      %v1497 = vld [vmem:[%s1184 + $0x121] sm:$0xff]
      %v1498 = vld [vmem:[%s1184 + $0x129] sm:$0xff]
      %v1499 = vld [vmem:[%s1184 + $0x139] sm:$0xff]
      %v1500 = vld [vmem:[%s1184 + $0x141] sm:$0xff]
      %v1501 = vld [vmem:[%s1184 + $0x151] sm:$0xff]
      %v1502 = vld [vmem:[%s1184 + $0x159] sm:$0xff]
      %v1503 = vld [vmem:[%s1184 + $0x169] sm:$0xff]
      %v1504 = vld [vmem:[%s1184 + $0x171] sm:$0xff]
      %v1505 = vpack.c.bf16 %v1474, %v1473
      %v1506 = vpack.c.bf16 %v1476, %v1475
      %v1507 = vpack.c.bf16 %v1478, %v1477
      %v1508 = vpack.c.bf16 %v1480, %v1479
      %v1509 = vpack.c.bf16 %v1482, %v1481
      %v1510 = vpack.c.bf16 %v1484, %v1483
      %v1511 = vpack.c.bf16 %v1486, %v1485
      %v1512 = vpack.c.bf16 %v1488, %v1487
      %v1513 = vpack.c.bf16 %v1490, %v1489
      %v1514 = vpack.c.bf16 %v1492, %v1491
      %v1515 = vpack.c.bf16 %v1494, %v1493
      %v1516 = vpack.c.bf16 %v1496, %v1495
      %v1517 = vpack.c.bf16 %v1498, %v1497
      %v1518 = vpack.c.bf16 %v1500, %v1499
      %v1519 = vpack.c.bf16 %v1502, %v1501
      %v1520 = vpack.c.bf16 %v1504, %v1503
      %1521 = vst [vmem:[#allocation5 + $0x20] sm:$0xff] %v1505
      %1522 = vst [vmem:[#allocation5 + $0x68] sm:$0xff] %v1506
      %1523 = vst [vmem:[#allocation5 + $0xb0] sm:$0xff] %v1507
      %1524 = vst [vmem:[#allocation5 + $0xf8] sm:$0xff] %v1508
      %1525 = vst [vmem:[#allocation5 + $0x140] sm:$0xff] %v1509
      %1526 = vst [vmem:[#allocation5 + $0x188] sm:$0xff] %v1510
      %1527 = vst [vmem:[#allocation5 + $0x1d0] sm:$0xff] %v1511
      %1528 = vst [vmem:[#allocation5 + $0x218] sm:$0xff] %v1512
      %1529 = vst [vmem:[#allocation5 + $0x260] sm:$0xff] %v1513
      %1530 = vst [vmem:[#allocation5 + $0x2a8] sm:$0xff] %v1514
      %1531 = vst [vmem:[#allocation5 + $0x2f0] sm:$0xff] %v1515
      %1532 = vst [vmem:[#allocation5 + $0x338] sm:$0xff] %v1516
      %1533 = vst [vmem:[#allocation5 + $0x380] sm:$0xff] %v1517
      %1534 = vst [vmem:[#allocation5 + $0x3c8] sm:$0xff] %v1518
      %1535 = vst [vmem:[#allocation5 + $0x410] sm:$0xff] %v1519
      %1536 = vst [vmem:[#allocation5 + $0x458] sm:$0xff] %v1520
      %v1537 = vld [vmem:[%s1184 + $0x2] sm:$0xff]
      %v1538 = vld [vmem:[%s1184 + $0xa] sm:$0xff]
      %v1539 = vld [vmem:[%s1184 + $0x1a] sm:$0xff]
      %v1540 = vld [vmem:[%s1184 + $0x22] sm:$0xff]
      %v1541 = vld [vmem:[%s1184 + $0x32] sm:$0xff]
      %v1542 = vld [vmem:[%s1184 + $0x3a] sm:$0xff]
      %v1543 = vld [vmem:[%s1184 + $0x4a] sm:$0xff]
      %v1544 = vld [vmem:[%s1184 + $0x52] sm:$0xff]
      %v1545 = vld [vmem:[%s1184 + $0x62] sm:$0xff]
      %v1546 = vld [vmem:[%s1184 + $0x6a] sm:$0xff]
      %v1547 = vld [vmem:[%s1184 + $0x7a] sm:$0xff]
      %v1548 = vld [vmem:[%s1184 + $0x82] sm:$0xff]
      %v1549 = vld [vmem:[%s1184 + $0x92] sm:$0xff]
      %v1550 = vld [vmem:[%s1184 + $0x9a] sm:$0xff]
      %v1551 = vld [vmem:[%s1184 + $0xaa] sm:$0xff]
      %v1552 = vld [vmem:[%s1184 + $0xb2] sm:$0xff]
      %v1553 = vld [vmem:[%s1184 + $0xc2] sm:$0xff]
      %v1554 = vld [vmem:[%s1184 + $0xca] sm:$0xff]
      %v1555 = vld [vmem:[%s1184 + $0xda] sm:$0xff]
      %v1556 = vld [vmem:[%s1184 + $0xe2] sm:$0xff]
      %v1557 = vld [vmem:[%s1184 + $0xf2] sm:$0xff]
      %v1558 = vld [vmem:[%s1184 + $0xfa] sm:$0xff]
      %v1559 = vld [vmem:[%s1184 + $0x10a] sm:$0xff]
      %v1560 = vld [vmem:[%s1184 + $0x112] sm:$0xff]
      %v1561 = vld [vmem:[%s1184 + $0x122] sm:$0xff]
      %v1562 = vld [vmem:[%s1184 + $0x12a] sm:$0xff]
      %v1563 = vld [vmem:[%s1184 + $0x13a] sm:$0xff]
      %v1564 = vld [vmem:[%s1184 + $0x142] sm:$0xff]
      %v1565 = vld [vmem:[%s1184 + $0x152] sm:$0xff]
      %v1566 = vld [vmem:[%s1184 + $0x15a] sm:$0xff]
      %v1567 = vld [vmem:[%s1184 + $0x16a] sm:$0xff]
      %v1568 = vld [vmem:[%s1184 + $0x172] sm:$0xff]
      %v1569 = vpack.c.bf16 %v1538, %v1537
      %v1570 = vpack.c.bf16 %v1540, %v1539
      %v1571 = vpack.c.bf16 %v1542, %v1541
      %v1572 = vpack.c.bf16 %v1544, %v1543
      %v1573 = vpack.c.bf16 %v1546, %v1545
      %v1574 = vpack.c.bf16 %v1548, %v1547
      %v1575 = vpack.c.bf16 %v1550, %v1549
      %v1576 = vpack.c.bf16 %v1552, %v1551
      %v1577 = vpack.c.bf16 %v1554, %v1553
      %v1578 = vpack.c.bf16 %v1556, %v1555
      %v1579 = vpack.c.bf16 %v1558, %v1557
      %v1580 = vpack.c.bf16 %v1560, %v1559
      %v1581 = vpack.c.bf16 %v1562, %v1561
      %v1582 = vpack.c.bf16 %v1564, %v1563
      %v1583 = vpack.c.bf16 %v1566, %v1565
      %v1584 = vpack.c.bf16 %v1568, %v1567
      %1585 = vst [vmem:[#allocation5 + $0x28] sm:$0xff] %v1569
      %1586 = vst [vmem:[#allocation5 + $0x70] sm:$0xff] %v1570
      %1587 = vst [vmem:[#allocation5 + $0xb8] sm:$0xff] %v1571
      %1588 = vst [vmem:[#allocation5 + $0x100] sm:$0xff] %v1572
      %1589 = vst [vmem:[#allocation5 + $0x148] sm:$0xff] %v1573
      %1590 = vst [vmem:[#allocation5 + $0x190] sm:$0xff] %v1574
      %1591 = vst [vmem:[#allocation5 + $0x1d8] sm:$0xff] %v1575
      %1592 = vst [vmem:[#allocation5 + $0x220] sm:$0xff] %v1576
      %1593 = vst [vmem:[#allocation5 + $0x268] sm:$0xff] %v1577
      %1594 = vst [vmem:[#allocation5 + $0x2b0] sm:$0xff] %v1578
      %1595 = vst [vmem:[#allocation5 + $0x2f8] sm:$0xff] %v1579
      %1596 = vst [vmem:[#allocation5 + $0x340] sm:$0xff] %v1580
      %1597 = vst [vmem:[#allocation5 + $0x388] sm:$0xff] %v1581
      %1598 = vst [vmem:[#allocation5 + $0x3d0] sm:$0xff] %v1582
      %1599 = vst [vmem:[#allocation5 + $0x418] sm:$0xff] %v1583
      %1600 = vst [vmem:[#allocation5 + $0x460] sm:$0xff] %v1584
      %s1601 = scalar_lea.vmem [#allocation2], 48
      %v1602 = vld [vmem:[%s1601] sm:$0xff]
      %v1603 = vld [vmem:[%s1601 + $0x8] sm:$0xff]
      %v1604 = vld [vmem:[%s1601 + $0x18] sm:$0xff]
      %v1605 = vld [vmem:[%s1601 + $0x20] sm:$0xff]
      %v1606 = vld [vmem:[%s1601 + $0x30] sm:$0xff]
      %v1607 = vld [vmem:[%s1601 + $0x38] sm:$0xff]
      %v1608 = vld [vmem:[%s1601 + $0x48] sm:$0xff]
      %v1609 = vld [vmem:[%s1601 + $0x50] sm:$0xff]
      %v1610 = vld [vmem:[%s1601 + $0x60] sm:$0xff]
      %v1611 = vld [vmem:[%s1601 + $0x68] sm:$0xff]
      %v1612 = vld [vmem:[%s1601 + $0x78] sm:$0xff]
      %v1613 = vld [vmem:[%s1601 + $0x80] sm:$0xff]
      %v1614 = vld [vmem:[%s1601 + $0x90] sm:$0xff]
      %v1615 = vld [vmem:[%s1601 + $0x98] sm:$0xff]
      %v1616 = vld [vmem:[%s1601 + $0xa8] sm:$0xff]
      %v1617 = vld [vmem:[%s1601 + $0xb0] sm:$0xff]
      %v1618 = vld [vmem:[%s1601 + $0xc0] sm:$0xff]
      %v1619 = vld [vmem:[%s1601 + $0xc8] sm:$0xff]
      %v1620 = vld [vmem:[%s1601 + $0xd8] sm:$0xff]
      %v1621 = vld [vmem:[%s1601 + $0xe0] sm:$0xff]
      %v1622 = vld [vmem:[%s1601 + $0xf0] sm:$0xff]
      %v1623 = vld [vmem:[%s1601 + $0xf8] sm:$0xff]
      %v1624 = vld [vmem:[%s1601 + $0x108] sm:$0xff]
      %v1625 = vld [vmem:[%s1601 + $0x110] sm:$0xff]
      %v1626 = vld [vmem:[%s1601 + $0x120] sm:$0xff]
      %v1627 = vld [vmem:[%s1601 + $0x128] sm:$0xff]
      %v1628 = vld [vmem:[%s1601 + $0x138] sm:$0xff]
      %v1629 = vld [vmem:[%s1601 + $0x140] sm:$0xff]
      %v1630 = vld [vmem:[%s1601 + $0x150] sm:$0xff]
      %v1631 = vld [vmem:[%s1601 + $0x158] sm:$0xff]
      %v1632 = vld [vmem:[%s1601 + $0x168] sm:$0xff]
      %v1633 = vld [vmem:[%s1601 + $0x170] sm:$0xff]
      %v1634 = vpack.c.bf16 %v1603, %v1602
      %v1635 = vpack.c.bf16 %v1605, %v1604
      %v1636 = vpack.c.bf16 %v1607, %v1606
      %v1637 = vpack.c.bf16 %v1609, %v1608
      %v1638 = vpack.c.bf16 %v1611, %v1610
      %v1639 = vpack.c.bf16 %v1613, %v1612
      %v1640 = vpack.c.bf16 %v1615, %v1614
      %v1641 = vpack.c.bf16 %v1617, %v1616
      %v1642 = vpack.c.bf16 %v1619, %v1618
      %v1643 = vpack.c.bf16 %v1621, %v1620
      %v1644 = vpack.c.bf16 %v1623, %v1622
      %v1645 = vpack.c.bf16 %v1625, %v1624
      %v1646 = vpack.c.bf16 %v1627, %v1626
      %v1647 = vpack.c.bf16 %v1629, %v1628
      %v1648 = vpack.c.bf16 %v1631, %v1630
      %v1649 = vpack.c.bf16 %v1633, %v1632
      %1650 = vst [vmem:[#allocation5 + $0x30] sm:$0xff] %v1634
      %1651 = vst [vmem:[#allocation5 + $0x78] sm:$0xff] %v1635
      %1652 = vst [vmem:[#allocation5 + $0xc0] sm:$0xff] %v1636
      %1653 = vst [vmem:[#allocation5 + $0x108] sm:$0xff] %v1637
      %1654 = vst [vmem:[#allocation5 + $0x150] sm:$0xff] %v1638
      %1655 = vst [vmem:[#allocation5 + $0x198] sm:$0xff] %v1639
      %1656 = vst [vmem:[#allocation5 + $0x1e0] sm:$0xff] %v1640
      %1657 = vst [vmem:[#allocation5 + $0x228] sm:$0xff] %v1641
      %1658 = vst [vmem:[#allocation5 + $0x270] sm:$0xff] %v1642
      %1659 = vst [vmem:[#allocation5 + $0x2b8] sm:$0xff] %v1643
      %1660 = vst [vmem:[#allocation5 + $0x300] sm:$0xff] %v1644
      %1661 = vst [vmem:[#allocation5 + $0x348] sm:$0xff] %v1645
      %1662 = vst [vmem:[#allocation5 + $0x390] sm:$0xff] %v1646
      %1663 = vst [vmem:[#allocation5 + $0x3d8] sm:$0xff] %v1647
      %1664 = vst [vmem:[#allocation5 + $0x420] sm:$0xff] %v1648
      %1665 = vst [vmem:[#allocation5 + $0x468] sm:$0xff] %v1649
      %v1666 = vld [vmem:[%s1601 + $0x1] sm:$0xff]
      %v1667 = vld [vmem:[%s1601 + $0x9] sm:$0xff]
      %v1668 = vld [vmem:[%s1601 + $0x19] sm:$0xff]
      %v1669 = vld [vmem:[%s1601 + $0x21] sm:$0xff]
      %v1670 = vld [vmem:[%s1601 + $0x31] sm:$0xff]
      %v1671 = vld [vmem:[%s1601 + $0x39] sm:$0xff]
      %v1672 = vld [vmem:[%s1601 + $0x49] sm:$0xff]
      %v1673 = vld [vmem:[%s1601 + $0x51] sm:$0xff]
      %v1674 = vld [vmem:[%s1601 + $0x61] sm:$0xff]
      %v1675 = vld [vmem:[%s1601 + $0x69] sm:$0xff]
      %v1676 = vld [vmem:[%s1601 + $0x79] sm:$0xff]
      %v1677 = vld [vmem:[%s1601 + $0x81] sm:$0xff]
      %v1678 = vld [vmem:[%s1601 + $0x91] sm:$0xff]
      %v1679 = vld [vmem:[%s1601 + $0x99] sm:$0xff]
      %v1680 = vld [vmem:[%s1601 + $0xa9] sm:$0xff]
      %v1681 = vld [vmem:[%s1601 + $0xb1] sm:$0xff]
      %v1682 = vld [vmem:[%s1601 + $0xc1] sm:$0xff]
      %v1683 = vld [vmem:[%s1601 + $0xc9] sm:$0xff]
      %v1684 = vld [vmem:[%s1601 + $0xd9] sm:$0xff]
      %v1685 = vld [vmem:[%s1601 + $0xe1] sm:$0xff]
      %v1686 = vld [vmem:[%s1601 + $0xf1] sm:$0xff]
      %v1687 = vld [vmem:[%s1601 + $0xf9] sm:$0xff]
      %v1688 = vld [vmem:[%s1601 + $0x109] sm:$0xff]
      %v1689 = vld [vmem:[%s1601 + $0x111] sm:$0xff]
      %v1690 = vld [vmem:[%s1601 + $0x121] sm:$0xff]
      %v1691 = vld [vmem:[%s1601 + $0x129] sm:$0xff]
      %v1692 = vld [vmem:[%s1601 + $0x139] sm:$0xff]
      %v1693 = vld [vmem:[%s1601 + $0x141] sm:$0xff]
      %v1694 = vld [vmem:[%s1601 + $0x151] sm:$0xff]
      %v1695 = vld [vmem:[%s1601 + $0x159] sm:$0xff]
      %v1696 = vld [vmem:[%s1601 + $0x169] sm:$0xff]
      %v1697 = vld [vmem:[%s1601 + $0x171] sm:$0xff]
      %v1698 = vpack.c.bf16 %v1667, %v1666
      %v1699 = vpack.c.bf16 %v1669, %v1668
      %v1700 = vpack.c.bf16 %v1671, %v1670
      %v1701 = vpack.c.bf16 %v1673, %v1672
      %v1702 = vpack.c.bf16 %v1675, %v1674
      %v1703 = vpack.c.bf16 %v1677, %v1676
      %v1704 = vpack.c.bf16 %v1679, %v1678
      %v1705 = vpack.c.bf16 %v1681, %v1680
      %v1706 = vpack.c.bf16 %v1683, %v1682
      %v1707 = vpack.c.bf16 %v1685, %v1684
      %v1708 = vpack.c.bf16 %v1687, %v1686
      %v1709 = vpack.c.bf16 %v1689, %v1688
      %v1710 = vpack.c.bf16 %v1691, %v1690
      %v1711 = vpack.c.bf16 %v1693, %v1692
      %v1712 = vpack.c.bf16 %v1695, %v1694
      %v1713 = vpack.c.bf16 %v1697, %v1696
      %1714 = vst [vmem:[#allocation5 + $0x38] sm:$0xff] %v1698
      %1715 = vst [vmem:[#allocation5 + $0x80] sm:$0xff] %v1699
      %1716 = vst [vmem:[#allocation5 + $0xc8] sm:$0xff] %v1700
      %1717 = vst [vmem:[#allocation5 + $0x110] sm:$0xff] %v1701
      %1718 = vst [vmem:[#allocation5 + $0x158] sm:$0xff] %v1702
      %1719 = vst [vmem:[#allocation5 + $0x1a0] sm:$0xff] %v1703
      %1720 = vst [vmem:[#allocation5 + $0x1e8] sm:$0xff] %v1704
      %1721 = vst [vmem:[#allocation5 + $0x230] sm:$0xff] %v1705
      %1722 = vst [vmem:[#allocation5 + $0x278] sm:$0xff] %v1706
      %1723 = vst [vmem:[#allocation5 + $0x2c0] sm:$0xff] %v1707
      %1724 = vst [vmem:[#allocation5 + $0x308] sm:$0xff] %v1708
      %1725 = vst [vmem:[#allocation5 + $0x350] sm:$0xff] %v1709
      %1726 = vst [vmem:[#allocation5 + $0x398] sm:$0xff] %v1710
      %1727 = vst [vmem:[#allocation5 + $0x3e0] sm:$0xff] %v1711
      %1728 = vst [vmem:[#allocation5 + $0x428] sm:$0xff] %v1712
      %1729 = vst [vmem:[#allocation5 + $0x470] sm:$0xff] %v1713
      %v1730 = vld [vmem:[%s1601 + $0x2] sm:$0xff]
      %v1731 = vld [vmem:[%s1601 + $0xa] sm:$0xff]
      %v1732 = vld [vmem:[%s1601 + $0x1a] sm:$0xff]
      %v1733 = vld [vmem:[%s1601 + $0x22] sm:$0xff]
      %v1734 = vld [vmem:[%s1601 + $0x32] sm:$0xff]
      %v1735 = vld [vmem:[%s1601 + $0x3a] sm:$0xff]
      %v1736 = vld [vmem:[%s1601 + $0x4a] sm:$0xff]
      %v1737 = vld [vmem:[%s1601 + $0x52] sm:$0xff]
      %v1738 = vld [vmem:[%s1601 + $0x62] sm:$0xff]
      %v1739 = vld [vmem:[%s1601 + $0x6a] sm:$0xff]
      %v1740 = vld [vmem:[%s1601 + $0x7a] sm:$0xff]
      %v1741 = vld [vmem:[%s1601 + $0x82] sm:$0xff]
      %v1742 = vld [vmem:[%s1601 + $0x92] sm:$0xff]
      %v1743 = vld [vmem:[%s1601 + $0x9a] sm:$0xff]
      %v1744 = vld [vmem:[%s1601 + $0xaa] sm:$0xff]
      %v1745 = vld [vmem:[%s1601 + $0xb2] sm:$0xff]
      %v1746 = vld [vmem:[%s1601 + $0xc2] sm:$0xff]
      %v1747 = vld [vmem:[%s1601 + $0xca] sm:$0xff]
      %v1748 = vld [vmem:[%s1601 + $0xda] sm:$0xff]
      %v1749 = vld [vmem:[%s1601 + $0xe2] sm:$0xff]
      %v1750 = vld [vmem:[%s1601 + $0xf2] sm:$0xff]
      %v1751 = vld [vmem:[%s1601 + $0xfa] sm:$0xff]
      %v1752 = vld [vmem:[%s1601 + $0x10a] sm:$0xff]
      %v1753 = vld [vmem:[%s1601 + $0x112] sm:$0xff]
      %v1754 = vld [vmem:[%s1601 + $0x122] sm:$0xff]
      %v1755 = vld [vmem:[%s1601 + $0x12a] sm:$0xff]
      %v1756 = vld [vmem:[%s1601 + $0x13a] sm:$0xff]
      %v1757 = vld [vmem:[%s1601 + $0x142] sm:$0xff]
      %v1758 = vld [vmem:[%s1601 + $0x152] sm:$0xff]
      %v1759 = vld [vmem:[%s1601 + $0x15a] sm:$0xff]
      %v1760 = vld [vmem:[%s1601 + $0x16a] sm:$0xff]
      %v1761 = vld [vmem:[%s1601 + $0x172] sm:$0xff]
      %v1762 = vpack.c.bf16 %v1731, %v1730
      %v1763 = vpack.c.bf16 %v1733, %v1732
      %v1764 = vpack.c.bf16 %v1735, %v1734
      %v1765 = vpack.c.bf16 %v1737, %v1736
      %v1766 = vpack.c.bf16 %v1739, %v1738
      %v1767 = vpack.c.bf16 %v1741, %v1740
      %v1768 = vpack.c.bf16 %v1743, %v1742
      %v1769 = vpack.c.bf16 %v1745, %v1744
      %v1770 = vpack.c.bf16 %v1747, %v1746
      %v1771 = vpack.c.bf16 %v1749, %v1748
      %v1772 = vpack.c.bf16 %v1751, %v1750
      %v1773 = vpack.c.bf16 %v1753, %v1752
      %v1774 = vpack.c.bf16 %v1755, %v1754
      %v1775 = vpack.c.bf16 %v1757, %v1756
      %v1776 = vpack.c.bf16 %v1759, %v1758
      %v1777 = vpack.c.bf16 %v1761, %v1760
      %1778 = vst [vmem:[#allocation5 + $0x40] sm:$0xff] %v1762
      %1779 = vst [vmem:[#allocation5 + $0x88] sm:$0xff] %v1763
      %1780 = vst [vmem:[#allocation5 + $0xd0] sm:$0xff] %v1764
      %1781 = vst [vmem:[#allocation5 + $0x118] sm:$0xff] %v1765
      %1782 = vst [vmem:[#allocation5 + $0x160] sm:$0xff] %v1766
      %1783 = vst [vmem:[#allocation5 + $0x1a8] sm:$0xff] %v1767
      %1784 = vst [vmem:[#allocation5 + $0x1f0] sm:$0xff] %v1768
      %1785 = vst [vmem:[#allocation5 + $0x238] sm:$0xff] %v1769
      %1786 = vst [vmem:[#allocation5 + $0x280] sm:$0xff] %v1770
      %1787 = vst [vmem:[#allocation5 + $0x2c8] sm:$0xff] %v1771
      %1788 = vst [vmem:[#allocation5 + $0x310] sm:$0xff] %v1772
      %1789 = vst [vmem:[#allocation5 + $0x358] sm:$0xff] %v1773
      %1790 = vst [vmem:[#allocation5 + $0x3a0] sm:$0xff] %v1774
      %1791 = vst [vmem:[#allocation5 + $0x3e8] sm:$0xff] %v1775
      %1792 = vst [vmem:[#allocation5 + $0x430] sm:$0xff] %v1776
      %1793 = vst [vmem:[#allocation5 + $0x478] sm:$0xff] %v1777
      %v1794 = vld [vmem:[#allocation5] sm:$0xff]
      %v1795 = vld [vmem:[#allocation5 + $0x8] sm:$0xff]
      %v1796 = vld [vmem:[#allocation5 + $0x10] sm:$0xff]
      %v1797 = vld [vmem:[#allocation5 + $0x18] sm:$0xff]
      %v1798 = vld [vmem:[#allocation5 + $0x20] sm:$0xff]
      %v1799 = vld [vmem:[#allocation5 + $0x28] sm:$0xff]
      %v1800 = vld [vmem:[#allocation5 + $0x30] sm:$0xff]
      %v1801 = vld [vmem:[#allocation5 + $0x38] sm:$0xff]
      %v1802 = vld [vmem:[#allocation5 + $0x40] sm:$0xff]
      %v1803 = vld [vmem:[#allocation5 + $0x48] sm:$0xff]
      %v1804 = vld [vmem:[#allocation5 + $0x50] sm:$0xff]
      %v1805 = vld [vmem:[#allocation5 + $0x58] sm:$0xff]
      %v1806 = vld [vmem:[#allocation5 + $0x60] sm:$0xff]
      %v1807 = vld [vmem:[#allocation5 + $0x68] sm:$0xff]
      %v1808 = vld [vmem:[#allocation5 + $0x70] sm:$0xff]
      %v1809 = vld [vmem:[#allocation5 + $0x78] sm:$0xff]
      %v1810 = vld [vmem:[#allocation5 + $0x80] sm:$0xff]
      %v1811 = vld [vmem:[#allocation5 + $0x88] sm:$0xff]
      %v1812 = vld [vmem:[#allocation5 + $0x90] sm:$0xff]
      %v1813 = vld [vmem:[#allocation5 + $0x98] sm:$0xff]
      %v1814 = vld [vmem:[#allocation5 + $0xa0] sm:$0xff]
      %v1815 = vld [vmem:[#allocation5 + $0xa8] sm:$0xff]
      %v1816 = vld [vmem:[#allocation5 + $0xb0] sm:$0xff]
      %v1817 = vld [vmem:[#allocation5 + $0xb8] sm:$0xff]
      %v1818 = vld [vmem:[#allocation5 + $0xc0] sm:$0xff]
      %v1819 = vld [vmem:[#allocation5 + $0xc8] sm:$0xff]
      %v1820 = vld [vmem:[#allocation5 + $0xd0] sm:$0xff]
      %v1821 = vld [vmem:[#allocation5 + $0xd8] sm:$0xff]
      %v1822 = vld [vmem:[#allocation5 + $0xe0] sm:$0xff]
      %v1823 = vld [vmem:[#allocation5 + $0xe8] sm:$0xff]
      %v1824 = vld [vmem:[#allocation5 + $0xf0] sm:$0xff]
      %v1825 = vld [vmem:[#allocation5 + $0xf8] sm:$0xff]
      %v1826 = vld [vmem:[#allocation5 + $0x100] sm:$0xff]
      %v1827 = vld [vmem:[#allocation5 + $0x108] sm:$0xff]
      %v1828 = vld [vmem:[#allocation5 + $0x110] sm:$0xff]
      %v1829 = vld [vmem:[#allocation5 + $0x118] sm:$0xff]
      %v1830 = vld [vmem:[#allocation5 + $0x120] sm:$0xff]
      %v1831 = vld [vmem:[#allocation5 + $0x128] sm:$0xff]
      %v1832 = vld [vmem:[#allocation5 + $0x130] sm:$0xff]
      %v1833 = vld [vmem:[#allocation5 + $0x138] sm:$0xff]
      %v1834 = vld [vmem:[#allocation5 + $0x140] sm:$0xff]
      %v1835 = vld [vmem:[#allocation5 + $0x148] sm:$0xff]
      %v1836 = vld [vmem:[#allocation5 + $0x150] sm:$0xff]
      %v1837 = vld [vmem:[#allocation5 + $0x158] sm:$0xff]
      %v1838 = vld [vmem:[#allocation5 + $0x160] sm:$0xff]
      %v1839 = vld [vmem:[#allocation5 + $0x168] sm:$0xff]
      %v1840 = vld [vmem:[#allocation5 + $0x170] sm:$0xff]
      %v1841 = vld [vmem:[#allocation5 + $0x178] sm:$0xff]
      %v1842 = vld [vmem:[#allocation5 + $0x180] sm:$0xff]
      %v1843 = vld [vmem:[#allocation5 + $0x188] sm:$0xff]
      %v1844 = vld [vmem:[#allocation5 + $0x190] sm:$0xff]
      %v1845 = vld [vmem:[#allocation5 + $0x198] sm:$0xff]
      %v1846 = vld [vmem:[#allocation5 + $0x1a0] sm:$0xff]
      %v1847 = vld [vmem:[#allocation5 + $0x1a8] sm:$0xff]
      %v1848 = vld [vmem:[#allocation5 + $0x1b0] sm:$0xff]
      %v1849 = vld [vmem:[#allocation5 + $0x1b8] sm:$0xff]
      %v1850 = vld [vmem:[#allocation5 + $0x1c0] sm:$0xff]
      %v1851 = vld [vmem:[#allocation5 + $0x1c8] sm:$0xff]
      %v1852 = vld [vmem:[#allocation5 + $0x1d0] sm:$0xff]
      %v1853 = vld [vmem:[#allocation5 + $0x1d8] sm:$0xff]
      %v1854 = vld [vmem:[#allocation5 + $0x1e0] sm:$0xff]
      %v1855 = vld [vmem:[#allocation5 + $0x1e8] sm:$0xff]
      %v1856 = vld [vmem:[#allocation5 + $0x1f0] sm:$0xff]
      %v1857 = vld [vmem:[#allocation5 + $0x1f8] sm:$0xff]
      %v1858 = vld [vmem:[#allocation5 + $0x200] sm:$0xff]
      %v1859 = vld [vmem:[#allocation5 + $0x208] sm:$0xff]
      %v1860 = vld [vmem:[#allocation5 + $0x210] sm:$0xff]
      %v1861 = vld [vmem:[#allocation5 + $0x218] sm:$0xff]
      %v1862 = vld [vmem:[#allocation5 + $0x220] sm:$0xff]
      %v1863 = vld [vmem:[#allocation5 + $0x228] sm:$0xff]
      %v1864 = vld [vmem:[#allocation5 + $0x230] sm:$0xff]
      %v1865 = vld [vmem:[#allocation5 + $0x238] sm:$0xff]
      %v1866 = vld [vmem:[#allocation5 + $0x240] sm:$0xff]
      %v1867 = vld [vmem:[#allocation5 + $0x248] sm:$0xff]
      %v1868 = vld [vmem:[#allocation5 + $0x250] sm:$0xff]
      %v1869 = vld [vmem:[#allocation5 + $0x258] sm:$0xff]
      %v1870 = vld [vmem:[#allocation5 + $0x260] sm:$0xff]
      %v1871 = vld [vmem:[#allocation5 + $0x268] sm:$0xff]
      %v1872 = vld [vmem:[#allocation5 + $0x270] sm:$0xff]
      %v1873 = vld [vmem:[#allocation5 + $0x278] sm:$0xff]
      %v1874 = vld [vmem:[#allocation5 + $0x280] sm:$0xff]
      %v1875 = vld [vmem:[#allocation5 + $0x288] sm:$0xff]
      %v1876 = vld [vmem:[#allocation5 + $0x290] sm:$0xff]
      %v1877 = vld [vmem:[#allocation5 + $0x298] sm:$0xff]
      %v1878 = vld [vmem:[#allocation5 + $0x2a0] sm:$0xff]
      %v1879 = vld [vmem:[#allocation5 + $0x2a8] sm:$0xff]
      %v1880 = vld [vmem:[#allocation5 + $0x2b0] sm:$0xff]
      %v1881 = vld [vmem:[#allocation5 + $0x2b8] sm:$0xff]
      %v1882 = vld [vmem:[#allocation5 + $0x2c0] sm:$0xff]
      %v1883 = vld [vmem:[#allocation5 + $0x2c8] sm:$0xff]
      %v1884 = vld [vmem:[#allocation5 + $0x2d0] sm:$0xff]
      %v1885 = vld [vmem:[#allocation5 + $0x2d8] sm:$0xff]
      %v1886 = vld [vmem:[#allocation5 + $0x2e0] sm:$0xff]
      %v1887 = vld [vmem:[#allocation5 + $0x2e8] sm:$0xff]
      %v1888 = vld [vmem:[#allocation5 + $0x2f0] sm:$0xff]
      %v1889 = vld [vmem:[#allocation5 + $0x2f8] sm:$0xff]
      %v1890 = vld [vmem:[#allocation5 + $0x300] sm:$0xff]
      %v1891 = vld [vmem:[#allocation5 + $0x308] sm:$0xff]
      %v1892 = vld [vmem:[#allocation5 + $0x310] sm:$0xff]
      %v1893 = vld [vmem:[#allocation5 + $0x318] sm:$0xff]
      %v1894 = vld [vmem:[#allocation5 + $0x320] sm:$0xff]
      %v1895 = vld [vmem:[#allocation5 + $0x328] sm:$0xff]
      %v1896 = vld [vmem:[#allocation5 + $0x330] sm:$0xff]
      %v1897 = vld [vmem:[#allocation5 + $0x338] sm:$0xff]
      %v1898 = vld [vmem:[#allocation5 + $0x340] sm:$0xff]
      %v1899 = vld [vmem:[#allocation5 + $0x348] sm:$0xff]
      %v1900 = vld [vmem:[#allocation5 + $0x350] sm:$0xff]
      %v1901 = vld [vmem:[#allocation5 + $0x358] sm:$0xff]
      %v1902 = vld [vmem:[#allocation5 + $0x360] sm:$0xff]
      %v1903 = vld [vmem:[#allocation5 + $0x368] sm:$0xff]
      %v1904 = vld [vmem:[#allocation5 + $0x370] sm:$0xff]
      %v1905 = vld [vmem:[#allocation5 + $0x378] sm:$0xff]
      %v1906 = vld [vmem:[#allocation5 + $0x380] sm:$0xff]
      %v1907 = vld [vmem:[#allocation5 + $0x388] sm:$0xff]
      %v1908 = vld [vmem:[#allocation5 + $0x390] sm:$0xff]
      %v1909 = vld [vmem:[#allocation5 + $0x398] sm:$0xff]
      %v1910 = vld [vmem:[#allocation5 + $0x3a0] sm:$0xff]
      %v1911 = vld [vmem:[#allocation5 + $0x3a8] sm:$0xff]
      %v1912 = vld [vmem:[#allocation5 + $0x3b0] sm:$0xff]
      %v1913 = vld [vmem:[#allocation5 + $0x3b8] sm:$0xff]
      %v1914 = vld [vmem:[#allocation5 + $0x3c0] sm:$0xff]
      %v1915 = vld [vmem:[#allocation5 + $0x3c8] sm:$0xff]
      %v1916 = vld [vmem:[#allocation5 + $0x3d0] sm:$0xff]
      %v1917 = vld [vmem:[#allocation5 + $0x3d8] sm:$0xff]
      %v1918 = vld [vmem:[#allocation5 + $0x3e0] sm:$0xff]
      %v1919 = vld [vmem:[#allocation5 + $0x3e8] sm:$0xff]
      %v1920 = vld [vmem:[#allocation5 + $0x3f0] sm:$0xff]
      %v1921 = vld [vmem:[#allocation5 + $0x3f8] sm:$0xff]
      %v1922 = vld [vmem:[#allocation5 + $0x400] sm:$0xff]
      %v1923 = vld [vmem:[#allocation5 + $0x408] sm:$0xff]
      %v1924 = vld [vmem:[#allocation5 + $0x410] sm:$0xff]
      %v1925 = vld [vmem:[#allocation5 + $0x418] sm:$0xff]
      %v1926 = vld [vmem:[#allocation5 + $0x420] sm:$0xff]
      %v1927 = vld [vmem:[#allocation5 + $0x428] sm:$0xff]
      %v1928 = vld [vmem:[#allocation5 + $0x430] sm:$0xff]
      %v1929 = vld [vmem:[#allocation5 + $0x438] sm:$0xff]
      %v1930 = vld [vmem:[#allocation5 + $0x440] sm:$0xff]
      %v1931 = vld [vmem:[#allocation5 + $0x448] sm:$0xff]
      %v1932 = vld [vmem:[#allocation5 + $0x450] sm:$0xff]
      %v1933 = vld [vmem:[#allocation5 + $0x458] sm:$0xff]
      %v1934 = vld [vmem:[#allocation5 + $0x460] sm:$0xff]
      %v1935 = vld [vmem:[#allocation5 + $0x468] sm:$0xff]
      %v1936 = vld [vmem:[#allocation5 + $0x470] sm:$0xff]
      %v1937 = vld [vmem:[#allocation5 + $0x478] sm:$0xff]
      %v1938 = vld [vmem:[%s1] sm:$0xf]
      %v1939 = vld [vmem:[%s1 + $0x4] sm:$0xf]
      %v1940 = vld [vmem:[%s1 + $0x8] sm:$0xf]
      %v1941 = vld [vmem:[%s1 + $0xc] sm:$0xf]
      %v1942 = vld [vmem:[%s1 + $0x10] sm:$0xf]
      %v1943 = vld [vmem:[%s1 + $0x14] sm:$0xf]
      %v1944 = vld [vmem:[%s1 + $0x18] sm:$0xf]
      %v1945 = vld [vmem:[%s1 + $0x1c] sm:$0xf]
      %v1946 = vld [vmem:[%s1 + $0x20] sm:$0xf]
      %v1947 = vld [vmem:[%s1 + $0x24] sm:$0xf]
      %v1948 = vld [vmem:[%s1 + $0x28] sm:$0xf]
      %v1949 = vld [vmem:[%s1 + $0x2c] sm:$0xf]
      %v1950 = vld [vmem:[%s1 + $0x30] sm:$0xf]
      %v1951 = vld [vmem:[%s1 + $0x34] sm:$0xf]
      %v1952 = vld [vmem:[%s1 + $0x38] sm:$0xf]
      %v1953 = vld [vmem:[%s1 + $0x3c] sm:$0xf]
      %v1954 = vld [vmem:[%s1 + $0x40] sm:$0xf]
      %v1955 = vld [vmem:[%s1 + $0x44] sm:$0xf]
      %v1956 = vld [vmem:[%s1 + $0x48] sm:$0xf]
      %v1957 = vld [vmem:[%s1 + $0x4c] sm:$0xf]
      %v1958 = vld [vmem:[%s1 + $0x50] sm:$0xf]
      %v1959 = vld [vmem:[%s1 + $0x54] sm:$0xf]
      %v1960 = vld [vmem:[%s1 + $0x58] sm:$0xf]
      %v1961 = vld [vmem:[%s1 + $0x5c] sm:$0xf]
      %v1962 = vld [vmem:[%s1 + $0x60] sm:$0xf]
      %v1963 = vld [vmem:[%s1 + $0x64] sm:$0xf]
      %v1964 = vld [vmem:[%s1 + $0x68] sm:$0xf]
      %v1965 = vld [vmem:[%s1 + $0x6c] sm:$0xf]
      %v1966 = vld [vmem:[%s1 + $0x70] sm:$0xf]
      %v1967 = vld [vmem:[%s1 + $0x74] sm:$0xf]
      %v1968 = vld [vmem:[%s1 + $0x78] sm:$0xf]
      %v1969 = vld [vmem:[%s1 + $0x7c] sm:$0xf]
      %v1970 = vld [vmem:[%s1 + $0x80] sm:$0xf]
      %v1971 = vld [vmem:[%s1 + $0x84] sm:$0xf]
      %v1972 = vld [vmem:[%s1 + $0x88] sm:$0xf]
      %v1973 = vld [vmem:[%s1 + $0x8c] sm:$0xf]
      %v1974 = vld [vmem:[%s1 + $0x90] sm:$0xf]
      %v1975 = vld [vmem:[%s1 + $0x94] sm:$0xf]
      %v1976 = vld [vmem:[%s1 + $0x98] sm:$0xf]
      %v1977 = vld [vmem:[%s1 + $0x9c] sm:$0xf]
      %v1978 = vld [vmem:[%s1 + $0xa0] sm:$0xf]
      %v1979 = vld [vmem:[%s1 + $0xa4] sm:$0xf]
      %v1980 = vld [vmem:[%s1 + $0xa8] sm:$0xf]
      %v1981 = vld [vmem:[%s1 + $0xac] sm:$0xf]
      %v1982 = vld [vmem:[%s1 + $0xb0] sm:$0xf]
      %v1983 = vld [vmem:[%s1 + $0xb4] sm:$0xf]
      %v1984 = vld [vmem:[%s1 + $0xb8] sm:$0xf]
      %v1985 = vld [vmem:[%s1 + $0xbc] sm:$0xf]
      %v1986 = vld [vmem:[%s1 + $0xc0] sm:$0xf]
      %v1987 = vld [vmem:[%s1 + $0xc4] sm:$0xf]
      %v1988 = vld [vmem:[%s1 + $0xc8] sm:$0xf]
      %v1989 = vld [vmem:[%s1 + $0xcc] sm:$0xf]
      %v1990 = vld [vmem:[%s1 + $0xd0] sm:$0xf]
      %v1991 = vld [vmem:[%s1 + $0xd4] sm:$0xf]
      %v1992 = vld [vmem:[%s1 + $0xd8] sm:$0xf]
      %v1993 = vld [vmem:[%s1 + $0xdc] sm:$0xf]
      %v1994 = vld [vmem:[%s1 + $0xe0] sm:$0xf]
      %v1995 = vld [vmem:[%s1 + $0xe4] sm:$0xf]
      %v1996 = vld [vmem:[%s1 + $0xe8] sm:$0xf]
      %v1997 = vld [vmem:[%s1 + $0xec] sm:$0xf]
      %v1998 = vld [vmem:[%s1 + $0xf0] sm:$0xf]
      %v1999 = vld [vmem:[%s1 + $0xf4] sm:$0xf]
      %v2000 = vld [vmem:[%s1 + $0xf8] sm:$0xf]
      %v2001 = vld [vmem:[%s1 + $0xfc] sm:$0xf]
      %v2002 = vld [vmem:[%s1 + $0x100] sm:$0xf]
      %v2003 = vld [vmem:[%s1 + $0x104] sm:$0xf]
      %v2004 = vld [vmem:[%s1 + $0x108] sm:$0xf]
      %v2005 = vld [vmem:[%s1 + $0x10c] sm:$0xf]
      %v2006 = vld [vmem:[%s1 + $0x110] sm:$0xf]
      %v2007 = vld [vmem:[%s1 + $0x114] sm:$0xf]
      %v2008 = vld [vmem:[%s1 + $0x118] sm:$0xf]
      %v2009 = vld [vmem:[%s1 + $0x11c] sm:$0xf]
      %v2010 = vld [vmem:[%s1 + $0x120] sm:$0xf]
      %v2011 = vld [vmem:[%s1 + $0x124] sm:$0xf]
      %v2012 = vld [vmem:[%s1 + $0x128] sm:$0xf]
      %v2013 = vld [vmem:[%s1 + $0x12c] sm:$0xf]
      %v2014 = vld [vmem:[%s1 + $0x130] sm:$0xf]
      %v2015 = vld [vmem:[%s1 + $0x134] sm:$0xf]
      %v2016 = vld [vmem:[%s1 + $0x138] sm:$0xf]
      %v2017 = vld [vmem:[%s1 + $0x13c] sm:$0xf]
      %v2018 = vld [vmem:[%s1 + $0x140] sm:$0xf]
      %v2019 = vld [vmem:[%s1 + $0x144] sm:$0xf]
      %v2020 = vld [vmem:[%s1 + $0x148] sm:$0xf]
      %v2021 = vld [vmem:[%s1 + $0x14c] sm:$0xf]
      %v2022 = vld [vmem:[%s1 + $0x150] sm:$0xf]
      %v2023 = vld [vmem:[%s1 + $0x154] sm:$0xf]
      %v2024 = vld [vmem:[%s1 + $0x158] sm:$0xf]
      %v2025 = vld [vmem:[%s1 + $0x15c] sm:$0xf]
      %v2026 = vld [vmem:[%s1 + $0x160] sm:$0xf]
      %v2027 = vld [vmem:[%s1 + $0x164] sm:$0xf]
      %v2028 = vld [vmem:[%s1 + $0x168] sm:$0xf]
      %v2029 = vld [vmem:[%s1 + $0x16c] sm:$0xf]
      %v2030 = vld [vmem:[%s1 + $0x170] sm:$0xf]
      %v2031 = vld [vmem:[%s1 + $0x174] sm:$0xf]
      %v2032 = vld [vmem:[%s1 + $0x178] sm:$0xf]
      %v2033 = vld [vmem:[%s1 + $0x17c] sm:$0xf]
      %v2034 = vld [vmem:[%s1 + $0x180] sm:$0xf]
      %v2035 = vld [vmem:[%s1 + $0x184] sm:$0xf]
      %v2036 = vld [vmem:[%s1 + $0x188] sm:$0xf]
      %v2037 = vld [vmem:[%s1 + $0x18c] sm:$0xf]
      %v2038 = vld [vmem:[%s1 + $0x190] sm:$0xf]
      %v2039 = vld [vmem:[%s1 + $0x194] sm:$0xf]
      %v2040 = vld [vmem:[%s1 + $0x198] sm:$0xf]
      %v2041 = vld [vmem:[%s1 + $0x19c] sm:$0xf]
      %v2042 = vld [vmem:[%s1 + $0x1a0] sm:$0xf]
      %v2043 = vld [vmem:[%s1 + $0x1a4] sm:$0xf]
      %v2044 = vld [vmem:[%s1 + $0x1a8] sm:$0xf]
      %v2045 = vld [vmem:[%s1 + $0x1ac] sm:$0xf]
      %v2046 = vld [vmem:[%s1 + $0x1b0] sm:$0xf]
      %v2047 = vld [vmem:[%s1 + $0x1b4] sm:$0xf]
      %v2048 = vld [vmem:[%s1 + $0x1b8] sm:$0xf]
      %v2049 = vld [vmem:[%s1 + $0x1bc] sm:$0xf]
      %v2050 = vld [vmem:[%s1 + $0x1c0] sm:$0xf]
      %v2051 = vld [vmem:[%s1 + $0x1c4] sm:$0xf]
      %v2052 = vld [vmem:[%s1 + $0x1c8] sm:$0xf]
      %v2053 = vld [vmem:[%s1 + $0x1cc] sm:$0xf]
      %v2054 = vld [vmem:[%s1 + $0x1d0] sm:$0xf]
      %v2055 = vld [vmem:[%s1 + $0x1d4] sm:$0xf]
      %v2056 = vld [vmem:[%s1 + $0x1d8] sm:$0xf]
      %v2057 = vld [vmem:[%s1 + $0x1dc] sm:$0xf]
      %v2058 = vld [vmem:[%s1 + $0x1e0] sm:$0xf]
      %v2059 = vld [vmem:[%s1 + $0x1e4] sm:$0xf]
      %v2060 = vld [vmem:[%s1 + $0x1e8] sm:$0xf]
      %v2061 = vld [vmem:[%s1 + $0x1ec] sm:$0xf]
      %v2062 = vld [vmem:[%s1 + $0x1f0] sm:$0xf]
      %v2063 = vld [vmem:[%s1 + $0x1f4] sm:$0xf]
      %v2064 = vld [vmem:[%s1 + $0x1f8] sm:$0xf]
      %v2065 = vld [vmem:[%s1 + $0x1fc] sm:$0xf]
      %v2066 = vld [vmem:[%s1 + $0x200] sm:$0xf]
      %v2067 = vld [vmem:[%s1 + $0x204] sm:$0xf]
      %v2068 = vld [vmem:[%s1 + $0x208] sm:$0xf]
      %v2069 = vld [vmem:[%s1 + $0x20c] sm:$0xf]
      %v2070 = vld [vmem:[%s1 + $0x210] sm:$0xf]
      %v2071 = vld [vmem:[%s1 + $0x214] sm:$0xf]
      %v2072 = vld [vmem:[%s1 + $0x218] sm:$0xf]
      %v2073 = vld [vmem:[%s1 + $0x21c] sm:$0xf]
      %v2074 = vld [vmem:[%s1 + $0x220] sm:$0xf]
      %v2075 = vld [vmem:[%s1 + $0x224] sm:$0xf]
      %v2076 = vld [vmem:[%s1 + $0x228] sm:$0xf]
      %v2077 = vld [vmem:[%s1 + $0x22c] sm:$0xf]
      %v2078 = vld [vmem:[%s1 + $0x230] sm:$0xf]
      %v2079 = vld [vmem:[%s1 + $0x234] sm:$0xf]
      %v2080 = vld [vmem:[%s1 + $0x238] sm:$0xf]
      %v2081 = vld [vmem:[%s1 + $0x23c] sm:$0xf]
      %v2082 = vld [vmem:[%s2] sm:$0x1]
      %v2084 = vlaneseq
      %v2085 = vshrl.u32 %v2084, 7
      %v2086 = vsub.s32 0, %v2085
      %v2087 = vrot.slane %v2082, %v2086
      %v2233 = vunpack.c.l.b16 %v1938
      %v2234 = vunpack.c.l.b16 %v1939
      %v2235 = vunpack.c.l.b16 %v1940
      %v2236 = vunpack.c.l.b16 %v1941
      %v2237 = vunpack.c.l.b16 %v1942
      %v2238 = vunpack.c.l.b16 %v1943
      %v2239 = vunpack.c.l.b16 %v1944
      %v2240 = vunpack.c.l.b16 %v1945
      %v2241 = vunpack.c.l.b16 %v1946
      %v2242 = vunpack.c.l.b16 %v1947
      %v2243 = vunpack.c.l.b16 %v1948
      %v2244 = vunpack.c.l.b16 %v1949
      %v2245 = vunpack.c.l.b16 %v1950
      %v2246 = vunpack.c.l.b16 %v1951
      %v2247 = vunpack.c.l.b16 %v1952
      %v2248 = vunpack.c.l.b16 %v1953
      %v2249 = vunpack.c.l.b16 %v1954
      %v2250 = vunpack.c.l.b16 %v1955
      %v2251 = vunpack.c.l.b16 %v1956
      %v2252 = vunpack.c.l.b16 %v1957
      %v2253 = vunpack.c.l.b16 %v1958
      %v2254 = vunpack.c.l.b16 %v1959
      %v2255 = vunpack.c.l.b16 %v1960
      %v2256 = vunpack.c.l.b16 %v1961
      %v2257 = vunpack.c.l.b16 %v1962
      %v2258 = vunpack.c.l.b16 %v1963
      %v2259 = vunpack.c.l.b16 %v1964
      %v2260 = vunpack.c.l.b16 %v1965
      %v2261 = vunpack.c.l.b16 %v1966
      %v2262 = vunpack.c.l.b16 %v1967
      %v2263 = vunpack.c.l.b16 %v1968
      %v2264 = vunpack.c.l.b16 %v1969
      %v2265 = vunpack.c.l.b16 %v1970
      %v2266 = vunpack.c.l.b16 %v1971
      %v2267 = vunpack.c.l.b16 %v1972
      %v2268 = vunpack.c.l.b16 %v1973
      %v2269 = vunpack.c.l.b16 %v1974
      %v2270 = vunpack.c.l.b16 %v1975
      %v2271 = vunpack.c.l.b16 %v1976
      %v2272 = vunpack.c.l.b16 %v1977
      %v2273 = vunpack.c.l.b16 %v1978
      %v2274 = vunpack.c.l.b16 %v1979
      %v2275 = vunpack.c.l.b16 %v1980
      %v2276 = vunpack.c.l.b16 %v1981
      %v2277 = vunpack.c.l.b16 %v1982
      %v2278 = vunpack.c.l.b16 %v1983
      %v2279 = vunpack.c.l.b16 %v1984
      %v2280 = vunpack.c.l.b16 %v1985
      %v2281 = vunpack.c.l.b16 %v1986
      %v2282 = vunpack.c.l.b16 %v1987
      %v2283 = vunpack.c.l.b16 %v1988
      %v2284 = vunpack.c.l.b16 %v1989
      %v2285 = vunpack.c.l.b16 %v1990
      %v2286 = vunpack.c.l.b16 %v1991
      %v2287 = vunpack.c.l.b16 %v1992
      %v2288 = vunpack.c.l.b16 %v1993
      %v2289 = vunpack.c.l.b16 %v1994
      %v2290 = vunpack.c.l.b16 %v1995
      %v2291 = vunpack.c.l.b16 %v1996
      %v2292 = vunpack.c.l.b16 %v1997
      %v2293 = vunpack.c.l.b16 %v1998
      %v2294 = vunpack.c.l.b16 %v1999
      %v2295 = vunpack.c.l.b16 %v2000
      %v2296 = vunpack.c.l.b16 %v2001
      %v2297 = vunpack.c.l.b16 %v2002
      %v2298 = vunpack.c.l.b16 %v2003
      %v2299 = vunpack.c.l.b16 %v2004
      %v2300 = vunpack.c.l.b16 %v2005
      %v2301 = vunpack.c.l.b16 %v2006
      %v2302 = vunpack.c.l.b16 %v2007
      %v2303 = vunpack.c.l.b16 %v2008
      %v2304 = vunpack.c.l.b16 %v2009
      %v2305 = vunpack.c.l.b16 %v2010
      %v2306 = vunpack.c.l.b16 %v2011
      %v2307 = vunpack.c.l.b16 %v2012
      %v2308 = vunpack.c.l.b16 %v2013
      %v2309 = vunpack.c.l.b16 %v2014
      %v2310 = vunpack.c.l.b16 %v2015
      %v2311 = vunpack.c.l.b16 %v2016
      %v2312 = vunpack.c.l.b16 %v2017
      %v2313 = vunpack.c.l.b16 %v2018
      %v2314 = vunpack.c.l.b16 %v2019
      %v2315 = vunpack.c.l.b16 %v2020
      %v2316 = vunpack.c.l.b16 %v2021
      %v2317 = vunpack.c.l.b16 %v2022
      %v2318 = vunpack.c.l.b16 %v2023
      %v2319 = vunpack.c.l.b16 %v2024
      %v2320 = vunpack.c.l.b16 %v2025
      %v2321 = vunpack.c.l.b16 %v2026
      %v2322 = vunpack.c.l.b16 %v2027
      %v2323 = vunpack.c.l.b16 %v2028
      %v2324 = vunpack.c.l.b16 %v2029
      %v2325 = vunpack.c.l.b16 %v2030
      %v2326 = vunpack.c.l.b16 %v2031
      %v2327 = vunpack.c.l.b16 %v2032
      %v2328 = vunpack.c.l.b16 %v2033
      %v2329 = vunpack.c.l.b16 %v2034
      %v2330 = vunpack.c.l.b16 %v2035
      %v2331 = vunpack.c.l.b16 %v2036
      %v2332 = vunpack.c.l.b16 %v2037
      %v2333 = vunpack.c.l.b16 %v2038
      %v2334 = vunpack.c.l.b16 %v2039
      %v2335 = vunpack.c.l.b16 %v2040
      %v2336 = vunpack.c.l.b16 %v2041
      %v2337 = vunpack.c.l.b16 %v2042
      %v2338 = vunpack.c.l.b16 %v2043
      %v2339 = vunpack.c.l.b16 %v2044
      %v2340 = vunpack.c.l.b16 %v2045
      %v2341 = vunpack.c.l.b16 %v2046
      %v2342 = vunpack.c.l.b16 %v2047
      %v2343 = vunpack.c.l.b16 %v2048
      %v2344 = vunpack.c.l.b16 %v2049
      %v2345 = vunpack.c.l.b16 %v2050
      %v2346 = vunpack.c.l.b16 %v2051
      %v2347 = vunpack.c.l.b16 %v2052
      %v2348 = vunpack.c.l.b16 %v2053
      %v2349 = vunpack.c.l.b16 %v2054
      %v2350 = vunpack.c.l.b16 %v2055
      %v2351 = vunpack.c.l.b16 %v2056
      %v2352 = vunpack.c.l.b16 %v2057
      %v2353 = vunpack.c.l.b16 %v2058
      %v2354 = vunpack.c.l.b16 %v2059
      %v2355 = vunpack.c.l.b16 %v2060
      %v2356 = vunpack.c.l.b16 %v2061
      %v2357 = vunpack.c.l.b16 %v2062
      %v2358 = vunpack.c.l.b16 %v2063
      %v2359 = vunpack.c.l.b16 %v2064
      %v2360 = vunpack.c.l.b16 %v2065
      %v2361 = vunpack.c.l.b16 %v2066
      %v2362 = vunpack.c.l.b16 %v2067
      %v2363 = vunpack.c.l.b16 %v2068
      %v2364 = vunpack.c.l.b16 %v2069
      %v2365 = vunpack.c.l.b16 %v2070
      %v2366 = vunpack.c.l.b16 %v2071
      %v2367 = vunpack.c.l.b16 %v2072
      %v2368 = vunpack.c.l.b16 %v2073
      %v2369 = vunpack.c.l.b16 %v2074
      %v2370 = vunpack.c.l.b16 %v2075
      %v2371 = vunpack.c.l.b16 %v2076
      %v2372 = vunpack.c.l.b16 %v2077
      %v2373 = vunpack.c.l.b16 %v2078
      %v2374 = vunpack.c.l.b16 %v2079
      %v2375 = vunpack.c.l.b16 %v2080
      %v2376 = vunpack.c.l.b16 %v2081
      %v2377 = vpack.c.b16 %v2234, %v2233
      %v2378 = vpack.c.b16 %v2236, %v2235
      %v2379 = vpack.c.b16 %v2238, %v2237
      %v2380 = vpack.c.b16 %v2240, %v2239
      %v2381 = vpack.c.b16 %v2242, %v2241
      %v2382 = vpack.c.b16 %v2244, %v2243
      %v2383 = vpack.c.b16 %v2246, %v2245
      %v2384 = vpack.c.b16 %v2248, %v2247
      %v2385 = vpack.c.b16 %v2250, %v2249
      %v2386 = vpack.c.b16 %v2252, %v2251
      %v2387 = vpack.c.b16 %v2254, %v2253
      %v2388 = vpack.c.b16 %v2256, %v2255
      %v2389 = vpack.c.b16 %v2258, %v2257
      %v2390 = vpack.c.b16 %v2260, %v2259
      %v2391 = vpack.c.b16 %v2262, %v2261
      %v2392 = vpack.c.b16 %v2264, %v2263
      %v2393 = vpack.c.b16 %v2266, %v2265
      %v2394 = vpack.c.b16 %v2268, %v2267
      %v2395 = vpack.c.b16 %v2270, %v2269
      %v2396 = vpack.c.b16 %v2272, %v2271
      %v2397 = vpack.c.b16 %v2274, %v2273
      %v2398 = vpack.c.b16 %v2276, %v2275
      %v2399 = vpack.c.b16 %v2278, %v2277
      %v2400 = vpack.c.b16 %v2280, %v2279
      %v2401 = vpack.c.b16 %v2282, %v2281
      %v2402 = vpack.c.b16 %v2284, %v2283
      %v2403 = vpack.c.b16 %v2286, %v2285
      %v2404 = vpack.c.b16 %v2288, %v2287
      %v2405 = vpack.c.b16 %v2290, %v2289
      %v2406 = vpack.c.b16 %v2292, %v2291
      %v2407 = vpack.c.b16 %v2294, %v2293
      %v2408 = vpack.c.b16 %v2296, %v2295
      %v2409 = vpack.c.b16 %v2298, %v2297
      %v2410 = vpack.c.b16 %v2300, %v2299
      %v2411 = vpack.c.b16 %v2302, %v2301
      %v2412 = vpack.c.b16 %v2304, %v2303
      %v2413 = vpack.c.b16 %v2306, %v2305
      %v2414 = vpack.c.b16 %v2308, %v2307
      %v2415 = vpack.c.b16 %v2310, %v2309
      %v2416 = vpack.c.b16 %v2312, %v2311
      %v2417 = vpack.c.b16 %v2314, %v2313
      %v2418 = vpack.c.b16 %v2316, %v2315
      %v2419 = vpack.c.b16 %v2318, %v2317
      %v2420 = vpack.c.b16 %v2320, %v2319
      %v2421 = vpack.c.b16 %v2322, %v2321
      %v2422 = vpack.c.b16 %v2324, %v2323
      %v2423 = vpack.c.b16 %v2326, %v2325
      %v2424 = vpack.c.b16 %v2328, %v2327
      %v2425 = vpack.c.b16 %v2330, %v2329
      %v2426 = vpack.c.b16 %v2332, %v2331
      %v2427 = vpack.c.b16 %v2334, %v2333
      %v2428 = vpack.c.b16 %v2336, %v2335
      %v2429 = vpack.c.b16 %v2338, %v2337
      %v2430 = vpack.c.b16 %v2340, %v2339
      %v2431 = vpack.c.b16 %v2342, %v2341
      %v2432 = vpack.c.b16 %v2344, %v2343
      %v2433 = vpack.c.b16 %v2346, %v2345
      %v2434 = vpack.c.b16 %v2348, %v2347
      %v2435 = vpack.c.b16 %v2350, %v2349
      %v2436 = vpack.c.b16 %v2352, %v2351
      %v2437 = vpack.c.b16 %v2354, %v2353
      %v2438 = vpack.c.b16 %v2356, %v2355
      %v2439 = vpack.c.b16 %v2358, %v2357
      %v2440 = vpack.c.b16 %v2360, %v2359
      %v2441 = vpack.c.b16 %v2362, %v2361
      %v2442 = vpack.c.b16 %v2364, %v2363
      %v2443 = vpack.c.b16 %v2366, %v2365
      %v2444 = vpack.c.b16 %v2368, %v2367
      %v2445 = vpack.c.b16 %v2370, %v2369
      %v2446 = vpack.c.b16 %v2372, %v2371
      %v2447 = vpack.c.b16 %v2374, %v2373
      %v2448 = vpack.c.b16 %v2376, %v2375
      %2521 = vmatprep.subr.bf16.mxu0 0
      %2522 = vmatpush1.bf16.msra.mxu0 %v2377
      %2523 = vmatprep.subr.bf16.mxu0 0
      %2524 = vmatpush1.bf16.msra.mxu0 %v2378
      %2525 = vmatprep.subr.bf16.mxu0 0
      %2526 = vmatpush1.bf16.msra.mxu0 %v2379
      %2527 = vmatprep.subr.bf16.mxu0 0
      %2528 = vmatpush1.bf16.msra.mxu0 %v2380
      %2529 = vmatprep.subr.bf16.mxu0 0
      %2530 = vmatpush1.bf16.msra.mxu0 %v2381
      %2531 = vmatprep.subr.bf16.mxu0 0
      %2532 = vmatpush1.bf16.msra.mxu0 %v2382
      %2533 = vmatprep.subr.bf16.mxu0 0
      %2534 = vmatpush1.bf16.msra.mxu0 %v2383
      %2535 = vmatprep.subr.bf16.mxu0 0
      %2536 = vmatpush1.bf16.msra.mxu0 %v2384
      %2537 = vmatprep.subr.bf16.mxu0 0
      %2538 = vmatpush1.bf16.msra.mxu0 %v2385
      %2539 = vmatprep.subr.bf16.mxu0 0
      %2540 = vmatpush1.bf16.msra.mxu0 %v2386
      %2541 = vmatprep.subr.bf16.mxu0 0
      %2542 = vmatpush1.bf16.msra.mxu0 %v2387
      %2543 = vmatprep.subr.bf16.mxu0 0
      %2544 = vmatpush1.bf16.msra.mxu0 %v2388
      %2545 = vmatprep.subr.bf16.mxu0 0
      %2546 = vmatpush1.bf16.msra.mxu0 %v2389
      %2547 = vmatprep.subr.bf16.mxu0 0
      %2548 = vmatpush1.bf16.msra.mxu0 %v2390
      %2549 = vmatprep.subr.bf16.mxu0 0
      %2550 = vmatpush1.bf16.msra.mxu0 %v2391
      %2551 = vmatprep.subr.bf16.mxu0 0
      %2552 = vmatpush1.bf16.msra.mxu0 %v2392
      %2553 = vmatprep.mubr.bf16.mxu0 %v1795
      %2554 = vmatmul.mubr.bf16.gmra.mrb[0].mxu0 %v1794
      %v2555 = vpop.f32.mrb[0].mxu0
      %v2556 = vadd.f32 %v2087, %v2555
      %v2557 = vpop.f32.mrb[0].mxu0
      %v2558 = vpop.f32.mrb[0].mxu0
      %v2559 = vadd.f32 %v2087, %v2558
      %v2560 = vpop.f32.mrb[0].mxu0
      %2561 = vmatprep.mubr.bf16.mxu0 %v1804
      %2562 = vmatmul.mubr.bf16.gmra.mrb[0].mxu0 %v1803
      %v2563 = vpop.f32.mrb[0].mxu0
      %v2564 = vadd.f32 %v2087, %v2563
      %v2565 = vpop.f32.mrb[0].mxu0
      %v2566 = vpop.f32.mrb[0].mxu0
      %v2567 = vadd.f32 %v2087, %v2566
      %v2568 = vpop.f32.mrb[0].mxu0
      %2569 = vmatprep.mubr.bf16.mxu0 %v1813
      %2570 = vmatmul.mubr.bf16.gmra.mrb[0].mxu0 %v1812
      %v2571 = vpop.f32.mrb[0].mxu0
      %v2572 = vadd.f32 %v2087, %v2571
      %v2573 = vpop.f32.mrb[0].mxu0
      %v2574 = vpop.f32.mrb[0].mxu0
      %v2575 = vadd.f32 %v2087, %v2574
      %v2576 = vpop.f32.mrb[0].mxu0
      %2577 = vmatprep.mubr.bf16.mxu0 %v1822
      %2578 = vmatmul.mubr.bf16.gmra.mrb[0].mxu0 %v1821
      %v2579 = vpop.f32.mrb[0].mxu0
      %v2580 = vadd.f32 %v2087, %v2579
      %v2581 = vpop.f32.mrb[0].mxu0
      %v2582 = vpop.f32.mrb[0].mxu0
      %v2583 = vadd.f32 %v2087, %v2582
      %v2584 = vpop.f32.mrb[0].mxu0
      %2585 = vmatprep.mubr.bf16.mxu0 %v1831
      %2586 = vmatmul.mubr.bf16.gmra.mrb[0].mxu0 %v1830
      %v2587 = vpop.f32.mrb[0].mxu0
      %v2588 = vadd.f32 %v2087, %v2587
      %v2589 = vpop.f32.mrb[0].mxu0
      %v2590 = vpop.f32.mrb[0].mxu0
      %v2591 = vadd.f32 %v2087, %v2590
      %v2592 = vpop.f32.mrb[0].mxu0
      %2593 = vmatprep.mubr.bf16.mxu0 %v1840
      %2594 = vmatmul.mubr.bf16.gmra.mrb[0].mxu0 %v1839
      %v2595 = vpop.f32.mrb[0].mxu0
      %v2596 = vadd.f32 %v2087, %v2595
      %v2597 = vpop.f32.mrb[0].mxu0
      %v2598 = vpop.f32.mrb[0].mxu0
      %v2599 = vadd.f32 %v2087, %v2598
      %v2600 = vpop.f32.mrb[0].mxu0
      %2601 = vmatprep.mubr.bf16.mxu0 %v1849
      %2602 = vmatmul.mubr.bf16.gmra.mrb[0].mxu0 %v1848
      %v2603 = vpop.f32.mrb[0].mxu0
      %v2604 = vadd.f32 %v2087, %v2603
      %v2605 = vpop.f32.mrb[0].mxu0
      %v2606 = vpop.f32.mrb[0].mxu0
      %v2607 = vadd.f32 %v2087, %v2606
      %v2608 = vpop.f32.mrb[0].mxu0
      %2609 = vmatprep.mubr.bf16.mxu0 %v1858
      %2610 = vmatmul.mubr.bf16.gmra.mrb[0].mxu0 %v1857
      %v2611 = vpop.f32.mrb[0].mxu0
      %v2612 = vadd.f32 %v2087, %v2611
      %v2613 = vpop.f32.mrb[0].mxu0
      %v2614 = vpop.f32.mrb[0].mxu0
      %v2615 = vadd.f32 %v2087, %v2614
      %v2616 = vpop.f32.mrb[0].mxu0
      %2617 = vmatprep.mubr.bf16.mxu0 %v1867
      %2618 = vmatmul.mubr.bf16.gmra.mrb[0].mxu0 %v1866
      %v2619 = vpop.f32.mrb[0].mxu0
      %v2620 = vadd.f32 %v2087, %v2619
      %v2621 = vpop.f32.mrb[0].mxu0
      %v2622 = vpop.f32.mrb[0].mxu0
      %v2623 = vadd.f32 %v2087, %v2622
      %v2624 = vpop.f32.mrb[0].mxu0
      %2625 = vmatprep.mubr.bf16.mxu0 %v1876
      %2626 = vmatmul.mubr.bf16.gmra.mrb[0].mxu0 %v1875
      %v2627 = vpop.f32.mrb[0].mxu0
      %v2628 = vadd.f32 %v2087, %v2627
      %v2629 = vpop.f32.mrb[0].mxu0
      %v2630 = vpop.f32.mrb[0].mxu0
      %v2631 = vadd.f32 %v2087, %v2630
      %v2632 = vpop.f32.mrb[0].mxu0
      %2633 = vmatprep.mubr.bf16.mxu0 %v1885
      %2634 = vmatmul.mubr.bf16.gmra.mrb[0].mxu0 %v1884
      %v2635 = vpop.f32.mrb[0].mxu0
      %v2636 = vadd.f32 %v2087, %v2635
      %v2637 = vpop.f32.mrb[0].mxu0
      %v2638 = vpop.f32.mrb[0].mxu0
      %v2639 = vadd.f32 %v2087, %v2638
      %v2640 = vpop.f32.mrb[0].mxu0
      %2641 = vmatprep.mubr.bf16.mxu0 %v1894
      %2642 = vmatmul.mubr.bf16.gmra.mrb[0].mxu0 %v1893
      %v2643 = vpop.f32.mrb[0].mxu0
      %v2644 = vadd.f32 %v2087, %v2643
      %v2645 = vpop.f32.mrb[0].mxu0
      %v2646 = vpop.f32.mrb[0].mxu0
      %v2647 = vadd.f32 %v2087, %v2646
      %v2648 = vpop.f32.mrb[0].mxu0
      %2649 = vmatprep.mubr.bf16.mxu0 %v1903
      %2650 = vmatmul.mubr.bf16.gmra.mrb[0].mxu0 %v1902
      %v2651 = vpop.f32.mrb[0].mxu0
      %v2652 = vadd.f32 %v2087, %v2651
      %v2653 = vpop.f32.mrb[0].mxu0
      %v2654 = vpop.f32.mrb[0].mxu0
      %v2655 = vadd.f32 %v2087, %v2654
      %v2656 = vpop.f32.mrb[0].mxu0
      %2657 = vmatprep.mubr.bf16.mxu0 %v1912
      %2658 = vmatmul.mubr.bf16.gmra.mrb[0].mxu0 %v1911
      %v2659 = vpop.f32.mrb[0].mxu0
      %v2660 = vadd.f32 %v2087, %v2659
      %v2661 = vpop.f32.mrb[0].mxu0
      %v2662 = vpop.f32.mrb[0].mxu0
      %v2663 = vadd.f32 %v2087, %v2662
      %v2664 = vpop.f32.mrb[0].mxu0
      %2665 = vmatprep.mubr.bf16.mxu0 %v1921
      %2666 = vmatmul.mubr.bf16.gmra.mrb[0].mxu0 %v1920
      %v2667 = vpop.f32.mrb[0].mxu0
      %v2668 = vadd.f32 %v2087, %v2667
      %v2669 = vpop.f32.mrb[0].mxu0
      %v2670 = vpop.f32.mrb[0].mxu0
      %v2671 = vadd.f32 %v2087, %v2670
      %v2672 = vpop.f32.mrb[0].mxu0
      %2673 = vmatprep.mubr.bf16.mxu0 %v1930
      %2674 = vmatmul.mubr.bf16.gmra.mrb[0].mxu0 %v1929
      %v2675 = vpop.f32.mrb[0].mxu0
      %v2676 = vadd.f32 %v2087, %v2675
      %v2677 = vpop.f32.mrb[0].mxu0
      %v2678 = vpop.f32.mrb[0].mxu0
      %v2679 = vadd.f32 %v2087, %v2678
      %v2680 = vpop.f32.mrb[0].mxu0
      %2681 = vdwg.mxu0
      %2682 = vmatprep.subr.bf16.mxu0 0
      %2683 = vmatpush1.bf16.msra.mxu0 %v2393
      %2684 = vmatprep.subr.bf16.mxu0 0
      %2685 = vmatpush1.bf16.msra.mxu0 %v2394
      %2686 = vmatprep.subr.bf16.mxu0 0
      %2687 = vmatpush1.bf16.msra.mxu0 %v2395
      %2688 = vmatprep.subr.bf16.mxu0 0
      %2689 = vmatpush1.bf16.msra.mxu0 %v2396
      %2690 = vmatprep.subr.bf16.mxu0 0
      %2691 = vmatpush1.bf16.msra.mxu0 %v2397
      %2692 = vmatprep.subr.bf16.mxu0 0
      %2693 = vmatpush1.bf16.msra.mxu0 %v2398
      %2694 = vmatprep.subr.bf16.mxu0 0
      %2695 = vmatpush1.bf16.msra.mxu0 %v2399
      %2696 = vmatprep.subr.bf16.mxu0 0
      %2697 = vmatpush1.bf16.msra.mxu0 %v2400
      %2698 = vmatprep.subr.bf16.mxu0 0
      %2699 = vmatpush1.bf16.msra.mxu0 %v2401
      %2700 = vmatprep.subr.bf16.mxu0 0
      %2701 = vmatpush1.bf16.msra.mxu0 %v2402
      %2702 = vmatprep.subr.bf16.mxu0 0
      %2703 = vmatpush1.bf16.msra.mxu0 %v2403
      %2704 = vmatprep.subr.bf16.mxu0 0
      %2705 = vmatpush1.bf16.msra.mxu0 %v2404
      %2706 = vmatprep.subr.bf16.mxu0 0
      %2707 = vmatpush1.bf16.msra.mxu0 %v2405
      %2708 = vmatprep.subr.bf16.mxu0 0
      %2709 = vmatpush1.bf16.msra.mxu0 %v2406
      %2710 = vmatprep.subr.bf16.mxu0 0
      %2711 = vmatpush1.bf16.msra.mxu0 %v2407
      %2712 = vmatprep.subr.bf16.mxu0 0
      %2713 = vmatpush1.bf16.msra.mxu0 %v2408
      %2714 = vmatprep.mubr.bf16.mxu0 %v1797
      %2715 = vmatmul.mubr.bf16.gmra.mrb[0].mxu0 %v1796
      %v2716 = vpop.f32.mrb[0].mxu0
      %v2717 = vadd.f32 %v2556, %v2716
      %v2718 = vpop.f32.mrb[0].mxu0
      %v2719 = vpop.f32.mrb[0].mxu0
      %v2720 = vadd.f32 %v2559, %v2719
      %v2721 = vpop.f32.mrb[0].mxu0
      %2722 = vmatprep.mubr.bf16.mxu0 %v1806
      %2723 = vmatmul.mubr.bf16.gmra.mrb[0].mxu0 %v1805
      %v2724 = vpop.f32.mrb[0].mxu0
      %v2725 = vadd.f32 %v2564, %v2724
      %v2726 = vpop.f32.mrb[0].mxu0
      %v2727 = vpop.f32.mrb[0].mxu0
      %v2728 = vadd.f32 %v2567, %v2727
      %v2729 = vpop.f32.mrb[0].mxu0
      %2730 = vmatprep.mubr.bf16.mxu0 %v1815
      %2731 = vmatmul.mubr.bf16.gmra.mrb[0].mxu0 %v1814
      %v2732 = vpop.f32.mrb[0].mxu0
      %v2733 = vadd.f32 %v2572, %v2732
      %v2734 = vpop.f32.mrb[0].mxu0
      %v2735 = vpop.f32.mrb[0].mxu0
      %v2736 = vadd.f32 %v2575, %v2735
      %v2737 = vpop.f32.mrb[0].mxu0
      %2738 = vmatprep.mubr.bf16.mxu0 %v1824
      %2739 = vmatmul.mubr.bf16.gmra.mrb[0].mxu0 %v1823
      %v2740 = vpop.f32.mrb[0].mxu0
      %v2741 = vadd.f32 %v2580, %v2740
      %v2742 = vpop.f32.mrb[0].mxu0
      %v2743 = vpop.f32.mrb[0].mxu0
      %v2744 = vadd.f32 %v2583, %v2743
      %v2745 = vpop.f32.mrb[0].mxu0
      %2746 = vmatprep.mubr.bf16.mxu0 %v1833
      %2747 = vmatmul.mubr.bf16.gmra.mrb[0].mxu0 %v1832
      %v2748 = vpop.f32.mrb[0].mxu0
      %v2749 = vadd.f32 %v2588, %v2748
      %v2750 = vpop.f32.mrb[0].mxu0
      %v2751 = vpop.f32.mrb[0].mxu0
      %v2752 = vadd.f32 %v2591, %v2751
      %v2753 = vpop.f32.mrb[0].mxu0
      %2754 = vmatprep.mubr.bf16.mxu0 %v1842
      %2755 = vmatmul.mubr.bf16.gmra.mrb[0].mxu0 %v1841
      %v2756 = vpop.f32.mrb[0].mxu0
      %v2757 = vadd.f32 %v2596, %v2756
      %v2758 = vpop.f32.mrb[0].mxu0
      %v2759 = vpop.f32.mrb[0].mxu0
      %v2760 = vadd.f32 %v2599, %v2759
      %v2761 = vpop.f32.mrb[0].mxu0
      %2762 = vmatprep.mubr.bf16.mxu0 %v1851
      %2763 = vmatmul.mubr.bf16.gmra.mrb[0].mxu0 %v1850
      %v2764 = vpop.f32.mrb[0].mxu0
      %v2765 = vadd.f32 %v2604, %v2764
      %v2766 = vpop.f32.mrb[0].mxu0
      %v2767 = vpop.f32.mrb[0].mxu0
      %v2768 = vadd.f32 %v2607, %v2767
      %v2769 = vpop.f32.mrb[0].mxu0
      %2770 = vmatprep.mubr.bf16.mxu0 %v1860
      %2771 = vmatmul.mubr.bf16.gmra.mrb[0].mxu0 %v1859
      %v2772 = vpop.f32.mrb[0].mxu0
      %v2773 = vadd.f32 %v2612, %v2772
      %v2774 = vpop.f32.mrb[0].mxu0
      %v2775 = vpop.f32.mrb[0].mxu0
      %v2776 = vadd.f32 %v2615, %v2775
      %v2777 = vpop.f32.mrb[0].mxu0
      %2778 = vmatprep.mubr.bf16.mxu0 %v1869
      %2779 = vmatmul.mubr.bf16.gmra.mrb[0].mxu0 %v1868
      %v2780 = vpop.f32.mrb[0].mxu0
      %v2781 = vadd.f32 %v2620, %v2780
      %v2782 = vpop.f32.mrb[0].mxu0
      %v2783 = vpop.f32.mrb[0].mxu0
      %v2784 = vadd.f32 %v2623, %v2783
      %v2785 = vpop.f32.mrb[0].mxu0
      %2786 = vmatprep.mubr.bf16.mxu0 %v1878
      %2787 = vmatmul.mubr.bf16.gmra.mrb[0].mxu0 %v1877
      %v2788 = vpop.f32.mrb[0].mxu0
      %v2789 = vadd.f32 %v2628, %v2788
      %v2790 = vpop.f32.mrb[0].mxu0
      %v2791 = vpop.f32.mrb[0].mxu0
      %v2792 = vadd.f32 %v2631, %v2791
      %v2793 = vpop.f32.mrb[0].mxu0
      %2794 = vmatprep.mubr.bf16.mxu0 %v1887
      %2795 = vmatmul.mubr.bf16.gmra.mrb[0].mxu0 %v1886
      %v2796 = vpop.f32.mrb[0].mxu0
      %v2797 = vadd.f32 %v2636, %v2796
      %v2798 = vpop.f32.mrb[0].mxu0
      %v2799 = vpop.f32.mrb[0].mxu0
      %v2800 = vadd.f32 %v2639, %v2799
      %v2801 = vpop.f32.mrb[0].mxu0
      %2802 = vmatprep.mubr.bf16.mxu0 %v1896
      %2803 = vmatmul.mubr.bf16.gmra.mrb[0].mxu0 %v1895
      %v2804 = vpop.f32.mrb[0].mxu0
      %v2805 = vadd.f32 %v2644, %v2804
      %v2806 = vpop.f32.mrb[0].mxu0
      %v2807 = vpop.f32.mrb[0].mxu0
      %v2808 = vadd.f32 %v2647, %v2807
      %v2809 = vpop.f32.mrb[0].mxu0
      %2810 = vmatprep.mubr.bf16.mxu0 %v1905
      %2811 = vmatmul.mubr.bf16.gmra.mrb[0].mxu0 %v1904
      %v2812 = vpop.f32.mrb[0].mxu0
      %v2813 = vadd.f32 %v2652, %v2812
      %v2814 = vpop.f32.mrb[0].mxu0
      %v2815 = vpop.f32.mrb[0].mxu0
      %v2816 = vadd.f32 %v2655, %v2815
      %v2817 = vpop.f32.mrb[0].mxu0
      %2818 = vmatprep.mubr.bf16.mxu0 %v1914
      %2819 = vmatmul.mubr.bf16.gmra.mrb[0].mxu0 %v1913
      %v2820 = vpop.f32.mrb[0].mxu0
      %v2821 = vadd.f32 %v2660, %v2820
      %v2822 = vpop.f32.mrb[0].mxu0
      %v2823 = vpop.f32.mrb[0].mxu0
      %v2824 = vadd.f32 %v2663, %v2823
      %v2825 = vpop.f32.mrb[0].mxu0
      %2826 = vmatprep.mubr.bf16.mxu0 %v1923
      %2827 = vmatmul.mubr.bf16.gmra.mrb[0].mxu0 %v1922
      %v2828 = vpop.f32.mrb[0].mxu0
      %v2829 = vadd.f32 %v2668, %v2828
      %v2830 = vpop.f32.mrb[0].mxu0
      %v2831 = vpop.f32.mrb[0].mxu0
      %v2832 = vadd.f32 %v2671, %v2831
      %v2833 = vpop.f32.mrb[0].mxu0
      %2834 = vmatprep.mubr.bf16.mxu0 %v1932
      %2835 = vmatmul.mubr.bf16.gmra.mrb[0].mxu0 %v1931
      %v2836 = vpop.f32.mrb[0].mxu0
      %v2837 = vadd.f32 %v2676, %v2836
      %v2838 = vpop.f32.mrb[0].mxu0
      %v2839 = vpop.f32.mrb[0].mxu0
      %v2840 = vadd.f32 %v2679, %v2839
      %v2841 = vpop.f32.mrb[0].mxu0
      %2842 = vdwg.mxu0
      %2843 = vmatprep.subr.bf16.mxu0 0
      %2844 = vmatpush1.bf16.msra.mxu0 %v2409
      %2845 = vmatprep.subr.bf16.mxu0 0
      %2846 = vmatpush1.bf16.msra.mxu0 %v2410
      %2847 = vmatprep.subr.bf16.mxu0 0
      %2848 = vmatpush1.bf16.msra.mxu0 %v2411
      %2849 = vmatprep.subr.bf16.mxu0 0
      %2850 = vmatpush1.bf16.msra.mxu0 %v2412
      %2851 = vmatprep.subr.bf16.mxu0 0
      %2852 = vmatpush1.bf16.msra.mxu0 %v2413
      %2853 = vmatprep.subr.bf16.mxu0 0
      %2854 = vmatpush1.bf16.msra.mxu0 %v2414
      %2855 = vmatprep.subr.bf16.mxu0 0
      %2856 = vmatpush1.bf16.msra.mxu0 %v2415
      %2857 = vmatprep.subr.bf16.mxu0 0
      %2858 = vmatpush1.bf16.msra.mxu0 %v2416
      %2859 = vmatprep.subr.bf16.mxu0 0
      %2860 = vmatpush1.bf16.msra.mxu0 %v2417
      %2861 = vmatprep.subr.bf16.mxu0 0
      %2862 = vmatpush1.bf16.msra.mxu0 %v2418
      %2863 = vmatprep.subr.bf16.mxu0 0
      %2864 = vmatpush1.bf16.msra.mxu0 %v2419
      %2865 = vmatprep.subr.bf16.mxu0 0
      %2866 = vmatpush1.bf16.msra.mxu0 %v2420
      %2867 = vmatprep.subr.bf16.mxu0 0
      %2868 = vmatpush1.bf16.msra.mxu0 %v2421
      %2869 = vmatprep.subr.bf16.mxu0 0
      %2870 = vmatpush1.bf16.msra.mxu0 %v2422
      %2871 = vmatprep.subr.bf16.mxu0 0
      %2872 = vmatpush1.bf16.msra.mxu0 %v2423
      %2873 = vmatprep.subr.bf16.mxu0 0
      %2874 = vmatpush1.bf16.msra.mxu0 %v2424
      %2875 = vmatprep.mubr.bf16.mxu0 %v1799
      %2876 = vmatmul.mubr.bf16.gmra.mrb[0].mxu0 %v1798
      %v2877 = vpop.f32.mrb[0].mxu0
      %v2878 = vadd.f32 %v2717, %v2877
      %v2879 = vpop.f32.mrb[0].mxu0
      %v2880 = vpop.f32.mrb[0].mxu0
      %v2881 = vadd.f32 %v2720, %v2880
      %v2882 = vpop.f32.mrb[0].mxu0
      %2883 = vmatprep.mubr.bf16.mxu0 %v1808
      %2884 = vmatmul.mubr.bf16.gmra.mrb[0].mxu0 %v1807
      %v2885 = vpop.f32.mrb[0].mxu0
      %v2886 = vadd.f32 %v2725, %v2885
      %v2887 = vpop.f32.mrb[0].mxu0
      %v2888 = vpop.f32.mrb[0].mxu0
      %v2889 = vadd.f32 %v2728, %v2888
      %v2890 = vpop.f32.mrb[0].mxu0
      %2891 = vmatprep.mubr.bf16.mxu0 %v1817
      %2892 = vmatmul.mubr.bf16.gmra.mrb[0].mxu0 %v1816
      %v2893 = vpop.f32.mrb[0].mxu0
      %v2894 = vadd.f32 %v2733, %v2893
      %v2895 = vpop.f32.mrb[0].mxu0
      %v2896 = vpop.f32.mrb[0].mxu0
      %v2897 = vadd.f32 %v2736, %v2896
      %v2898 = vpop.f32.mrb[0].mxu0
      %2899 = vmatprep.mubr.bf16.mxu0 %v1826
      %2900 = vmatmul.mubr.bf16.gmra.mrb[0].mxu0 %v1825
      %v2901 = vpop.f32.mrb[0].mxu0
      %v2902 = vadd.f32 %v2741, %v2901
      %v2903 = vpop.f32.mrb[0].mxu0
      %v2904 = vpop.f32.mrb[0].mxu0
      %v2905 = vadd.f32 %v2744, %v2904
      %v2906 = vpop.f32.mrb[0].mxu0
      %2907 = vmatprep.mubr.bf16.mxu0 %v1835
      %2908 = vmatmul.mubr.bf16.gmra.mrb[0].mxu0 %v1834
      %v2909 = vpop.f32.mrb[0].mxu0
      %v2910 = vadd.f32 %v2749, %v2909
      %v2911 = vpop.f32.mrb[0].mxu0
      %v2912 = vpop.f32.mrb[0].mxu0
      %v2913 = vadd.f32 %v2752, %v2912
      %v2914 = vpop.f32.mrb[0].mxu0
      %2915 = vmatprep.mubr.bf16.mxu0 %v1844
      %2916 = vmatmul.mubr.bf16.gmra.mrb[0].mxu0 %v1843
      %v2917 = vpop.f32.mrb[0].mxu0
      %v2918 = vadd.f32 %v2757, %v2917
      %v2919 = vpop.f32.mrb[0].mxu0
      %v2920 = vpop.f32.mrb[0].mxu0
      %v2921 = vadd.f32 %v2760, %v2920
      %v2922 = vpop.f32.mrb[0].mxu0
      %2923 = vmatprep.mubr.bf16.mxu0 %v1853
      %2924 = vmatmul.mubr.bf16.gmra.mrb[0].mxu0 %v1852
      %v2925 = vpop.f32.mrb[0].mxu0
      %v2926 = vadd.f32 %v2765, %v2925
      %v2927 = vpop.f32.mrb[0].mxu0
      %v2928 = vpop.f32.mrb[0].mxu0
      %v2929 = vadd.f32 %v2768, %v2928
      %v2930 = vpop.f32.mrb[0].mxu0
      %2931 = vmatprep.mubr.bf16.mxu0 %v1862
      %2932 = vmatmul.mubr.bf16.gmra.mrb[0].mxu0 %v1861
      %v2933 = vpop.f32.mrb[0].mxu0
      %v2934 = vadd.f32 %v2773, %v2933
      %v2935 = vpop.f32.mrb[0].mxu0
      %v2936 = vpop.f32.mrb[0].mxu0
      %v2937 = vadd.f32 %v2776, %v2936
      %v2938 = vpop.f32.mrb[0].mxu0
      %2939 = vmatprep.mubr.bf16.mxu0 %v1871
      %2940 = vmatmul.mubr.bf16.gmra.mrb[0].mxu0 %v1870
      %v2941 = vpop.f32.mrb[0].mxu0
      %v2942 = vadd.f32 %v2781, %v2941
      %v2943 = vpop.f32.mrb[0].mxu0
      %v2944 = vpop.f32.mrb[0].mxu0
      %v2945 = vadd.f32 %v2784, %v2944
      %v2946 = vpop.f32.mrb[0].mxu0
      %2947 = vmatprep.mubr.bf16.mxu0 %v1880
      %2948 = vmatmul.mubr.bf16.gmra.mrb[0].mxu0 %v1879
      %v2949 = vpop.f32.mrb[0].mxu0
      %v2950 = vadd.f32 %v2789, %v2949
      %v2951 = vpop.f32.mrb[0].mxu0
      %v2952 = vpop.f32.mrb[0].mxu0
      %v2953 = vadd.f32 %v2792, %v2952
      %v2954 = vpop.f32.mrb[0].mxu0
      %2955 = vmatprep.mubr.bf16.mxu0 %v1889
      %2956 = vmatmul.mubr.bf16.gmra.mrb[0].mxu0 %v1888
      %v2957 = vpop.f32.mrb[0].mxu0
      %v2958 = vadd.f32 %v2797, %v2957
      %v2959 = vpop.f32.mrb[0].mxu0
      %v2960 = vpop.f32.mrb[0].mxu0
      %v2961 = vadd.f32 %v2800, %v2960
      %v2962 = vpop.f32.mrb[0].mxu0
      %2963 = vmatprep.mubr.bf16.mxu0 %v1898
      %2964 = vmatmul.mubr.bf16.gmra.mrb[0].mxu0 %v1897
      %v2965 = vpop.f32.mrb[0].mxu0
      %v2966 = vadd.f32 %v2805, %v2965
      %v2967 = vpop.f32.mrb[0].mxu0
      %v2968 = vpop.f32.mrb[0].mxu0
      %v2969 = vadd.f32 %v2808, %v2968
      %v2970 = vpop.f32.mrb[0].mxu0
      %2971 = vmatprep.mubr.bf16.mxu0 %v1907
      %2972 = vmatmul.mubr.bf16.gmra.mrb[0].mxu0 %v1906
      %v2973 = vpop.f32.mrb[0].mxu0
      %v2974 = vadd.f32 %v2813, %v2973
      %v2975 = vpop.f32.mrb[0].mxu0
      %v2976 = vpop.f32.mrb[0].mxu0
      %v2977 = vadd.f32 %v2816, %v2976
      %v2978 = vpop.f32.mrb[0].mxu0
      %2979 = vmatprep.mubr.bf16.mxu0 %v1916
      %2980 = vmatmul.mubr.bf16.gmra.mrb[0].mxu0 %v1915
      %v2981 = vpop.f32.mrb[0].mxu0
      %v2982 = vadd.f32 %v2821, %v2981
      %v2983 = vpop.f32.mrb[0].mxu0
      %v2984 = vpop.f32.mrb[0].mxu0
      %v2985 = vadd.f32 %v2824, %v2984
      %v2986 = vpop.f32.mrb[0].mxu0
      %2987 = vmatprep.mubr.bf16.mxu0 %v1925
      %2988 = vmatmul.mubr.bf16.gmra.mrb[0].mxu0 %v1924
      %v2989 = vpop.f32.mrb[0].mxu0
      %v2990 = vadd.f32 %v2829, %v2989
      %v2991 = vpop.f32.mrb[0].mxu0
      %v2992 = vpop.f32.mrb[0].mxu0
      %v2993 = vadd.f32 %v2832, %v2992
      %v2994 = vpop.f32.mrb[0].mxu0
      %2995 = vmatprep.mubr.bf16.mxu0 %v1934
      %2996 = vmatmul.mubr.bf16.gmra.mrb[0].mxu0 %v1933
      %v2997 = vpop.f32.mrb[0].mxu0
      %v2998 = vadd.f32 %v2837, %v2997
      %v2999 = vpop.f32.mrb[0].mxu0
      %v3000 = vpop.f32.mrb[0].mxu0
      %v3001 = vadd.f32 %v2840, %v3000
      %v3002 = vpop.f32.mrb[0].mxu0
      %3003 = vdwg.mxu0
      %3004 = vmatprep.subr.bf16.mxu0 0
      %3005 = vmatpush1.bf16.msra.mxu0 %v2425
      %3006 = vmatprep.subr.bf16.mxu0 0
      %3007 = vmatpush1.bf16.msra.mxu0 %v2426
      %3008 = vmatprep.subr.bf16.mxu0 0
      %3009 = vmatpush1.bf16.msra.mxu0 %v2427
      %3010 = vmatprep.subr.bf16.mxu0 0
      %3011 = vmatpush1.bf16.msra.mxu0 %v2428
      %3012 = vmatprep.subr.bf16.mxu0 0
      %3013 = vmatpush1.bf16.msra.mxu0 %v2429
      %3014 = vmatprep.subr.bf16.mxu0 0
      %3015 = vmatpush1.bf16.msra.mxu0 %v2430
      %3016 = vmatprep.subr.bf16.mxu0 0
      %3017 = vmatpush1.bf16.msra.mxu0 %v2431
      %3018 = vmatprep.subr.bf16.mxu0 0
      %3019 = vmatpush1.bf16.msra.mxu0 %v2432
      %3020 = vmatprep.subr.bf16.mxu0 0
      %3021 = vmatpush1.bf16.msra.mxu0 %v2433
      %3022 = vmatprep.subr.bf16.mxu0 0
      %3023 = vmatpush1.bf16.msra.mxu0 %v2434
      %3024 = vmatprep.subr.bf16.mxu0 0
      %3025 = vmatpush1.bf16.msra.mxu0 %v2435
      %3026 = vmatprep.subr.bf16.mxu0 0
      %3027 = vmatpush1.bf16.msra.mxu0 %v2436
      %3028 = vmatprep.subr.bf16.mxu0 0
      %3029 = vmatpush1.bf16.msra.mxu0 %v2437
      %3030 = vmatprep.subr.bf16.mxu0 0
      %3031 = vmatpush1.bf16.msra.mxu0 %v2438
      %3032 = vmatprep.subr.bf16.mxu0 0
      %3033 = vmatpush1.bf16.msra.mxu0 %v2439
      %3034 = vmatprep.subr.bf16.mxu0 0
      %3035 = vmatpush1.bf16.msra.mxu0 %v2440
      %3036 = vmatprep.mubr.bf16.mxu0 %v1801
      %3037 = vmatmul.mubr.bf16.gmra.mrb[0].mxu0 %v1800
      %v3038 = vpop.f32.mrb[0].mxu0
      %v3039 = vadd.f32 %v2878, %v3038
      %v3040 = vpop.f32.mrb[0].mxu0
      %v3041 = vpop.f32.mrb[0].mxu0
      %v3042 = vadd.f32 %v2881, %v3041
      %v3043 = vpop.f32.mrb[0].mxu0
      %3044 = vmatprep.mubr.bf16.mxu0 %v1810
      %3045 = vmatmul.mubr.bf16.gmra.mrb[0].mxu0 %v1809
      %v3046 = vpop.f32.mrb[0].mxu0
      %v3047 = vadd.f32 %v2886, %v3046
      %v3048 = vpop.f32.mrb[0].mxu0
      %v3049 = vpop.f32.mrb[0].mxu0
      %v3050 = vadd.f32 %v2889, %v3049
      %v3051 = vpop.f32.mrb[0].mxu0
      %3052 = vmatprep.mubr.bf16.mxu0 %v1819
      %3053 = vmatmul.mubr.bf16.gmra.mrb[0].mxu0 %v1818
      %v3054 = vpop.f32.mrb[0].mxu0
      %v3055 = vadd.f32 %v2894, %v3054
      %v3056 = vpop.f32.mrb[0].mxu0
      %v3057 = vpop.f32.mrb[0].mxu0
      %v3058 = vadd.f32 %v2897, %v3057
      %v3059 = vpop.f32.mrb[0].mxu0
      %3060 = vmatprep.mubr.bf16.mxu0 %v1828
      %3061 = vmatmul.mubr.bf16.gmra.mrb[0].mxu0 %v1827
      %v3062 = vpop.f32.mrb[0].mxu0
      %v3063 = vadd.f32 %v2902, %v3062
      %v3064 = vpop.f32.mrb[0].mxu0
      %v3065 = vpop.f32.mrb[0].mxu0
      %v3066 = vadd.f32 %v2905, %v3065
      %v3067 = vpop.f32.mrb[0].mxu0
      %3068 = vmatprep.mubr.bf16.mxu0 %v1837
      %3069 = vmatmul.mubr.bf16.gmra.mrb[0].mxu0 %v1836
      %v3070 = vpop.f32.mrb[0].mxu0
      %v3071 = vadd.f32 %v2910, %v3070
      %v3072 = vpop.f32.mrb[0].mxu0
      %v3073 = vpop.f32.mrb[0].mxu0
      %v3074 = vadd.f32 %v2913, %v3073
      %v3075 = vpop.f32.mrb[0].mxu0
      %3076 = vmatprep.mubr.bf16.mxu0 %v1846
      %3077 = vmatmul.mubr.bf16.gmra.mrb[0].mxu0 %v1845
      %v3078 = vpop.f32.mrb[0].mxu0
      %v3079 = vadd.f32 %v2918, %v3078
      %v3080 = vpop.f32.mrb[0].mxu0
      %v3081 = vpop.f32.mrb[0].mxu0
      %v3082 = vadd.f32 %v2921, %v3081
      %v3083 = vpop.f32.mrb[0].mxu0
      %3084 = vmatprep.mubr.bf16.mxu0 %v1855
      %3085 = vmatmul.mubr.bf16.gmra.mrb[0].mxu0 %v1854
      %v3086 = vpop.f32.mrb[0].mxu0
      %v3087 = vadd.f32 %v2926, %v3086
      %v3088 = vpop.f32.mrb[0].mxu0
      %v3089 = vpop.f32.mrb[0].mxu0
      %v3090 = vadd.f32 %v2929, %v3089
      %v3091 = vpop.f32.mrb[0].mxu0
      %3092 = vmatprep.mubr.bf16.mxu0 %v1864
      %3093 = vmatmul.mubr.bf16.gmra.mrb[0].mxu0 %v1863
      %v3094 = vpop.f32.mrb[0].mxu0
      %v3095 = vadd.f32 %v2934, %v3094
      %v3096 = vpop.f32.mrb[0].mxu0
      %v3097 = vpop.f32.mrb[0].mxu0
      %v3098 = vadd.f32 %v2937, %v3097
      %v3099 = vpop.f32.mrb[0].mxu0
      %3100 = vmatprep.mubr.bf16.mxu0 %v1873
      %3101 = vmatmul.mubr.bf16.gmra.mrb[0].mxu0 %v1872
      %v3102 = vpop.f32.mrb[0].mxu0
      %v3103 = vadd.f32 %v2942, %v3102
      %v3104 = vpop.f32.mrb[0].mxu0
      %v3105 = vpop.f32.mrb[0].mxu0
      %v3106 = vadd.f32 %v2945, %v3105
      %v3107 = vpop.f32.mrb[0].mxu0
      %3108 = vmatprep.mubr.bf16.mxu0 %v1882
      %3109 = vmatmul.mubr.bf16.gmra.mrb[0].mxu0 %v1881
      %v3110 = vpop.f32.mrb[0].mxu0
      %v3111 = vadd.f32 %v2950, %v3110
      %v3112 = vpop.f32.mrb[0].mxu0
      %v3113 = vpop.f32.mrb[0].mxu0
      %v3114 = vadd.f32 %v2953, %v3113
      %v3115 = vpop.f32.mrb[0].mxu0
      %3116 = vmatprep.mubr.bf16.mxu0 %v1891
      %3117 = vmatmul.mubr.bf16.gmra.mrb[0].mxu0 %v1890
      %v3118 = vpop.f32.mrb[0].mxu0
      %v3119 = vadd.f32 %v2958, %v3118
      %v3120 = vpop.f32.mrb[0].mxu0
      %v3121 = vpop.f32.mrb[0].mxu0
      %v3122 = vadd.f32 %v2961, %v3121
      %v3123 = vpop.f32.mrb[0].mxu0
      %3124 = vmatprep.mubr.bf16.mxu0 %v1900
      %3125 = vmatmul.mubr.bf16.gmra.mrb[0].mxu0 %v1899
      %v3126 = vpop.f32.mrb[0].mxu0
      %v3127 = vadd.f32 %v2966, %v3126
      %v3128 = vpop.f32.mrb[0].mxu0
      %v3129 = vpop.f32.mrb[0].mxu0
      %v3130 = vadd.f32 %v2969, %v3129
      %v3131 = vpop.f32.mrb[0].mxu0
      %3132 = vmatprep.mubr.bf16.mxu0 %v1909
      %3133 = vmatmul.mubr.bf16.gmra.mrb[0].mxu0 %v1908
      %v3134 = vpop.f32.mrb[0].mxu0
      %v3135 = vadd.f32 %v2974, %v3134
      %v3136 = vpop.f32.mrb[0].mxu0
      %v3137 = vpop.f32.mrb[0].mxu0
      %v3138 = vadd.f32 %v2977, %v3137
      %v3139 = vpop.f32.mrb[0].mxu0
      %3140 = vmatprep.mubr.bf16.mxu0 %v1918
      %3141 = vmatmul.mubr.bf16.gmra.mrb[0].mxu0 %v1917
      %v3142 = vpop.f32.mrb[0].mxu0
      %v3143 = vadd.f32 %v2982, %v3142
      %v3144 = vpop.f32.mrb[0].mxu0
      %v3145 = vpop.f32.mrb[0].mxu0
      %v3146 = vadd.f32 %v2985, %v3145
      %v3147 = vpop.f32.mrb[0].mxu0
      %3148 = vmatprep.mubr.bf16.mxu0 %v1927
      %3149 = vmatmul.mubr.bf16.gmra.mrb[0].mxu0 %v1926
      %v3150 = vpop.f32.mrb[0].mxu0
      %v3151 = vadd.f32 %v2990, %v3150
      %v3152 = vpop.f32.mrb[0].mxu0
      %v3153 = vpop.f32.mrb[0].mxu0
      %v3154 = vadd.f32 %v2993, %v3153
      %v3155 = vpop.f32.mrb[0].mxu0
      %3156 = vmatprep.mubr.bf16.mxu0 %v1936
      %3157 = vmatmul.mubr.bf16.gmra.mrb[0].mxu0 %v1935
      %v3158 = vpop.f32.mrb[0].mxu0
      %v3159 = vadd.f32 %v2998, %v3158
      %v3160 = vpop.f32.mrb[0].mxu0
      %v3161 = vpop.f32.mrb[0].mxu0
      %v3162 = vadd.f32 %v3001, %v3161
      %v3163 = vpop.f32.mrb[0].mxu0
      %3164 = vdwg.mxu0
      %3165 = vmatprep.subr.bf16.mxu0 0
      %3166 = vmatpush1.bf16.msra.mxu0 %v2441
      %3167 = vmatprep.subr.bf16.mxu0 0
      %3168 = vmatpush1.bf16.msra.mxu0 %v2442
      %3169 = vmatprep.subr.bf16.mxu0 0
      %3170 = vmatpush1.bf16.msra.mxu0 %v2443
      %3171 = vmatprep.subr.bf16.mxu0 0
      %3172 = vmatpush1.bf16.msra.mxu0 %v2444
      %3173 = vmatprep.subr.bf16.mxu0 0
      %3174 = vmatpush1.bf16.msra.mxu0 %v2445
      %3175 = vmatprep.subr.bf16.mxu0 0
      %3176 = vmatpush1.bf16.msra.mxu0 %v2446
      %3177 = vmatprep.subr.bf16.mxu0 0
      %3178 = vmatpush1.bf16.msra.mxu0 %v2447
      %3179 = vmatprep.subr.bf16.mxu0 0
      %3180 = vmatpush1.bf16.msra.mxu0 %v2448
      %3181 = vmatprep.subr.bf16.mxu0 0
      %3182 = vmatpush1.bf16.msra.mxu0 0
      %3183 = vmatprep.subr.bf16.mxu0 0
      %3184 = vmatpush1.bf16.msra.mxu0 0
      %3185 = vmatprep.subr.bf16.mxu0 0
      %3186 = vmatpush1.bf16.msra.mxu0 0
      %3187 = vmatprep.subr.bf16.mxu0 0
      %3188 = vmatpush1.bf16.msra.mxu0 0
      %3189 = vmatprep.subr.bf16.mxu0 0
      %3190 = vmatpush1.bf16.msra.mxu0 0
      %3191 = vmatprep.subr.bf16.mxu0 0
      %3192 = vmatpush1.bf16.msra.mxu0 0
      %3193 = vmatprep.subr.bf16.mxu0 0
      %3194 = vmatpush1.bf16.msra.mxu0 0
      %3195 = vmatprep.subr.bf16.mxu0 0
      %3196 = vmatpush1.bf16.msra.mxu0 0
      %3197 = vmatprep.mubr.bf16.mxu0 0
      %3198 = vmatmul.mubr.bf16.gmra.mrb[0].mxu0 %v1802
      %v3199 = vpop.f32.mrb[0].mxu0
      %v3200 = vadd.f32 %v3039, %v3199
      %v3201 = vpop.f32.mrb[0].mxu0
      %v3202 = vpop.f32.mrb[0].mxu0
      %v3203 = vadd.f32 %v3042, %v3202
      %v3204 = vpop.f32.mrb[0].mxu0
      %3205 = vmatprep.mubr.bf16.mxu0 0
      %3206 = vmatmul.mubr.bf16.gmra.mrb[0].mxu0 %v1811
      %v3207 = vpop.f32.mrb[0].mxu0
      %v3208 = vadd.f32 %v3047, %v3207
      %v3209 = vpop.f32.mrb[0].mxu0
      %v3210 = vpop.f32.mrb[0].mxu0
      %v3211 = vadd.f32 %v3050, %v3210
      %v3212 = vpop.f32.mrb[0].mxu0
      %3213 = vmatprep.mubr.bf16.mxu0 0
      %3214 = vmatmul.mubr.bf16.gmra.mrb[0].mxu0 %v1820
      %v3215 = vpop.f32.mrb[0].mxu0
      %v3216 = vadd.f32 %v3055, %v3215
      %v3217 = vpop.f32.mrb[0].mxu0
      %v3218 = vpop.f32.mrb[0].mxu0
      %v3219 = vadd.f32 %v3058, %v3218
      %v3220 = vpop.f32.mrb[0].mxu0
      %3221 = vmatprep.mubr.bf16.mxu0 0
      %3222 = vmatmul.mubr.bf16.gmra.mrb[0].mxu0 %v1829
      %v3223 = vpop.f32.mrb[0].mxu0
      %v3224 = vadd.f32 %v3063, %v3223
      %v3225 = vpop.f32.mrb[0].mxu0
      %v3226 = vpop.f32.mrb[0].mxu0
      %v3227 = vadd.f32 %v3066, %v3226
      %v3228 = vpop.f32.mrb[0].mxu0
      %3229 = vmatprep.mubr.bf16.mxu0 0
      %3230 = vmatmul.mubr.bf16.gmra.mrb[0].mxu0 %v1838
      %v3231 = vpop.f32.mrb[0].mxu0
      %v3232 = vadd.f32 %v3071, %v3231
      %v3233 = vpop.f32.mrb[0].mxu0
      %v3234 = vpop.f32.mrb[0].mxu0
      %v3235 = vadd.f32 %v3074, %v3234
      %v3236 = vpop.f32.mrb[0].mxu0
      %3237 = vmatprep.mubr.bf16.mxu0 0
      %3238 = vmatmul.mubr.bf16.gmra.mrb[0].mxu0 %v1847
      %v3239 = vpop.f32.mrb[0].mxu0
      %v3240 = vadd.f32 %v3079, %v3239
      %v3241 = vpop.f32.mrb[0].mxu0
      %v3242 = vpop.f32.mrb[0].mxu0
      %v3243 = vadd.f32 %v3082, %v3242
      %v3244 = vpop.f32.mrb[0].mxu0
      %3245 = vmatprep.mubr.bf16.mxu0 0
      %3246 = vmatmul.mubr.bf16.gmra.mrb[0].mxu0 %v1856
      %v3247 = vpop.f32.mrb[0].mxu0
      %v3248 = vadd.f32 %v3087, %v3247
      %v3249 = vpop.f32.mrb[0].mxu0
      %v3250 = vpop.f32.mrb[0].mxu0
      %v3251 = vadd.f32 %v3090, %v3250
      %v3252 = vpop.f32.mrb[0].mxu0
      %3253 = vmatprep.mubr.bf16.mxu0 0
      %3254 = vmatmul.mubr.bf16.gmra.mrb[0].mxu0 %v1865
      %v3255 = vpop.f32.mrb[0].mxu0
      %v3256 = vadd.f32 %v3095, %v3255
      %v3257 = vpop.f32.mrb[0].mxu0
      %v3258 = vpop.f32.mrb[0].mxu0
      %v3259 = vadd.f32 %v3098, %v3258
      %v3260 = vpop.f32.mrb[0].mxu0
      %3261 = vmatprep.mubr.bf16.mxu0 0
      %3262 = vmatmul.mubr.bf16.gmra.mrb[0].mxu0 %v1874
      %v3263 = vpop.f32.mrb[0].mxu0
      %v3264 = vadd.f32 %v3103, %v3263
      %v3265 = vpop.f32.mrb[0].mxu0
      %v3266 = vpop.f32.mrb[0].mxu0
      %v3267 = vadd.f32 %v3106, %v3266
      %v3268 = vpop.f32.mrb[0].mxu0
      %3269 = vmatprep.mubr.bf16.mxu0 0
      %3270 = vmatmul.mubr.bf16.gmra.mrb[0].mxu0 %v1883
      %v3271 = vpop.f32.mrb[0].mxu0
      %v3272 = vadd.f32 %v3111, %v3271
      %v3273 = vpop.f32.mrb[0].mxu0
      %v3274 = vpop.f32.mrb[0].mxu0
      %v3275 = vadd.f32 %v3114, %v3274
      %v3276 = vpop.f32.mrb[0].mxu0
      %3277 = vmatprep.mubr.bf16.mxu0 0
      %3278 = vmatmul.mubr.bf16.gmra.mrb[0].mxu0 %v1892
      %v3279 = vpop.f32.mrb[0].mxu0
      %v3280 = vadd.f32 %v3119, %v3279
      %v3281 = vpop.f32.mrb[0].mxu0
      %v3282 = vpop.f32.mrb[0].mxu0
      %v3283 = vadd.f32 %v3122, %v3282
      %v3284 = vpop.f32.mrb[0].mxu0
      %3285 = vmatprep.mubr.bf16.mxu0 0
      %3286 = vmatmul.mubr.bf16.gmra.mrb[0].mxu0 %v1901
      %v3287 = vpop.f32.mrb[0].mxu0
      %v3288 = vadd.f32 %v3127, %v3287
      %v3289 = vpop.f32.mrb[0].mxu0
      %v3290 = vpop.f32.mrb[0].mxu0
      %v3291 = vadd.f32 %v3130, %v3290
      %v3292 = vpop.f32.mrb[0].mxu0
      %3293 = vmatprep.mubr.bf16.mxu0 0
      %3294 = vmatmul.mubr.bf16.gmra.mrb[0].mxu0 %v1910
      %v3295 = vpop.f32.mrb[0].mxu0
      %v3296 = vadd.f32 %v3135, %v3295
      %v3297 = vpop.f32.mrb[0].mxu0
      %v3298 = vpop.f32.mrb[0].mxu0
      %v3299 = vadd.f32 %v3138, %v3298
      %v3300 = vpop.f32.mrb[0].mxu0
      %3301 = vmatprep.mubr.bf16.mxu0 0
      %3302 = vmatmul.mubr.bf16.gmra.mrb[0].mxu0 %v1919
      %v3303 = vpop.f32.mrb[0].mxu0
      %v3304 = vadd.f32 %v3143, %v3303
      %v3305 = vpop.f32.mrb[0].mxu0
      %v3306 = vpop.f32.mrb[0].mxu0
      %v3307 = vadd.f32 %v3146, %v3306
      %v3308 = vpop.f32.mrb[0].mxu0
      %3309 = vmatprep.mubr.bf16.mxu0 0
      %3310 = vmatmul.mubr.bf16.gmra.mrb[0].mxu0 %v1928
      %v3311 = vpop.f32.mrb[0].mxu0
      %v3312 = vadd.f32 %v3151, %v3311
      %v3313 = vpop.f32.mrb[0].mxu0
      %v3314 = vpop.f32.mrb[0].mxu0
      %v3315 = vadd.f32 %v3154, %v3314
      %v3316 = vpop.f32.mrb[0].mxu0
      %3317 = vmatprep.mubr.bf16.mxu0 0
      %3318 = vmatmul.mubr.bf16.gmra.mrb[0].mxu0 %v1937
      %v3319 = vpop.f32.mrb[0].mxu0
      %v3320 = vadd.f32 %v3159, %v3319
      %v3321 = vpop.f32.mrb[0].mxu0
      %v3322 = vpop.f32.mrb[0].mxu0
      %v3323 = vadd.f32 %v3162, %v3322
      %v3324 = vpop.f32.mrb[0].mxu0
      %3325 = vdwg.mxu0
      %3326 = vst [vmem:[#allocation4] sm:$0xff] %v3200
      %3327 = vst [vmem:[#allocation4 + $0x8] sm:$0xff] %v3203
      %3328 = vst [vmem:[#allocation4 + $0x10] sm:$0xff] %v3208
      %3329 = vst [vmem:[#allocation4 + $0x18] sm:$0xff] %v3211
      %3330 = vst [vmem:[#allocation4 + $0x20] sm:$0xff] %v3216
      %3331 = vst [vmem:[#allocation4 + $0x28] sm:$0xff] %v3219
      %3332 = vst [vmem:[#allocation4 + $0x30] sm:$0xff] %v3224
      %3333 = vst [vmem:[#allocation4 + $0x38] sm:$0xff] %v3227
      %3334 = vst [vmem:[#allocation4 + $0x40] sm:$0xff] %v3232
      %3335 = vst [vmem:[#allocation4 + $0x48] sm:$0xff] %v3235
      %3336 = vst [vmem:[#allocation4 + $0x50] sm:$0xff] %v3240
      %3337 = vst [vmem:[#allocation4 + $0x58] sm:$0xff] %v3243
      %3338 = vst [vmem:[#allocation4 + $0x60] sm:$0xff] %v3248
      %3339 = vst [vmem:[#allocation4 + $0x68] sm:$0xff] %v3251
      %3340 = vst [vmem:[#allocation4 + $0x70] sm:$0xff] %v3256
      %3341 = vst [vmem:[#allocation4 + $0x78] sm:$0xff] %v3259
      %3342 = vst [vmem:[#allocation4 + $0x80] sm:$0xff] %v3264
      %3343 = vst [vmem:[#allocation4 + $0x88] sm:$0xff] %v3267
      %3344 = vst [vmem:[#allocation4 + $0x90] sm:$0xff] %v3272
      %3345 = vst [vmem:[#allocation4 + $0x98] sm:$0xff] %v3275
      %3346 = vst [vmem:[#allocation4 + $0xa0] sm:$0xff] %v3280
      %3347 = vst [vmem:[#allocation4 + $0xa8] sm:$0xff] %v3283
      %3348 = vst [vmem:[#allocation4 + $0xb0] sm:$0xff] %v3288
      %3349 = vst [vmem:[#allocation4 + $0xb8] sm:$0xff] %v3291
      %3350 = vst [vmem:[#allocation4 + $0xc0] sm:$0xff] %v3296
      %3351 = vst [vmem:[#allocation4 + $0xc8] sm:$0xff] %v3299
      %3352 = vst [vmem:[#allocation4 + $0xd0] sm:$0xff] %v3304
      %3353 = vst [vmem:[#allocation4 + $0xd8] sm:$0xff] %v3307
      %3354 = vst [vmem:[#allocation4 + $0xe0] sm:$0xff] %v3312
      %3355 = vst [vmem:[#allocation4 + $0xe8] sm:$0xff] %v3315
      %3356 = vst [vmem:[#allocation4 + $0xf0] sm:$0xff] %v3320
      %3357 = vst [vmem:[#allocation4 + $0xf8] sm:$0xff] %v3323
      %v3358 = vld [vmem:[#allocation4] ss:$2 sm:$0xff]
      %v3359 = vld [vmem:[%s741] ss:$2 sm:$0xff]
      %v3360 = vld [vmem:[%s743] ss:$2 sm:$0xff]
      %v3361 = vld [vmem:[%s745] ss:$2 sm:$0xff]
      %v3362 = vld [vmem:[%s747] ss:$2 sm:$0xff]
      %v3363 = vld [vmem:[%s749] ss:$2 sm:$0xff]
      %v3364 = vld [vmem:[%s751] ss:$2 sm:$0xff]
      %v3365 = vld [vmem:[%s753] ss:$2 sm:$0xff]
      %v3366 = vld [vmem:[%s755] ss:$2 sm:$0xff]
      %v3367 = vld [vmem:[%s757] ss:$2 sm:$0xff]
      %v3368 = vld [vmem:[%s759] ss:$2 sm:$0xff]
      %v3369 = vld [vmem:[%s761] ss:$2 sm:$0xff]
      %v3370 = vld [vmem:[%s763] ss:$2 sm:$0xff]
      %v3371 = vld [vmem:[%s765] ss:$2 sm:$0xff]
      %v3372 = vld [vmem:[%s767] ss:$2 sm:$0xff]
      %v3373 = vld [vmem:[%s769] ss:$2 sm:$0xff]
      %v3374 = vld [vmem:[%s771] ss:$2 sm:$0xff]
      %v3375 = vld [vmem:[%s773] ss:$2 sm:$0xff]
      %v3376 = vld [vmem:[%s775] ss:$2 sm:$0xff]
      %v3377 = vld [vmem:[%s777] ss:$2 sm:$0xff]
      %v3378 = vld [vmem:[%s779] ss:$2 sm:$0xff]
      %v3379 = vld [vmem:[%s781] ss:$2 sm:$0xff]
      %v3380 = vld [vmem:[%s783] ss:$2 sm:$0xff]
      %v3381 = vld [vmem:[%s785] ss:$2 sm:$0xff]
      %v3382 = vld [vmem:[%s787] ss:$2 sm:$0xff]
      %v3383 = vld [vmem:[%s789] ss:$2 sm:$0xff]
      %v3384 = vld [vmem:[%s791] ss:$2 sm:$0xff]
      %v3385 = vld [vmem:[%s793] ss:$2 sm:$0xff]
      %v3386 = vld [vmem:[%s795] ss:$2 sm:$0xff]
      %v3387 = vld [vmem:[%s797] ss:$2 sm:$0xff]
      %v3388 = vld [vmem:[%s799] ss:$2 sm:$0xff]
      %v3389 = vld [vmem:[%s801] ss:$2 sm:$0xff]
      %v3390 = vadd.f32 %v3358, %v3366
      %v3391 = vadd.f32 %v3359, %v3367
      %v3392 = vadd.f32 %v3360, %v3368
      %v3393 = vadd.f32 %v3361, %v3369
      %v3394 = vadd.f32 %v3362, %v3370
      %v3395 = vadd.f32 %v3363, %v3371
      %v3396 = vadd.f32 %v3364, %v3372
      %v3397 = vadd.f32 %v3365, %v3373
      %v3398 = vadd.f32 %v3374, %v3382
      %v3399 = vadd.f32 %v3375, %v3383
      %v3400 = vadd.f32 %v3376, %v3384
      %v3401 = vadd.f32 %v3377, %v3385
      %v3402 = vadd.f32 %v3378, %v3386
      %v3403 = vadd.f32 %v3379, %v3387
      %v3404 = vadd.f32 %v3380, %v3388
      %v3405 = vadd.f32 %v3381, %v3389
      %v3406 = vadd.f32 %v3390, %v3398
      %v3407 = vadd.f32 %v3391, %v3399
      %v3408 = vadd.f32 %v3392, %v3400
      %v3409 = vadd.f32 %v3393, %v3401
      %v3410 = vadd.f32 %v3394, %v3402
      %v3411 = vadd.f32 %v3395, %v3403
      %v3412 = vadd.f32 %v3396, %v3404
      %v3413 = vadd.f32 %v3397, %v3405
      %v3414 = vmul.f32 %v3406, 0.25
      %v3415 = vmul.f32 %v3407, 0.25
      %v3416 = vmul.f32 %v3408, 0.25
      %v3417 = vmul.f32 %v3409, 0.25
      %v3418 = vmul.f32 %v3410, 0.25
      %v3419 = vmul.f32 %v3411, 0.25
      %v3420 = vmul.f32 %v3412, 0.25
      %v3421 = vmul.f32 %v3413, 0.25
      %v3422 = vld [vmem:[%s8] sm:$0x1]
      %v3423 = vld [vmem:[%s9] sm:$0x1]
      %v3424 = vadd.f32 %v3414, %v3415
      %v3425 = vadd.f32 %v3424, %v3416
      %v3426 = vadd.f32 %v3425, %v3417
      %v3427 = vadd.f32 %v3426, %v3418
      %v3428 = vadd.f32 %v3427, %v3419
      %v3429 = vadd.f32 %v3428, %v3420
      %v3430 = vadd.f32 %v3429, %v3421
      %v3431 = vrot.slane %v3430, 4
      %v3432 = vadd.f32 %v3430, %v3431
      %v3433 = vrot.slane %v3432, 2
      %v3434 = vadd.f32 %v3432, %v3433
      %v3435 = vrot.slane %v3434, 1
      %v3436 = vadd.f32 %v3434, %v3435
      %v3437 = vrcp.pop 64.0
      %v3438 = vmul.f32 %v3436, %v3437
      %v3439 = vsub.f32 %v3414, %v3438
      %v3440 = vsub.f32 %v3415, %v3438
      %v3441 = vsub.f32 %v3416, %v3438
      %v3442 = vsub.f32 %v3417, %v3438
      %v3443 = vsub.f32 %v3418, %v3438
      %v3444 = vsub.f32 %v3419, %v3438
      %v3445 = vsub.f32 %v3420, %v3438
      %v3446 = vsub.f32 %v3421, %v3438
      %v3447 = vmul.f32 %v3439, %v3439
      %v3448 = vmul.f32 %v3440, %v3440
      %v3449 = vmul.f32 %v3441, %v3441
      %v3450 = vmul.f32 %v3442, %v3442
      %v3451 = vmul.f32 %v3443, %v3443
      %v3452 = vmul.f32 %v3444, %v3444
      %v3453 = vmul.f32 %v3445, %v3445
      %v3454 = vmul.f32 %v3446, %v3446
      %v3455 = vadd.f32 %v3447, %v3448
      %v3456 = vadd.f32 %v3455, %v3449
      %v3457 = vadd.f32 %v3456, %v3450
      %v3458 = vadd.f32 %v3457, %v3451
      %v3459 = vadd.f32 %v3458, %v3452
      %v3460 = vadd.f32 %v3459, %v3453
      %v3461 = vadd.f32 %v3460, %v3454
      %v3462 = vrot.slane %v3461, 4
      %v3463 = vadd.f32 %v3461, %v3462
      %v3464 = vrot.slane %v3463, 2
      %v3465 = vadd.f32 %v3463, %v3464
      %v3466 = vrot.slane %v3465, 1
      %v3467 = vadd.f32 %v3465, %v3466
      %v3468 = vmul.f32 %v3467, %v3437
      %v3469 = vadd.f32 %v3468, 1e-05
      %v3470 = vrsqrt.pop %v3469
      %v3471 = vmul.f32 %v3439, %v3470
      %v3472 = vmul.f32 %v3440, %v3470
      %v3473 = vmul.f32 %v3441, %v3470
      %v3474 = vmul.f32 %v3442, %v3470
      %v3475 = vmul.f32 %v3443, %v3470
      %v3476 = vmul.f32 %v3444, %v3470
      %v3477 = vmul.f32 %v3445, %v3470
      %v3478 = vmul.f32 %v3446, %v3470
      %v3480 = vlaneseq
      %v3481 = vshrl.u32 %v3480, 7
      %v3482 = vsub.s32 0, %v3481
      %v3483 = vrot.slane %v3422, %v3482
      %v3485 = vmul.f32 %v3471, %v3483
      %v3486 = vmul.f32 %v3472, %v3483
      %v3487 = vmul.f32 %v3473, %v3483
      %v3488 = vmul.f32 %v3474, %v3483
      %v3489 = vmul.f32 %v3475, %v3483
      %v3490 = vmul.f32 %v3476, %v3483
      %v3491 = vmul.f32 %v3477, %v3483
      %v3492 = vmul.f32 %v3478, %v3483
      %v3494 = vlaneseq
      %v3495 = vshrl.u32 %v3494, 7
      %v3496 = vsub.s32 0, %v3495
      %v3497 = vrot.slane %v3423, %v3496
      %v3499 = vadd.f32 %v3485, %v3497
      %v3500 = vadd.f32 %v3486, %v3497
      %v3501 = vadd.f32 %v3487, %v3497
      %v3502 = vadd.f32 %v3488, %v3497
      %v3503 = vadd.f32 %v3489, %v3497
      %v3504 = vadd.f32 %v3490, %v3497
      %v3505 = vadd.f32 %v3491, %v3497
      %v3506 = vadd.f32 %v3492, %v3497
      %vm3507 = vcmp.gt.f32.partialorder %v3499, 0.0
      %vm3508 = vcmp.gt.f32.partialorder %v3500, 0.0
      %vm3509 = vcmp.gt.f32.partialorder %v3501, 0.0
      %vm3510 = vcmp.gt.f32.partialorder %v3502, 0.0
      %vm3511 = vcmp.gt.f32.partialorder %v3503, 0.0
      %vm3512 = vcmp.gt.f32.partialorder %v3504, 0.0
      %vm3513 = vcmp.gt.f32.partialorder %v3505, 0.0
      %vm3514 = vcmp.gt.f32.partialorder %v3506, 0.0
      %v3515 = vmul.f32 %v3499, 0.2
      %v3516 = vmul.f32 %v3500, 0.2
      %v3517 = vmul.f32 %v3501, 0.2
      %v3518 = vmul.f32 %v3502, 0.2
      %v3519 = vmul.f32 %v3503, 0.2
      %v3520 = vmul.f32 %v3504, 0.2
      %v3521 = vmul.f32 %v3505, 0.2
      %v3522 = vmul.f32 %v3506, 0.2
      %v3523 = vsel %vm3507, %v3499, %v3515
      %v3524 = vsel %vm3508, %v3500, %v3516
      %v3525 = vsel %vm3509, %v3501, %v3517
      %v3526 = vsel %vm3510, %v3502, %v3518
      %v3527 = vsel %vm3511, %v3503, %v3519
      %v3528 = vsel %vm3512, %v3504, %v3520
      %v3529 = vsel %vm3513, %v3505, %v3521
      %v3530 = vsel %vm3514, %v3506, %v3522
      %s3531 = scalar_lea.vmem [#allocation3], 16
      %3532 = vst [vmem:[%s3531 + $0x1] sm:$0xff] %v3523
      %3533 = vst [vmem:[%s3531 + $0x11] sm:$0xff] %v3524
      %3534 = vst [vmem:[%s3531 + $0x21] sm:$0xff] %v3525
      %3535 = vst [vmem:[%s3531 + $0x31] sm:$0xff] %v3526
      %3536 = vst [vmem:[%s3531 + $0x41] sm:$0xff] %v3527
      %3537 = vst [vmem:[%s3531 + $0x51] sm:$0xff] %v3528
      %3538 = vst [vmem:[%s3531 + $0x61] sm:$0xff] %v3529
      %3539 = vst [vmem:[%s3531 + $0x71] sm:$0xff] %v3530
      %v3540 = vld [vmem:[#allocation3] sm:$0xff]
      %v3541 = vld [vmem:[#allocation3 + $0x10] sm:$0xff]
      %v3542 = vld [vmem:[#allocation3 + $0x20] sm:$0xff]
      %v3543 = vld [vmem:[#allocation3 + $0x30] sm:$0xff]
      %v3544 = vld [vmem:[#allocation3 + $0x40] sm:$0xff]
      %v3545 = vld [vmem:[#allocation3 + $0x50] sm:$0xff]
      %v3546 = vld [vmem:[#allocation3 + $0x60] sm:$0xff]
      %v3547 = vld [vmem:[#allocation3 + $0x70] sm:$0xff]
      %v3548 = vpack.c.bf16 %v3541, %v3540
      %v3549 = vpack.c.bf16 %v3543, %v3542
      %v3550 = vpack.c.bf16 %v3545, %v3544
      %v3551 = vpack.c.bf16 %v3547, %v3546
      %3552 = vst [vmem:[#allocation5] sm:$0xff] %v3548
      %3553 = vst [vmem:[#allocation5 + $0x48] sm:$0xff] %v3549
      %3554 = vst [vmem:[#allocation5 + $0x90] sm:$0xff] %v3550
      %3555 = vst [vmem:[#allocation5 + $0xd8] sm:$0xff] %v3551
      %v3556 = vld [vmem:[#allocation3 + $0x1] sm:$0xff]
      %v3557 = vld [vmem:[#allocation3 + $0x11] sm:$0xff]
      %v3558 = vld [vmem:[#allocation3 + $0x21] sm:$0xff]
      %v3559 = vld [vmem:[#allocation3 + $0x31] sm:$0xff]
      %v3560 = vld [vmem:[#allocation3 + $0x41] sm:$0xff]
      %v3561 = vld [vmem:[#allocation3 + $0x51] sm:$0xff]
      %v3562 = vld [vmem:[#allocation3 + $0x61] sm:$0xff]
      %v3563 = vld [vmem:[#allocation3 + $0x71] sm:$0xff]
      %v3564 = vpack.c.bf16 %v3557, %v3556
      %v3565 = vpack.c.bf16 %v3559, %v3558
      %v3566 = vpack.c.bf16 %v3561, %v3560
      %v3567 = vpack.c.bf16 %v3563, %v3562
      %3568 = vst [vmem:[#allocation5 + $0x8] sm:$0xff] %v3564
      %3569 = vst [vmem:[#allocation5 + $0x50] sm:$0xff] %v3565
      %3570 = vst [vmem:[#allocation5 + $0x98] sm:$0xff] %v3566
      %3571 = vst [vmem:[#allocation5 + $0xe0] sm:$0xff] %v3567
      %v3572 = vld [vmem:[#allocation3 + $0x2] sm:$0xff]
      %v3573 = vld [vmem:[#allocation3 + $0x12] sm:$0xff]
      %v3574 = vld [vmem:[#allocation3 + $0x22] sm:$0xff]
      %v3575 = vld [vmem:[#allocation3 + $0x32] sm:$0xff]
      %v3576 = vld [vmem:[#allocation3 + $0x42] sm:$0xff]
      %v3577 = vld [vmem:[#allocation3 + $0x52] sm:$0xff]
      %v3578 = vld [vmem:[#allocation3 + $0x62] sm:$0xff]
      %v3579 = vld [vmem:[#allocation3 + $0x72] sm:$0xff]
      %v3580 = vpack.c.bf16 %v3573, %v3572
      %v3581 = vpack.c.bf16 %v3575, %v3574
      %v3582 = vpack.c.bf16 %v3577, %v3576
      %v3583 = vpack.c.bf16 %v3579, %v3578
      %3584 = vst [vmem:[#allocation5 + $0x10] sm:$0xff] %v3580
      %3585 = vst [vmem:[#allocation5 + $0x58] sm:$0xff] %v3581
      %3586 = vst [vmem:[#allocation5 + $0xa0] sm:$0xff] %v3582
      %3587 = vst [vmem:[#allocation5 + $0xe8] sm:$0xff] %v3583
      %v3588 = vld [vmem:[%s3531] sm:$0xff]
      %v3589 = vld [vmem:[%s3531 + $0x10] sm:$0xff]
      %v3590 = vld [vmem:[%s3531 + $0x20] sm:$0xff]
      %v3591 = vld [vmem:[%s3531 + $0x30] sm:$0xff]
      %v3592 = vld [vmem:[%s3531 + $0x40] sm:$0xff]
      %v3593 = vld [vmem:[%s3531 + $0x50] sm:$0xff]
      %v3594 = vld [vmem:[%s3531 + $0x60] sm:$0xff]
      %v3595 = vld [vmem:[%s3531 + $0x70] sm:$0xff]
      %v3596 = vpack.c.bf16 %v3589, %v3588
      %v3597 = vpack.c.bf16 %v3591, %v3590
      %v3598 = vpack.c.bf16 %v3593, %v3592
      %v3599 = vpack.c.bf16 %v3595, %v3594
      %3600 = vst [vmem:[#allocation5 + $0x18] sm:$0xff] %v3596
      %3601 = vst [vmem:[#allocation5 + $0x60] sm:$0xff] %v3597
      %3602 = vst [vmem:[#allocation5 + $0xa8] sm:$0xff] %v3598
      %3603 = vst [vmem:[#allocation5 + $0xf0] sm:$0xff] %v3599
      %v3604 = vld [vmem:[%s3531 + $0x1] sm:$0xff]
      %v3605 = vld [vmem:[%s3531 + $0x11] sm:$0xff]
      %v3606 = vld [vmem:[%s3531 + $0x21] sm:$0xff]
      %v3607 = vld [vmem:[%s3531 + $0x31] sm:$0xff]
      %v3608 = vld [vmem:[%s3531 + $0x41] sm:$0xff]
      %v3609 = vld [vmem:[%s3531 + $0x51] sm:$0xff]
      %v3610 = vld [vmem:[%s3531 + $0x61] sm:$0xff]
      %v3611 = vld [vmem:[%s3531 + $0x71] sm:$0xff]
      %v3612 = vpack.c.bf16 %v3605, %v3604
      %v3613 = vpack.c.bf16 %v3607, %v3606
      %v3614 = vpack.c.bf16 %v3609, %v3608
      %v3615 = vpack.c.bf16 %v3611, %v3610
      %3616 = vst [vmem:[#allocation5 + $0x20] sm:$0xff] %v3612
      %3617 = vst [vmem:[#allocation5 + $0x68] sm:$0xff] %v3613
      %3618 = vst [vmem:[#allocation5 + $0xb0] sm:$0xff] %v3614
      %3619 = vst [vmem:[#allocation5 + $0xf8] sm:$0xff] %v3615
      %v3620 = vld [vmem:[%s3531 + $0x2] sm:$0xff]
      %v3621 = vld [vmem:[%s3531 + $0x12] sm:$0xff]
      %v3622 = vld [vmem:[%s3531 + $0x22] sm:$0xff]
      %v3623 = vld [vmem:[%s3531 + $0x32] sm:$0xff]
      %v3624 = vld [vmem:[%s3531 + $0x42] sm:$0xff]
      %v3625 = vld [vmem:[%s3531 + $0x52] sm:$0xff]
      %v3626 = vld [vmem:[%s3531 + $0x62] sm:$0xff]
      %v3627 = vld [vmem:[%s3531 + $0x72] sm:$0xff]
      %v3628 = vpack.c.bf16 %v3621, %v3620
      %v3629 = vpack.c.bf16 %v3623, %v3622
      %v3630 = vpack.c.bf16 %v3625, %v3624
      %v3631 = vpack.c.bf16 %v3627, %v3626
      %3632 = vst [vmem:[#allocation5 + $0x28] sm:$0xff] %v3628
      %3633 = vst [vmem:[#allocation5 + $0x70] sm:$0xff] %v3629
      %3634 = vst [vmem:[#allocation5 + $0xb8] sm:$0xff] %v3630
      %3635 = vst [vmem:[#allocation5 + $0x100] sm:$0xff] %v3631
      %s3636 = scalar_lea.vmem [#allocation3], 32
      %v3637 = vld [vmem:[%s3636] sm:$0xff]
      %v3638 = vld [vmem:[%s3636 + $0x10] sm:$0xff]
      %v3639 = vld [vmem:[%s3636 + $0x20] sm:$0xff]
      %v3640 = vld [vmem:[%s3636 + $0x30] sm:$0xff]
      %v3641 = vld [vmem:[%s3636 + $0x40] sm:$0xff]
      %v3642 = vld [vmem:[%s3636 + $0x50] sm:$0xff]
      %v3643 = vld [vmem:[%s3636 + $0x60] sm:$0xff]
      %v3644 = vld [vmem:[%s3636 + $0x70] sm:$0xff]
      %v3645 = vpack.c.bf16 %v3638, %v3637
      %v3646 = vpack.c.bf16 %v3640, %v3639
      %v3647 = vpack.c.bf16 %v3642, %v3641
      %v3648 = vpack.c.bf16 %v3644, %v3643
      %3649 = vst [vmem:[#allocation5 + $0x30] sm:$0xff] %v3645
      %3650 = vst [vmem:[#allocation5 + $0x78] sm:$0xff] %v3646
      %3651 = vst [vmem:[#allocation5 + $0xc0] sm:$0xff] %v3647
      %3652 = vst [vmem:[#allocation5 + $0x108] sm:$0xff] %v3648
      %v3653 = vld [vmem:[%s3636 + $0x1] sm:$0xff]
      %v3654 = vld [vmem:[%s3636 + $0x11] sm:$0xff]
      %v3655 = vld [vmem:[%s3636 + $0x21] sm:$0xff]
      %v3656 = vld [vmem:[%s3636 + $0x31] sm:$0xff]
      %v3657 = vld [vmem:[%s3636 + $0x41] sm:$0xff]
      %v3658 = vld [vmem:[%s3636 + $0x51] sm:$0xff]
      %v3659 = vld [vmem:[%s3636 + $0x61] sm:$0xff]
      %v3660 = vld [vmem:[%s3636 + $0x71] sm:$0xff]
      %v3661 = vpack.c.bf16 %v3654, %v3653
      %v3662 = vpack.c.bf16 %v3656, %v3655
      %v3663 = vpack.c.bf16 %v3658, %v3657
      %v3664 = vpack.c.bf16 %v3660, %v3659
      %3665 = vst [vmem:[#allocation5 + $0x38] sm:$0xff] %v3661
      %3666 = vst [vmem:[#allocation5 + $0x80] sm:$0xff] %v3662
      %3667 = vst [vmem:[#allocation5 + $0xc8] sm:$0xff] %v3663
      %3668 = vst [vmem:[#allocation5 + $0x110] sm:$0xff] %v3664
      %v3669 = vld [vmem:[%s3636 + $0x2] sm:$0xff]
      %v3670 = vld [vmem:[%s3636 + $0x12] sm:$0xff]
      %v3671 = vld [vmem:[%s3636 + $0x22] sm:$0xff]
      %v3672 = vld [vmem:[%s3636 + $0x32] sm:$0xff]
      %v3673 = vld [vmem:[%s3636 + $0x42] sm:$0xff]
      %v3674 = vld [vmem:[%s3636 + $0x52] sm:$0xff]
      %v3675 = vld [vmem:[%s3636 + $0x62] sm:$0xff]
      %v3676 = vld [vmem:[%s3636 + $0x72] sm:$0xff]
      %v3677 = vpack.c.bf16 %v3670, %v3669
      %v3678 = vpack.c.bf16 %v3672, %v3671
      %v3679 = vpack.c.bf16 %v3674, %v3673
      %v3680 = vpack.c.bf16 %v3676, %v3675
      %3681 = vst [vmem:[#allocation5 + $0x40] sm:$0xff] %v3677
      %3682 = vst [vmem:[#allocation5 + $0x88] sm:$0xff] %v3678
      %3683 = vst [vmem:[#allocation5 + $0xd0] sm:$0xff] %v3679
      %3684 = vst [vmem:[#allocation5 + $0x118] sm:$0xff] %v3680
      %v3685 = vld [vmem:[#allocation5] sm:$0xff]
      %v3686 = vld [vmem:[#allocation5 + $0x8] sm:$0xff]
      %v3687 = vld [vmem:[#allocation5 + $0x10] sm:$0xff]
      %v3688 = vld [vmem:[#allocation5 + $0x18] sm:$0xff]
      %v3689 = vld [vmem:[#allocation5 + $0x20] sm:$0xff]
      %v3690 = vld [vmem:[#allocation5 + $0x28] sm:$0xff]
      %v3691 = vld [vmem:[#allocation5 + $0x30] sm:$0xff]
      %v3692 = vld [vmem:[#allocation5 + $0x38] sm:$0xff]
      %v3693 = vld [vmem:[#allocation5 + $0x40] sm:$0xff]
      %v3694 = vld [vmem:[#allocation5 + $0x48] sm:$0xff]
      %v3695 = vld [vmem:[#allocation5 + $0x50] sm:$0xff]
      %v3696 = vld [vmem:[#allocation5 + $0x58] sm:$0xff]
      %v3697 = vld [vmem:[#allocation5 + $0x60] sm:$0xff]
      %v3698 = vld [vmem:[#allocation5 + $0x68] sm:$0xff]
      %v3699 = vld [vmem:[#allocation5 + $0x70] sm:$0xff]
      %v3700 = vld [vmem:[#allocation5 + $0x78] sm:$0xff]
      %v3701 = vld [vmem:[#allocation5 + $0x80] sm:$0xff]
      %v3702 = vld [vmem:[#allocation5 + $0x88] sm:$0xff]
      %v3703 = vld [vmem:[#allocation5 + $0x90] sm:$0xff]
      %v3704 = vld [vmem:[#allocation5 + $0x98] sm:$0xff]
      %v3705 = vld [vmem:[#allocation5 + $0xa0] sm:$0xff]
      %v3706 = vld [vmem:[#allocation5 + $0xa8] sm:$0xff]
      %v3707 = vld [vmem:[#allocation5 + $0xb0] sm:$0xff]
      %v3708 = vld [vmem:[#allocation5 + $0xb8] sm:$0xff]
      %v3709 = vld [vmem:[#allocation5 + $0xc0] sm:$0xff]
      %v3710 = vld [vmem:[#allocation5 + $0xc8] sm:$0xff]
      %v3711 = vld [vmem:[#allocation5 + $0xd0] sm:$0xff]
      %v3712 = vld [vmem:[#allocation5 + $0xd8] sm:$0xff]
      %v3713 = vld [vmem:[#allocation5 + $0xe0] sm:$0xff]
      %v3714 = vld [vmem:[#allocation5 + $0xe8] sm:$0xff]
      %v3715 = vld [vmem:[#allocation5 + $0xf0] sm:$0xff]
      %v3716 = vld [vmem:[#allocation5 + $0xf8] sm:$0xff]
      %v3717 = vld [vmem:[#allocation5 + $0x100] sm:$0xff]
      %v3718 = vld [vmem:[#allocation5 + $0x108] sm:$0xff]
      %v3719 = vld [vmem:[#allocation5 + $0x110] sm:$0xff]
      %v3720 = vld [vmem:[#allocation5 + $0x118] sm:$0xff]
      %v3721 = vld [vmem:[%s3] sm:$0xf]
      %v3722 = vld [vmem:[%s3 + $0x4] sm:$0xf]
      %v3723 = vld [vmem:[%s3 + $0x8] sm:$0xf]
      %v3724 = vld [vmem:[%s3 + $0xc] sm:$0xf]
      %v3725 = vld [vmem:[%s3 + $0x10] sm:$0xf]
      %v3726 = vld [vmem:[%s3 + $0x14] sm:$0xf]
      %v3727 = vld [vmem:[%s3 + $0x18] sm:$0xf]
      %v3728 = vld [vmem:[%s3 + $0x1c] sm:$0xf]
      %v3729 = vld [vmem:[%s3 + $0x20] sm:$0xf]
      %v3730 = vld [vmem:[%s3 + $0x24] sm:$0xf]
      %v3731 = vld [vmem:[%s3 + $0x28] sm:$0xf]
      %v3732 = vld [vmem:[%s3 + $0x2c] sm:$0xf]
      %v3733 = vld [vmem:[%s3 + $0x30] sm:$0xf]
      %v3734 = vld [vmem:[%s3 + $0x34] sm:$0xf]
      %v3735 = vld [vmem:[%s3 + $0x38] sm:$0xf]
      %v3736 = vld [vmem:[%s3 + $0x3c] sm:$0xf]
      %v3737 = vld [vmem:[%s3 + $0x40] sm:$0xf]
      %v3738 = vld [vmem:[%s3 + $0x44] sm:$0xf]
      %v3739 = vld [vmem:[%s3 + $0x48] sm:$0xf]
      %v3740 = vld [vmem:[%s3 + $0x4c] sm:$0xf]
      %v3741 = vld [vmem:[%s3 + $0x50] sm:$0xf]
      %v3742 = vld [vmem:[%s3 + $0x54] sm:$0xf]
      %v3743 = vld [vmem:[%s3 + $0x58] sm:$0xf]
      %v3744 = vld [vmem:[%s3 + $0x5c] sm:$0xf]
      %v3745 = vld [vmem:[%s3 + $0x60] sm:$0xf]
      %v3746 = vld [vmem:[%s3 + $0x64] sm:$0xf]
      %v3747 = vld [vmem:[%s3 + $0x68] sm:$0xf]
      %v3748 = vld [vmem:[%s3 + $0x6c] sm:$0xf]
      %v3749 = vld [vmem:[%s3 + $0x70] sm:$0xf]
      %v3750 = vld [vmem:[%s3 + $0x74] sm:$0xf]
      %v3751 = vld [vmem:[%s3 + $0x78] sm:$0xf]
      %v3752 = vld [vmem:[%s3 + $0x7c] sm:$0xf]
      %v3753 = vld [vmem:[%s3 + $0x80] sm:$0xf]
      %v3754 = vld [vmem:[%s3 + $0x84] sm:$0xf]
      %v3755 = vld [vmem:[%s3 + $0x88] sm:$0xf]
      %v3756 = vld [vmem:[%s3 + $0x8c] sm:$0xf]
      %v3757 = vld [vmem:[%s3 + $0x90] sm:$0xf]
      %v3758 = vld [vmem:[%s3 + $0x94] sm:$0xf]
      %v3759 = vld [vmem:[%s3 + $0x98] sm:$0xf]
      %v3760 = vld [vmem:[%s3 + $0x9c] sm:$0xf]
      %v3761 = vld [vmem:[%s3 + $0xa0] sm:$0xf]
      %v3762 = vld [vmem:[%s3 + $0xa4] sm:$0xf]
      %v3763 = vld [vmem:[%s3 + $0xa8] sm:$0xf]
      %v3764 = vld [vmem:[%s3 + $0xac] sm:$0xf]
      %v3765 = vld [vmem:[%s3 + $0xb0] sm:$0xf]
      %v3766 = vld [vmem:[%s3 + $0xb4] sm:$0xf]
      %v3767 = vld [vmem:[%s3 + $0xb8] sm:$0xf]
      %v3768 = vld [vmem:[%s3 + $0xbc] sm:$0xf]
      %v3769 = vld [vmem:[%s3 + $0xc0] sm:$0xf]
      %v3770 = vld [vmem:[%s3 + $0xc4] sm:$0xf]
      %v3771 = vld [vmem:[%s3 + $0xc8] sm:$0xf]
      %v3772 = vld [vmem:[%s3 + $0xcc] sm:$0xf]
      %v3773 = vld [vmem:[%s3 + $0xd0] sm:$0xf]
      %v3774 = vld [vmem:[%s3 + $0xd4] sm:$0xf]
      %v3775 = vld [vmem:[%s3 + $0xd8] sm:$0xf]
      %v3776 = vld [vmem:[%s3 + $0xdc] sm:$0xf]
      %v3777 = vld [vmem:[%s3 + $0xe0] sm:$0xf]
      %v3778 = vld [vmem:[%s3 + $0xe4] sm:$0xf]
      %v3779 = vld [vmem:[%s3 + $0xe8] sm:$0xf]
      %v3780 = vld [vmem:[%s3 + $0xec] sm:$0xf]
      %v3781 = vld [vmem:[%s3 + $0xf0] sm:$0xf]
      %v3782 = vld [vmem:[%s3 + $0xf4] sm:$0xf]
      %v3783 = vld [vmem:[%s3 + $0xf8] sm:$0xf]
      %v3784 = vld [vmem:[%s3 + $0xfc] sm:$0xf]
      %v3785 = vld [vmem:[%s3 + $0x100] sm:$0xf]
      %v3786 = vld [vmem:[%s3 + $0x104] sm:$0xf]
      %v3787 = vld [vmem:[%s3 + $0x108] sm:$0xf]
      %v3788 = vld [vmem:[%s3 + $0x10c] sm:$0xf]
      %v3789 = vld [vmem:[%s3 + $0x110] sm:$0xf]
      %v3790 = vld [vmem:[%s3 + $0x114] sm:$0xf]
      %v3791 = vld [vmem:[%s3 + $0x118] sm:$0xf]
      %v3792 = vld [vmem:[%s3 + $0x11c] sm:$0xf]
      %v3793 = vld [vmem:[%s3 + $0x120] sm:$0xf]
      %v3794 = vld [vmem:[%s3 + $0x124] sm:$0xf]
      %v3795 = vld [vmem:[%s3 + $0x128] sm:$0xf]
      %v3796 = vld [vmem:[%s3 + $0x12c] sm:$0xf]
      %v3797 = vld [vmem:[%s3 + $0x130] sm:$0xf]
      %v3798 = vld [vmem:[%s3 + $0x134] sm:$0xf]
      %v3799 = vld [vmem:[%s3 + $0x138] sm:$0xf]
      %v3800 = vld [vmem:[%s3 + $0x13c] sm:$0xf]
      %v3801 = vld [vmem:[%s3 + $0x140] sm:$0xf]
      %v3802 = vld [vmem:[%s3 + $0x144] sm:$0xf]
      %v3803 = vld [vmem:[%s3 + $0x148] sm:$0xf]
      %v3804 = vld [vmem:[%s3 + $0x14c] sm:$0xf]
      %v3805 = vld [vmem:[%s3 + $0x150] sm:$0xf]
      %v3806 = vld [vmem:[%s3 + $0x154] sm:$0xf]
      %v3807 = vld [vmem:[%s3 + $0x158] sm:$0xf]
      %v3808 = vld [vmem:[%s3 + $0x15c] sm:$0xf]
      %v3809 = vld [vmem:[%s3 + $0x160] sm:$0xf]
      %v3810 = vld [vmem:[%s3 + $0x164] sm:$0xf]
      %v3811 = vld [vmem:[%s3 + $0x168] sm:$0xf]
      %v3812 = vld [vmem:[%s3 + $0x16c] sm:$0xf]
      %v3813 = vld [vmem:[%s3 + $0x170] sm:$0xf]
      %v3814 = vld [vmem:[%s3 + $0x174] sm:$0xf]
      %v3815 = vld [vmem:[%s3 + $0x178] sm:$0xf]
      %v3816 = vld [vmem:[%s3 + $0x17c] sm:$0xf]
      %v3817 = vld [vmem:[%s3 + $0x180] sm:$0xf]
      %v3818 = vld [vmem:[%s3 + $0x184] sm:$0xf]
      %v3819 = vld [vmem:[%s3 + $0x188] sm:$0xf]
      %v3820 = vld [vmem:[%s3 + $0x18c] sm:$0xf]
      %v3821 = vld [vmem:[%s3 + $0x190] sm:$0xf]
      %v3822 = vld [vmem:[%s3 + $0x194] sm:$0xf]
      %v3823 = vld [vmem:[%s3 + $0x198] sm:$0xf]
      %v3824 = vld [vmem:[%s3 + $0x19c] sm:$0xf]
      %v3825 = vld [vmem:[%s3 + $0x1a0] sm:$0xf]
      %v3826 = vld [vmem:[%s3 + $0x1a4] sm:$0xf]
      %v3827 = vld [vmem:[%s3 + $0x1a8] sm:$0xf]
      %v3828 = vld [vmem:[%s3 + $0x1ac] sm:$0xf]
      %v3829 = vld [vmem:[%s3 + $0x1b0] sm:$0xf]
      %v3830 = vld [vmem:[%s3 + $0x1b4] sm:$0xf]
      %v3831 = vld [vmem:[%s3 + $0x1b8] sm:$0xf]
      %v3832 = vld [vmem:[%s3 + $0x1bc] sm:$0xf]
      %v3833 = vld [vmem:[%s3 + $0x1c0] sm:$0xf]
      %v3834 = vld [vmem:[%s3 + $0x1c4] sm:$0xf]
      %v3835 = vld [vmem:[%s3 + $0x1c8] sm:$0xf]
      %v3836 = vld [vmem:[%s3 + $0x1cc] sm:$0xf]
      %v3837 = vld [vmem:[%s3 + $0x1d0] sm:$0xf]
      %v3838 = vld [vmem:[%s3 + $0x1d4] sm:$0xf]
      %v3839 = vld [vmem:[%s3 + $0x1d8] sm:$0xf]
      %v3840 = vld [vmem:[%s3 + $0x1dc] sm:$0xf]
      %v3841 = vld [vmem:[%s3 + $0x1e0] sm:$0xf]
      %v3842 = vld [vmem:[%s3 + $0x1e4] sm:$0xf]
      %v3843 = vld [vmem:[%s3 + $0x1e8] sm:$0xf]
      %v3844 = vld [vmem:[%s3 + $0x1ec] sm:$0xf]
      %v3845 = vld [vmem:[%s3 + $0x1f0] sm:$0xf]
      %v3846 = vld [vmem:[%s3 + $0x1f4] sm:$0xf]
      %v3847 = vld [vmem:[%s3 + $0x1f8] sm:$0xf]
      %v3848 = vld [vmem:[%s3 + $0x1fc] sm:$0xf]
      %v3849 = vld [vmem:[%s3 + $0x200] sm:$0xf]
      %v3850 = vld [vmem:[%s3 + $0x204] sm:$0xf]
      %v3851 = vld [vmem:[%s3 + $0x208] sm:$0xf]
      %v3852 = vld [vmem:[%s3 + $0x20c] sm:$0xf]
      %v3853 = vld [vmem:[%s3 + $0x210] sm:$0xf]
      %v3854 = vld [vmem:[%s3 + $0x214] sm:$0xf]
      %v3855 = vld [vmem:[%s3 + $0x218] sm:$0xf]
      %v3856 = vld [vmem:[%s3 + $0x21c] sm:$0xf]
      %v3857 = vld [vmem:[%s3 + $0x220] sm:$0xf]
      %v3858 = vld [vmem:[%s3 + $0x224] sm:$0xf]
      %v3859 = vld [vmem:[%s3 + $0x228] sm:$0xf]
      %v3860 = vld [vmem:[%s3 + $0x22c] sm:$0xf]
      %v3861 = vld [vmem:[%s3 + $0x230] sm:$0xf]
      %v3862 = vld [vmem:[%s3 + $0x234] sm:$0xf]
      %v3863 = vld [vmem:[%s3 + $0x238] sm:$0xf]
      %v3864 = vld [vmem:[%s3 + $0x23c] sm:$0xf]
      %v3865 = vld [vmem:[%s4] sm:$0x1]
      %v3867 = vlaneseq
      %v3868 = vshrl.u32 %v3867, 7
      %v3869 = vsub.s32 0, %v3868
      %v3870 = vrot.slane %v3865, %v3869
      %v4016 = vunpack.c.l.b16 %v3721
      %v4017 = vunpack.c.l.b16 %v3722
      %v4018 = vunpack.c.l.b16 %v3723
      %v4019 = vunpack.c.l.b16 %v3724
      %v4020 = vunpack.c.l.b16 %v3725
      %v4021 = vunpack.c.l.b16 %v3726
      %v4022 = vunpack.c.l.b16 %v3727
      %v4023 = vunpack.c.l.b16 %v3728
      %v4024 = vunpack.c.l.b16 %v3729
      %v4025 = vunpack.c.l.b16 %v3730
      %v4026 = vunpack.c.l.b16 %v3731
      %v4027 = vunpack.c.l.b16 %v3732
      %v4028 = vunpack.c.l.b16 %v3733
      %v4029 = vunpack.c.l.b16 %v3734
      %v4030 = vunpack.c.l.b16 %v3735
      %v4031 = vunpack.c.l.b16 %v3736
      %v4032 = vunpack.c.l.b16 %v3737
      %v4033 = vunpack.c.l.b16 %v3738
      %v4034 = vunpack.c.l.b16 %v3739
      %v4035 = vunpack.c.l.b16 %v3740
      %v4036 = vunpack.c.l.b16 %v3741
      %v4037 = vunpack.c.l.b16 %v3742
      %v4038 = vunpack.c.l.b16 %v3743
      %v4039 = vunpack.c.l.b16 %v3744
      %v4040 = vunpack.c.l.b16 %v3745
      %v4041 = vunpack.c.l.b16 %v3746
      %v4042 = vunpack.c.l.b16 %v3747
      %v4043 = vunpack.c.l.b16 %v3748
      %v4044 = vunpack.c.l.b16 %v3749
      %v4045 = vunpack.c.l.b16 %v3750
      %v4046 = vunpack.c.l.b16 %v3751
      %v4047 = vunpack.c.l.b16 %v3752
      %v4048 = vunpack.c.l.b16 %v3753
      %v4049 = vunpack.c.l.b16 %v3754
      %v4050 = vunpack.c.l.b16 %v3755
      %v4051 = vunpack.c.l.b16 %v3756
      %v4052 = vunpack.c.l.b16 %v3757
      %v4053 = vunpack.c.l.b16 %v3758
      %v4054 = vunpack.c.l.b16 %v3759
      %v4055 = vunpack.c.l.b16 %v3760
      %v4056 = vunpack.c.l.b16 %v3761
      %v4057 = vunpack.c.l.b16 %v3762
      %v4058 = vunpack.c.l.b16 %v3763
      %v4059 = vunpack.c.l.b16 %v3764
      %v4060 = vunpack.c.l.b16 %v3765
      %v4061 = vunpack.c.l.b16 %v3766
      %v4062 = vunpack.c.l.b16 %v3767
      %v4063 = vunpack.c.l.b16 %v3768
      %v4064 = vunpack.c.l.b16 %v3769
      %v4065 = vunpack.c.l.b16 %v3770
      %v4066 = vunpack.c.l.b16 %v3771
      %v4067 = vunpack.c.l.b16 %v3772
      %v4068 = vunpack.c.l.b16 %v3773
      %v4069 = vunpack.c.l.b16 %v3774
      %v4070 = vunpack.c.l.b16 %v3775
      %v4071 = vunpack.c.l.b16 %v3776
      %v4072 = vunpack.c.l.b16 %v3777
      %v4073 = vunpack.c.l.b16 %v3778
      %v4074 = vunpack.c.l.b16 %v3779
      %v4075 = vunpack.c.l.b16 %v3780
      %v4076 = vunpack.c.l.b16 %v3781
      %v4077 = vunpack.c.l.b16 %v3782
      %v4078 = vunpack.c.l.b16 %v3783
      %v4079 = vunpack.c.l.b16 %v3784
      %v4080 = vunpack.c.l.b16 %v3785
      %v4081 = vunpack.c.l.b16 %v3786
      %v4082 = vunpack.c.l.b16 %v3787
      %v4083 = vunpack.c.l.b16 %v3788
      %v4084 = vunpack.c.l.b16 %v3789
      %v4085 = vunpack.c.l.b16 %v3790
      %v4086 = vunpack.c.l.b16 %v3791
      %v4087 = vunpack.c.l.b16 %v3792
      %v4088 = vunpack.c.l.b16 %v3793
      %v4089 = vunpack.c.l.b16 %v3794
      %v4090 = vunpack.c.l.b16 %v3795
      %v4091 = vunpack.c.l.b16 %v3796
      %v4092 = vunpack.c.l.b16 %v3797
      %v4093 = vunpack.c.l.b16 %v3798
      %v4094 = vunpack.c.l.b16 %v3799
      %v4095 = vunpack.c.l.b16 %v3800
      %v4096 = vunpack.c.l.b16 %v3801
      %v4097 = vunpack.c.l.b16 %v3802
      %v4098 = vunpack.c.l.b16 %v3803
      %v4099 = vunpack.c.l.b16 %v3804
      %v4100 = vunpack.c.l.b16 %v3805
      %v4101 = vunpack.c.l.b16 %v3806
      %v4102 = vunpack.c.l.b16 %v3807
      %v4103 = vunpack.c.l.b16 %v3808
      %v4104 = vunpack.c.l.b16 %v3809
      %v4105 = vunpack.c.l.b16 %v3810
      %v4106 = vunpack.c.l.b16 %v3811
      %v4107 = vunpack.c.l.b16 %v3812
      %v4108 = vunpack.c.l.b16 %v3813
      %v4109 = vunpack.c.l.b16 %v3814
      %v4110 = vunpack.c.l.b16 %v3815
      %v4111 = vunpack.c.l.b16 %v3816
      %v4112 = vunpack.c.l.b16 %v3817
      %v4113 = vunpack.c.l.b16 %v3818
      %v4114 = vunpack.c.l.b16 %v3819
      %v4115 = vunpack.c.l.b16 %v3820
      %v4116 = vunpack.c.l.b16 %v3821
      %v4117 = vunpack.c.l.b16 %v3822
      %v4118 = vunpack.c.l.b16 %v3823
      %v4119 = vunpack.c.l.b16 %v3824
      %v4120 = vunpack.c.l.b16 %v3825
      %v4121 = vunpack.c.l.b16 %v3826
      %v4122 = vunpack.c.l.b16 %v3827
      %v4123 = vunpack.c.l.b16 %v3828
      %v4124 = vunpack.c.l.b16 %v3829
      %v4125 = vunpack.c.l.b16 %v3830
      %v4126 = vunpack.c.l.b16 %v3831
      %v4127 = vunpack.c.l.b16 %v3832
      %v4128 = vunpack.c.l.b16 %v3833
      %v4129 = vunpack.c.l.b16 %v3834
      %v4130 = vunpack.c.l.b16 %v3835
      %v4131 = vunpack.c.l.b16 %v3836
      %v4132 = vunpack.c.l.b16 %v3837
      %v4133 = vunpack.c.l.b16 %v3838
      %v4134 = vunpack.c.l.b16 %v3839
      %v4135 = vunpack.c.l.b16 %v3840
      %v4136 = vunpack.c.l.b16 %v3841
      %v4137 = vunpack.c.l.b16 %v3842
      %v4138 = vunpack.c.l.b16 %v3843
      %v4139 = vunpack.c.l.b16 %v3844
      %v4140 = vunpack.c.l.b16 %v3845
      %v4141 = vunpack.c.l.b16 %v3846
      %v4142 = vunpack.c.l.b16 %v3847
      %v4143 = vunpack.c.l.b16 %v3848
      %v4144 = vunpack.c.l.b16 %v3849
      %v4145 = vunpack.c.l.b16 %v3850
      %v4146 = vunpack.c.l.b16 %v3851
      %v4147 = vunpack.c.l.b16 %v3852
      %v4148 = vunpack.c.l.b16 %v3853
      %v4149 = vunpack.c.l.b16 %v3854
      %v4150 = vunpack.c.l.b16 %v3855
      %v4151 = vunpack.c.l.b16 %v3856
      %v4152 = vunpack.c.l.b16 %v3857
      %v4153 = vunpack.c.l.b16 %v3858
      %v4154 = vunpack.c.l.b16 %v3859
      %v4155 = vunpack.c.l.b16 %v3860
      %v4156 = vunpack.c.l.b16 %v3861
      %v4157 = vunpack.c.l.b16 %v3862
      %v4158 = vunpack.c.l.b16 %v3863
      %v4159 = vunpack.c.l.b16 %v3864
      %v4160 = vpack.c.b16 %v4017, %v4016
      %v4161 = vpack.c.b16 %v4019, %v4018
      %v4162 = vpack.c.b16 %v4021, %v4020
      %v4163 = vpack.c.b16 %v4023, %v4022
      %v4164 = vpack.c.b16 %v4025, %v4024
      %v4165 = vpack.c.b16 %v4027, %v4026
      %v4166 = vpack.c.b16 %v4029, %v4028
      %v4167 = vpack.c.b16 %v4031, %v4030
      %v4168 = vpack.c.b16 %v4033, %v4032
      %v4169 = vpack.c.b16 %v4035, %v4034
      %v4170 = vpack.c.b16 %v4037, %v4036
      %v4171 = vpack.c.b16 %v4039, %v4038
      %v4172 = vpack.c.b16 %v4041, %v4040
      %v4173 = vpack.c.b16 %v4043, %v4042
      %v4174 = vpack.c.b16 %v4045, %v4044
      %v4175 = vpack.c.b16 %v4047, %v4046
      %v4176 = vpack.c.b16 %v4049, %v4048
      %v4177 = vpack.c.b16 %v4051, %v4050
      %v4178 = vpack.c.b16 %v4053, %v4052
      %v4179 = vpack.c.b16 %v4055, %v4054
      %v4180 = vpack.c.b16 %v4057, %v4056
      %v4181 = vpack.c.b16 %v4059, %v4058
      %v4182 = vpack.c.b16 %v4061, %v4060
      %v4183 = vpack.c.b16 %v4063, %v4062
      %v4184 = vpack.c.b16 %v4065, %v4064
      %v4185 = vpack.c.b16 %v4067, %v4066
      %v4186 = vpack.c.b16 %v4069, %v4068
      %v4187 = vpack.c.b16 %v4071, %v4070
      %v4188 = vpack.c.b16 %v4073, %v4072
      %v4189 = vpack.c.b16 %v4075, %v4074
      %v4190 = vpack.c.b16 %v4077, %v4076
      %v4191 = vpack.c.b16 %v4079, %v4078
      %v4192 = vpack.c.b16 %v4081, %v4080
      %v4193 = vpack.c.b16 %v4083, %v4082
      %v4194 = vpack.c.b16 %v4085, %v4084
      %v4195 = vpack.c.b16 %v4087, %v4086
      %v4196 = vpack.c.b16 %v4089, %v4088
      %v4197 = vpack.c.b16 %v4091, %v4090
      %v4198 = vpack.c.b16 %v4093, %v4092
      %v4199 = vpack.c.b16 %v4095, %v4094
      %v4200 = vpack.c.b16 %v4097, %v4096
      %v4201 = vpack.c.b16 %v4099, %v4098
      %v4202 = vpack.c.b16 %v4101, %v4100
      %v4203 = vpack.c.b16 %v4103, %v4102
      %v4204 = vpack.c.b16 %v4105, %v4104
      %v4205 = vpack.c.b16 %v4107, %v4106
      %v4206 = vpack.c.b16 %v4109, %v4108
      %v4207 = vpack.c.b16 %v4111, %v4110
      %v4208 = vpack.c.b16 %v4113, %v4112
      %v4209 = vpack.c.b16 %v4115, %v4114
      %v4210 = vpack.c.b16 %v4117, %v4116
      %v4211 = vpack.c.b16 %v4119, %v4118
      %v4212 = vpack.c.b16 %v4121, %v4120
      %v4213 = vpack.c.b16 %v4123, %v4122
      %v4214 = vpack.c.b16 %v4125, %v4124
      %v4215 = vpack.c.b16 %v4127, %v4126
      %v4216 = vpack.c.b16 %v4129, %v4128
      %v4217 = vpack.c.b16 %v4131, %v4130
      %v4218 = vpack.c.b16 %v4133, %v4132
      %v4219 = vpack.c.b16 %v4135, %v4134
      %v4220 = vpack.c.b16 %v4137, %v4136
      %v4221 = vpack.c.b16 %v4139, %v4138
      %v4222 = vpack.c.b16 %v4141, %v4140
      %v4223 = vpack.c.b16 %v4143, %v4142
      %v4224 = vpack.c.b16 %v4145, %v4144
      %v4225 = vpack.c.b16 %v4147, %v4146
      %v4226 = vpack.c.b16 %v4149, %v4148
      %v4227 = vpack.c.b16 %v4151, %v4150
      %v4228 = vpack.c.b16 %v4153, %v4152
      %v4229 = vpack.c.b16 %v4155, %v4154
      %v4230 = vpack.c.b16 %v4157, %v4156
      %v4231 = vpack.c.b16 %v4159, %v4158
      %4304 = vmatprep.subr.bf16.mxu0 0
      %4305 = vmatpush1.bf16.msra.mxu0 %v4160
      %4306 = vmatprep.subr.bf16.mxu0 0
      %4307 = vmatpush1.bf16.msra.mxu0 %v4161
      %4308 = vmatprep.subr.bf16.mxu0 0
      %4309 = vmatpush1.bf16.msra.mxu0 %v4162
      %4310 = vmatprep.subr.bf16.mxu0 0
      %4311 = vmatpush1.bf16.msra.mxu0 %v4163
      %4312 = vmatprep.subr.bf16.mxu0 0
      %4313 = vmatpush1.bf16.msra.mxu0 %v4164
      %4314 = vmatprep.subr.bf16.mxu0 0
      %4315 = vmatpush1.bf16.msra.mxu0 %v4165
      %4316 = vmatprep.subr.bf16.mxu0 0
      %4317 = vmatpush1.bf16.msra.mxu0 %v4166
      %4318 = vmatprep.subr.bf16.mxu0 0
      %4319 = vmatpush1.bf16.msra.mxu0 %v4167
      %4320 = vmatprep.subr.bf16.mxu0 0
      %4321 = vmatpush1.bf16.msra.mxu0 %v4168
      %4322 = vmatprep.subr.bf16.mxu0 0
      %4323 = vmatpush1.bf16.msra.mxu0 %v4169
      %4324 = vmatprep.subr.bf16.mxu0 0
      %4325 = vmatpush1.bf16.msra.mxu0 %v4170
      %4326 = vmatprep.subr.bf16.mxu0 0
      %4327 = vmatpush1.bf16.msra.mxu0 %v4171
      %4328 = vmatprep.subr.bf16.mxu0 0
      %4329 = vmatpush1.bf16.msra.mxu0 %v4172
      %4330 = vmatprep.subr.bf16.mxu0 0
      %4331 = vmatpush1.bf16.msra.mxu0 %v4173
      %4332 = vmatprep.subr.bf16.mxu0 0
      %4333 = vmatpush1.bf16.msra.mxu0 %v4174
      %4334 = vmatprep.subr.bf16.mxu0 0
      %4335 = vmatpush1.bf16.msra.mxu0 %v4175
      %4336 = vmatprep.mubr.bf16.mxu0 %v3686
      %4337 = vmatmul.mubr.bf16.gmra.mrb[0].mxu0 %v3685
      %v4338 = vpop.f32.mrb[0].mxu0
      %v4339 = vadd.f32 %v3870, %v4338
      %v4340 = vpop.f32.mrb[0].mxu0
      %v4341 = vpop.f32.mrb[0].mxu0
      %v4342 = vadd.f32 %v3870, %v4341
      %v4343 = vpop.f32.mrb[0].mxu0
      %4344 = vmatprep.mubr.bf16.mxu0 %v3695
      %4345 = vmatmul.mubr.bf16.gmra.mrb[0].mxu0 %v3694
      %v4346 = vpop.f32.mrb[0].mxu0
      %v4347 = vadd.f32 %v3870, %v4346
      %v4348 = vpop.f32.mrb[0].mxu0
      %v4349 = vpop.f32.mrb[0].mxu0
      %v4350 = vadd.f32 %v3870, %v4349
      %v4351 = vpop.f32.mrb[0].mxu0
      %4352 = vmatprep.mubr.bf16.mxu0 %v3704
      %4353 = vmatmul.mubr.bf16.gmra.mrb[0].mxu0 %v3703
      %v4354 = vpop.f32.mrb[0].mxu0
      %v4355 = vadd.f32 %v3870, %v4354
      %v4356 = vpop.f32.mrb[0].mxu0
      %v4357 = vpop.f32.mrb[0].mxu0
      %v4358 = vadd.f32 %v3870, %v4357
      %v4359 = vpop.f32.mrb[0].mxu0
      %4360 = vmatprep.mubr.bf16.mxu0 %v3713
      %4361 = vmatmul.mubr.bf16.gmra.mrb[0].mxu0 %v3712
      %v4362 = vpop.f32.mrb[0].mxu0
      %v4363 = vadd.f32 %v3870, %v4362
      %v4364 = vpop.f32.mrb[0].mxu0
      %v4365 = vpop.f32.mrb[0].mxu0
      %v4366 = vadd.f32 %v3870, %v4365
      %v4367 = vpop.f32.mrb[0].mxu0
      %4368 = vdwg.mxu0
      %4369 = vmatprep.subr.bf16.mxu0 0
      %4370 = vmatpush1.bf16.msra.mxu0 %v4176
      %4371 = vmatprep.subr.bf16.mxu0 0
      %4372 = vmatpush1.bf16.msra.mxu0 %v4177
      %4373 = vmatprep.subr.bf16.mxu0 0
      %4374 = vmatpush1.bf16.msra.mxu0 %v4178
      %4375 = vmatprep.subr.bf16.mxu0 0
      %4376 = vmatpush1.bf16.msra.mxu0 %v4179
      %4377 = vmatprep.subr.bf16.mxu0 0
      %4378 = vmatpush1.bf16.msra.mxu0 %v4180
      %4379 = vmatprep.subr.bf16.mxu0 0
      %4380 = vmatpush1.bf16.msra.mxu0 %v4181
      %4381 = vmatprep.subr.bf16.mxu0 0
      %4382 = vmatpush1.bf16.msra.mxu0 %v4182
      %4383 = vmatprep.subr.bf16.mxu0 0
      %4384 = vmatpush1.bf16.msra.mxu0 %v4183
      %4385 = vmatprep.subr.bf16.mxu0 0
      %4386 = vmatpush1.bf16.msra.mxu0 %v4184
      %4387 = vmatprep.subr.bf16.mxu0 0
      %4388 = vmatpush1.bf16.msra.mxu0 %v4185
      %4389 = vmatprep.subr.bf16.mxu0 0
      %4390 = vmatpush1.bf16.msra.mxu0 %v4186
      %4391 = vmatprep.subr.bf16.mxu0 0
      %4392 = vmatpush1.bf16.msra.mxu0 %v4187
      %4393 = vmatprep.subr.bf16.mxu0 0
      %4394 = vmatpush1.bf16.msra.mxu0 %v4188
      %4395 = vmatprep.subr.bf16.mxu0 0
      %4396 = vmatpush1.bf16.msra.mxu0 %v4189
      %4397 = vmatprep.subr.bf16.mxu0 0
      %4398 = vmatpush1.bf16.msra.mxu0 %v4190
      %4399 = vmatprep.subr.bf16.mxu0 0
      %4400 = vmatpush1.bf16.msra.mxu0 %v4191
      %4401 = vmatprep.mubr.bf16.mxu0 %v3688
      %4402 = vmatmul.mubr.bf16.gmra.mrb[0].mxu0 %v3687
      %v4403 = vpop.f32.mrb[0].mxu0
      %v4404 = vadd.f32 %v4339, %v4403
      %v4405 = vpop.f32.mrb[0].mxu0
      %v4406 = vpop.f32.mrb[0].mxu0
      %v4407 = vadd.f32 %v4342, %v4406
      %v4408 = vpop.f32.mrb[0].mxu0
      %4409 = vmatprep.mubr.bf16.mxu0 %v3697
      %4410 = vmatmul.mubr.bf16.gmra.mrb[0].mxu0 %v3696
      %v4411 = vpop.f32.mrb[0].mxu0
      %v4412 = vadd.f32 %v4347, %v4411
      %v4413 = vpop.f32.mrb[0].mxu0
      %v4414 = vpop.f32.mrb[0].mxu0
      %v4415 = vadd.f32 %v4350, %v4414
      %v4416 = vpop.f32.mrb[0].mxu0
      %4417 = vmatprep.mubr.bf16.mxu0 %v3706
      %4418 = vmatmul.mubr.bf16.gmra.mrb[0].mxu0 %v3705
      %v4419 = vpop.f32.mrb[0].mxu0
      %v4420 = vadd.f32 %v4355, %v4419
      %v4421 = vpop.f32.mrb[0].mxu0
      %v4422 = vpop.f32.mrb[0].mxu0
      %v4423 = vadd.f32 %v4358, %v4422
      %v4424 = vpop.f32.mrb[0].mxu0
      %4425 = vmatprep.mubr.bf16.mxu0 %v3715
      %4426 = vmatmul.mubr.bf16.gmra.mrb[0].mxu0 %v3714
      %v4427 = vpop.f32.mrb[0].mxu0
      %v4428 = vadd.f32 %v4363, %v4427
      %v4429 = vpop.f32.mrb[0].mxu0
      %v4430 = vpop.f32.mrb[0].mxu0
      %v4431 = vadd.f32 %v4366, %v4430
      %v4432 = vpop.f32.mrb[0].mxu0
      %4433 = vdwg.mxu0
      %4434 = vmatprep.subr.bf16.mxu0 0
      %4435 = vmatpush1.bf16.msra.mxu0 %v4192
      %4436 = vmatprep.subr.bf16.mxu0 0
      %4437 = vmatpush1.bf16.msra.mxu0 %v4193
      %4438 = vmatprep.subr.bf16.mxu0 0
      %4439 = vmatpush1.bf16.msra.mxu0 %v4194
      %4440 = vmatprep.subr.bf16.mxu0 0
      %4441 = vmatpush1.bf16.msra.mxu0 %v4195
      %4442 = vmatprep.subr.bf16.mxu0 0
      %4443 = vmatpush1.bf16.msra.mxu0 %v4196
      %4444 = vmatprep.subr.bf16.mxu0 0
      %4445 = vmatpush1.bf16.msra.mxu0 %v4197
      %4446 = vmatprep.subr.bf16.mxu0 0
      %4447 = vmatpush1.bf16.msra.mxu0 %v4198
      %4448 = vmatprep.subr.bf16.mxu0 0
      %4449 = vmatpush1.bf16.msra.mxu0 %v4199
      %4450 = vmatprep.subr.bf16.mxu0 0
      %4451 = vmatpush1.bf16.msra.mxu0 %v4200
      %4452 = vmatprep.subr.bf16.mxu0 0
      %4453 = vmatpush1.bf16.msra.mxu0 %v4201
      %4454 = vmatprep.subr.bf16.mxu0 0
      %4455 = vmatpush1.bf16.msra.mxu0 %v4202
      %4456 = vmatprep.subr.bf16.mxu0 0
      %4457 = vmatpush1.bf16.msra.mxu0 %v4203
      %4458 = vmatprep.subr.bf16.mxu0 0
      %4459 = vmatpush1.bf16.msra.mxu0 %v4204
      %4460 = vmatprep.subr.bf16.mxu0 0
      %4461 = vmatpush1.bf16.msra.mxu0 %v4205
      %4462 = vmatprep.subr.bf16.mxu0 0
      %4463 = vmatpush1.bf16.msra.mxu0 %v4206
      %4464 = vmatprep.subr.bf16.mxu0 0
      %4465 = vmatpush1.bf16.msra.mxu0 %v4207
      %4466 = vmatprep.mubr.bf16.mxu0 %v3690
      %4467 = vmatmul.mubr.bf16.gmra.mrb[0].mxu0 %v3689
      %v4468 = vpop.f32.mrb[0].mxu0
      %v4469 = vadd.f32 %v4404, %v4468
      %v4470 = vpop.f32.mrb[0].mxu0
      %v4471 = vpop.f32.mrb[0].mxu0
      %v4472 = vadd.f32 %v4407, %v4471
      %v4473 = vpop.f32.mrb[0].mxu0
      %4474 = vmatprep.mubr.bf16.mxu0 %v3699
      %4475 = vmatmul.mubr.bf16.gmra.mrb[0].mxu0 %v3698
      %v4476 = vpop.f32.mrb[0].mxu0
      %v4477 = vadd.f32 %v4412, %v4476
      %v4478 = vpop.f32.mrb[0].mxu0
      %v4479 = vpop.f32.mrb[0].mxu0
      %v4480 = vadd.f32 %v4415, %v4479
      %v4481 = vpop.f32.mrb[0].mxu0
      %4482 = vmatprep.mubr.bf16.mxu0 %v3708
      %4483 = vmatmul.mubr.bf16.gmra.mrb[0].mxu0 %v3707
      %v4484 = vpop.f32.mrb[0].mxu0
      %v4485 = vadd.f32 %v4420, %v4484
      %v4486 = vpop.f32.mrb[0].mxu0
      %v4487 = vpop.f32.mrb[0].mxu0
      %v4488 = vadd.f32 %v4423, %v4487
      %v4489 = vpop.f32.mrb[0].mxu0
      %4490 = vmatprep.mubr.bf16.mxu0 %v3717
      %4491 = vmatmul.mubr.bf16.gmra.mrb[0].mxu0 %v3716
      %v4492 = vpop.f32.mrb[0].mxu0
      %v4493 = vadd.f32 %v4428, %v4492
      %v4494 = vpop.f32.mrb[0].mxu0
      %v4495 = vpop.f32.mrb[0].mxu0
      %v4496 = vadd.f32 %v4431, %v4495
      %v4497 = vpop.f32.mrb[0].mxu0
      %4498 = vdwg.mxu0
      %4499 = vmatprep.subr.bf16.mxu0 0
      %4500 = vmatpush1.bf16.msra.mxu0 %v4208
      %4501 = vmatprep.subr.bf16.mxu0 0
      %4502 = vmatpush1.bf16.msra.mxu0 %v4209
      %4503 = vmatprep.subr.bf16.mxu0 0
      %4504 = vmatpush1.bf16.msra.mxu0 %v4210
      %4505 = vmatprep.subr.bf16.mxu0 0
      %4506 = vmatpush1.bf16.msra.mxu0 %v4211
      %4507 = vmatprep.subr.bf16.mxu0 0
      %4508 = vmatpush1.bf16.msra.mxu0 %v4212
      %4509 = vmatprep.subr.bf16.mxu0 0
      %4510 = vmatpush1.bf16.msra.mxu0 %v4213
      %4511 = vmatprep.subr.bf16.mxu0 0
      %4512 = vmatpush1.bf16.msra.mxu0 %v4214
      %4513 = vmatprep.subr.bf16.mxu0 0
      %4514 = vmatpush1.bf16.msra.mxu0 %v4215
      %4515 = vmatprep.subr.bf16.mxu0 0
      %4516 = vmatpush1.bf16.msra.mxu0 %v4216
      %4517 = vmatprep.subr.bf16.mxu0 0
      %4518 = vmatpush1.bf16.msra.mxu0 %v4217
      %4519 = vmatprep.subr.bf16.mxu0 0
      %4520 = vmatpush1.bf16.msra.mxu0 %v4218
      %4521 = vmatprep.subr.bf16.mxu0 0
      %4522 = vmatpush1.bf16.msra.mxu0 %v4219
      %4523 = vmatprep.subr.bf16.mxu0 0
      %4524 = vmatpush1.bf16.msra.mxu0 %v4220
      %4525 = vmatprep.subr.bf16.mxu0 0
      %4526 = vmatpush1.bf16.msra.mxu0 %v4221
      %4527 = vmatprep.subr.bf16.mxu0 0
      %4528 = vmatpush1.bf16.msra.mxu0 %v4222
      %4529 = vmatprep.subr.bf16.mxu0 0
      %4530 = vmatpush1.bf16.msra.mxu0 %v4223
      %4531 = vmatprep.mubr.bf16.mxu0 %v3692
      %4532 = vmatmul.mubr.bf16.gmra.mrb[0].mxu0 %v3691
      %v4533 = vpop.f32.mrb[0].mxu0
      %v4534 = vadd.f32 %v4469, %v4533
      %v4535 = vpop.f32.mrb[0].mxu0
      %v4536 = vpop.f32.mrb[0].mxu0
      %v4537 = vadd.f32 %v4472, %v4536
      %v4538 = vpop.f32.mrb[0].mxu0
      %4539 = vmatprep.mubr.bf16.mxu0 %v3701
      %4540 = vmatmul.mubr.bf16.gmra.mrb[0].mxu0 %v3700
      %v4541 = vpop.f32.mrb[0].mxu0
      %v4542 = vadd.f32 %v4477, %v4541
      %v4543 = vpop.f32.mrb[0].mxu0
      %v4544 = vpop.f32.mrb[0].mxu0
      %v4545 = vadd.f32 %v4480, %v4544
      %v4546 = vpop.f32.mrb[0].mxu0
      %4547 = vmatprep.mubr.bf16.mxu0 %v3710
      %4548 = vmatmul.mubr.bf16.gmra.mrb[0].mxu0 %v3709
      %v4549 = vpop.f32.mrb[0].mxu0
      %v4550 = vadd.f32 %v4485, %v4549
      %v4551 = vpop.f32.mrb[0].mxu0
      %v4552 = vpop.f32.mrb[0].mxu0
      %v4553 = vadd.f32 %v4488, %v4552
      %v4554 = vpop.f32.mrb[0].mxu0
      %4555 = vmatprep.mubr.bf16.mxu0 %v3719
      %4556 = vmatmul.mubr.bf16.gmra.mrb[0].mxu0 %v3718
      %v4557 = vpop.f32.mrb[0].mxu0
      %v4558 = vadd.f32 %v4493, %v4557
      %v4559 = vpop.f32.mrb[0].mxu0
      %v4560 = vpop.f32.mrb[0].mxu0
      %v4561 = vadd.f32 %v4496, %v4560
      %v4562 = vpop.f32.mrb[0].mxu0
      %4563 = vdwg.mxu0
      %4564 = vmatprep.subr.bf16.mxu0 0
      %4565 = vmatpush1.bf16.msra.mxu0 %v4224
      %4566 = vmatprep.subr.bf16.mxu0 0
      %4567 = vmatpush1.bf16.msra.mxu0 %v4225
      %4568 = vmatprep.subr.bf16.mxu0 0
      %4569 = vmatpush1.bf16.msra.mxu0 %v4226
      %4570 = vmatprep.subr.bf16.mxu0 0
      %4571 = vmatpush1.bf16.msra.mxu0 %v4227
      %4572 = vmatprep.subr.bf16.mxu0 0
      %4573 = vmatpush1.bf16.msra.mxu0 %v4228
      %4574 = vmatprep.subr.bf16.mxu0 0
      %4575 = vmatpush1.bf16.msra.mxu0 %v4229
      %4576 = vmatprep.subr.bf16.mxu0 0
      %4577 = vmatpush1.bf16.msra.mxu0 %v4230
      %4578 = vmatprep.subr.bf16.mxu0 0
      %4579 = vmatpush1.bf16.msra.mxu0 %v4231
      %4580 = vmatprep.subr.bf16.mxu0 0
      %4581 = vmatpush1.bf16.msra.mxu0 0
      %4582 = vmatprep.subr.bf16.mxu0 0
      %4583 = vmatpush1.bf16.msra.mxu0 0
      %4584 = vmatprep.subr.bf16.mxu0 0
      %4585 = vmatpush1.bf16.msra.mxu0 0
      %4586 = vmatprep.subr.bf16.mxu0 0
      %4587 = vmatpush1.bf16.msra.mxu0 0
      %4588 = vmatprep.subr.bf16.mxu0 0
      %4589 = vmatpush1.bf16.msra.mxu0 0
      %4590 = vmatprep.subr.bf16.mxu0 0
      %4591 = vmatpush1.bf16.msra.mxu0 0
      %4592 = vmatprep.subr.bf16.mxu0 0
      %4593 = vmatpush1.bf16.msra.mxu0 0
      %4594 = vmatprep.subr.bf16.mxu0 0
      %4595 = vmatpush1.bf16.msra.mxu0 0
      %4596 = vmatprep.mubr.bf16.mxu0 0
      %4597 = vmatmul.mubr.bf16.gmra.mrb[0].mxu0 %v3693
      %v4598 = vpop.f32.mrb[0].mxu0
      %v4599 = vadd.f32 %v4534, %v4598
      %v4600 = vpop.f32.mrb[0].mxu0
      %v4601 = vpop.f32.mrb[0].mxu0
      %v4602 = vadd.f32 %v4537, %v4601
      %v4603 = vpop.f32.mrb[0].mxu0
      %4604 = vmatprep.mubr.bf16.mxu0 0
      %4605 = vmatmul.mubr.bf16.gmra.mrb[0].mxu0 %v3702
      %v4606 = vpop.f32.mrb[0].mxu0
      %v4607 = vadd.f32 %v4542, %v4606
      %v4608 = vpop.f32.mrb[0].mxu0
      %v4609 = vpop.f32.mrb[0].mxu0
      %v4610 = vadd.f32 %v4545, %v4609
      %v4611 = vpop.f32.mrb[0].mxu0
      %4612 = vmatprep.mubr.bf16.mxu0 0
      %4613 = vmatmul.mubr.bf16.gmra.mrb[0].mxu0 %v3711
      %v4614 = vpop.f32.mrb[0].mxu0
      %v4615 = vadd.f32 %v4550, %v4614
      %v4616 = vpop.f32.mrb[0].mxu0
      %v4617 = vpop.f32.mrb[0].mxu0
      %v4618 = vadd.f32 %v4553, %v4617
      %v4619 = vpop.f32.mrb[0].mxu0
      %4620 = vmatprep.mubr.bf16.mxu0 0
      %4621 = vmatmul.mubr.bf16.gmra.mrb[0].mxu0 %v3720
      %v4622 = vpop.f32.mrb[0].mxu0
      %v4623 = vadd.f32 %v4558, %v4622
      %v4624 = vpop.f32.mrb[0].mxu0
      %v4625 = vpop.f32.mrb[0].mxu0
      %v4626 = vadd.f32 %v4561, %v4625
      %v4627 = vpop.f32.mrb[0].mxu0
      %4628 = vdwg.mxu0
      %v4629 = vadd.f32 %v827, %v4599
      %v4630 = vadd.f32 %v828, %v4602
      %v4631 = vadd.f32 %v829, %v4607
      %v4632 = vadd.f32 %v830, %v4610
      %v4633 = vadd.f32 %v831, %v4615
      %v4634 = vadd.f32 %v832, %v4618
      %v4635 = vadd.f32 %v833, %v4623
      %v4636 = vadd.f32 %v834, %v4626
      %v4637 = vmul.f32 %v4629, 0.70710677
      %v4638 = vmul.f32 %v4630, 0.70710677
      %v4639 = vmul.f32 %v4631, 0.70710677
      %v4640 = vmul.f32 %v4632, 0.70710677
      %v4641 = vmul.f32 %v4633, 0.70710677
      %v4642 = vmul.f32 %v4634, 0.70710677
      %v4643 = vmul.f32 %v4635, 0.70710677
      %v4644 = vmul.f32 %v4636, 0.70710677
      %4645 = vst [vmem:[%s359] sm:$0xff] %v4637
      %4646 = vst [vmem:[%s359 + $0x8] sm:$0xff] %v4638
      %4647 = vst [vmem:[%s359 + $0x10] sm:$0xff] %v4639
      %4648 = vst [vmem:[%s359 + $0x18] sm:$0xff] %v4640
      %4649 = vst [vmem:[%s359 + $0x20] sm:$0xff] %v4641
      %4650 = vst [vmem:[%s359 + $0x28] sm:$0xff] %v4642
      %4651 = vst [vmem:[%s359 + $0x30] sm:$0xff] %v4643
      %4652 = vst [vmem:[%s359 + $0x38] sm:$0xff] %v4644
      %p4653 = scmp.lt.s32.totalorder %s21, 1
      %s4654 = scalar_select %p4653, %s21, 1
      %s4655 = smul.addr %s4654, 8
      %s4656 = smul.addr %s4655, 8
      %s4657 = scalar_lea.vmem %s10, %s4656
      // Predicated region
      $region61: #{resblk_forward.1} parent=59 // pred_check
        %p4658 = pneg %p254
      $region62: #{resblk_forward.1} parent=59 // pred_check_branch
        %4660 = sbr.rel (%p4658) target = $region64
      $region63: #{resblk_forward.1} parent=59 // pred_region
        _
      $region64: #{resblk_forward.1} parent=59 // pred_fallthru
        _
    $region60: #{resblk_forward.1} parent=5 // pred_fallthru
      _
    %p4661 = scmp.le.s32.totalorder 2, %s16
    // Predicated region
    $region65: #{resblk_forward.1} parent=5 // pred_check
      %p4662 = pneg %p4661
    $region66: #{resblk_forward.1} parent=5 // pred_check_branch
      %4664 = sbr.rel (%p4662) target = $region68
    $region67: #{resblk_forward.1} parent=5 // pred_region
      %s4665 = ssub.s32 %s16, 2
      // Predicated region
      $region69: #{resblk_forward.1} parent=67 // pred_check
        %p4666 = pneg %p260
      $region70: #{resblk_forward.1} parent=67 // pred_check_branch
        %4668 = sbr.rel (%p4666) target = $region72
      $region71: #{resblk_forward.1} parent=67 // pred_region
        %p4669 = scmp.lt.s32.totalorder %s22, 1
        %s4670 = scalar_select %p4669, %s22, 1
        %s4671 = smul.addr %s4670, 8
        %s4672 = smul.addr %s4671, 8
        %s4673 = scalar_lea.vmem %s10, %s4672
      $region72: #{resblk_forward.1} parent=67 // pred_fallthru
        _
    $region68: #{resblk_forward.1} parent=5 // pred_fallthru
      _
  $region6: #{resblk_forward.1} parent=0 // loop_footer
    %s20 = sadd.s32 1, %s16
  $region7: #{resblk_forward.1} parent=0 // loop_footer_branch
    %15 = sbr.rel target = $region3
  $region8: #{resblk_forward.1} parent=0 // loop_exit
    _

</llo_original>
